<compile_context>
chip_gen: v7x
topology: tpu7x:2x2x1
jax: 0.10.0
libtpu: 0.0.40
codegen_flags: <defaults>
</compile_context>

<pallas_src>
import functools

import jax
import jax.numpy as jnp
from jax.experimental import pallas as pl
from jax.experimental.pallas import tpu as pltpu

LANES = 128      # slab width / lane-dense output slab width
OUT_PAD = 128    # output slab:  [ a (D) | c (1) | h (S) | zero pad ]


def _slab_layout(S):
    """Static row layout of the packed parameter slab (width 128 lanes, f32)."""
    assert 3 * S <= LANES and 6 * S <= LANES, "slab packing assumes 6*S <= 128 lanes"
    SP = -(-S // 8) * 8                       # matrix blocks start on 8-row boundaries
    lay = {
        "wqkv": (0 * SP, 1 * SP, 2 * SP),     # per block (S, 3S): [Wq^T | Wk^T | Wv^T]
        "fcw":  (3 * SP, 4 * SP, 5 * SP),     # per block (S, 2S): [fc_w^T | fc2_w^T (pad)]
        "vec":  6 * SP,                       # 3 rows: [fc_b|ln1_g|ln1_b|fc2_b|ln2_g|ln2_b]
        "coef": 6 * SP + 3,                   # 3 rows: [c0 x S | c1 x S | c2 x S] pre-broadcast
        "hid":  6 * SP + 6,                   # 1 row:  hidden state (1, S)
        "cc":   6 * SP + 7,                   # 1 row, col 0: linear_c norm2 beta (== c output)
    }
    lay["rows"] = -(-(6 * SP + 8) // 8) * 8
    return lay


def optimnet_kernel(S, D, is_forget, x_ref, slab_ref, o_ref):
    B = x_ref.shape[0]
    f32 = jnp.float32
    L = _slab_layout(S)

    def sigmoid(t):
        # logistic via EUP tanh (exact identity): sigmoid(x) = 0.5*tanh(x/2) + 0.5
        return 0.5 * jnp.tanh(0.5 * t) + 0.5

    def layernorm(t, g, b, eps=1e-5):
        mu = jnp.mean(t, axis=-1, keepdims=True)
        d = t - mu
        var = jnp.mean(d * d, axis=-1, keepdims=True)
        return d * jax.lax.rsqrt(var + eps) * g + b

    def vec(blk, j):     # j-th (1, S) bias/LN vector of block blk
        r = L["vec"] + blk
        return slab_ref[r:r + 1, j * S:(j + 1) * S]

    def coef(blk, j):    # pre-broadcast (1, S) activation coefficient
        r = L["coef"] + blk
        return slab_ref[r:r + 1, j * S:(j + 1) * S]

    def attn_block(xin, blk, out_size, apply_sig):
        r = L["wqkv"][blk]
        qkv = jnp.dot(xin, slab_ref[r:r + S, 0:3 * S], preferred_element_type=f32)  # (B,3S)
        q = qkv[:, 0:S]
        k = qkv[:, S:2 * S]
        v = qkv[:, 2 * S:3 * S]

        # Softmax max of the rank-1 score matrix q_i*k_j is one of the four corner
        # products of (min/max q) x (min/max k): four cheap (B,S) lane reductions
        # instead of reducing the (B,S,S) tensor across sublanes (XLU-heavy).
        qmx = jnp.max(q, axis=-1, keepdims=True)
        qmn = jnp.min(q, axis=-1, keepdims=True)
        kmx = jnp.max(k, axis=-1, keepdims=True)
        kmn = jnp.min(k, axis=-1, keepdims=True)
        m = jnp.maximum(jnp.maximum(qmx * kmx, qmx * kmn),
                        jnp.maximum(qmn * kmx, qmn * kmn))                  # (B,1)

        att = q[:, :, None] * k[:, None, :]                                 # (B,S,S)
        e = jnp.exp(att - m[:, :, None])
        z = jnp.sum(jnp.sum(e, axis=-1), axis=-1, keepdims=True)            # (B,1)
        ev = jnp.sum(e * v[:, None, :], axis=-1)                            # (B,S)
        valued = ev * pl.reciprocal(z, approx=False)    # exact to preserve 1e-4 parity

        # OptimActivation with folded, pre-broadcast coefficients
        act = valued * (sigmoid(valued) * coef(blk, 0) + coef(blk, 2)) \
            + jnp.sin(valued) * coef(blk, 1)

        rf = L["fcw"][blk]
        fc = jnp.dot(act, slab_ref[rf:rf + S, 0:S], preferred_element_type=f32) + vec(blk, 0)
        fc = layernorm(fc, vec(blk, 1), vec(blk, 2))

        fc2 = jnp.dot(fc, slab_ref[rf:rf + S, S:2 * S],
                      preferred_element_type=f32)[:, :out_size]
        fc2 = fc2 + vec(blk, 3)[:, :out_size]
        out = layernorm(fc2, vec(blk, 4)[:, :out_size], vec(blk, 5)[:, :out_size])
        if apply_sig:                                                        # static flag
            out = sigmoid(out)
        return out

    x = x_ref[...]                                                           # (B,S)
    h1 = attn_block(x, 0, S, False)                                          # linear_h
    h2 = attn_block(h1 + slab_ref[L["hid"]:L["hid"] + 1, 0:S], 1, S, False)  # linear_h2
    a_out = attn_block(h2, 2, D, is_forget)                                  # linear_a

    # linear_c: LayerNorm over out_size=1 is input-independent ((x - mean) == 0), so
    # its output is exactly norm2.bias -> read the precomputed scalar, skip the block.
    c_col = jnp.broadcast_to(slab_ref[L["cc"]:L["cc"] + 1, 0:1], (B, 1))

    pad = jnp.zeros((B, OUT_PAD - (D + 1 + S)), f32)
    o_ref[...] = jnp.concatenate([a_out, c_col, h2, pad], axis=-1)  # one lane-dense store


def optimnet_forward(p_grad, param_slab, *, S, D, is_forget=True):
    """a, c, h = OptimNet.forward(p_grad, is_forget) — single fused pallas_call."""
    B = p_grad.shape[0]
    kernel = functools.partial(optimnet_kernel, S, D, is_forget)
    vmem = pl.BlockSpec(memory_space=pltpu.MemorySpace.VMEM)
    slab = pl.pallas_call(
        kernel,
        out_shape=jax.ShapeDtypeStruct((B, OUT_PAD), jnp.float32),
        in_specs=[vmem, vmem],
        out_specs=vmem,
    )(p_grad, param_slab)
    a = slab[:, :D]
    c = slab[:, D:D + 1]
    h = slab[:, D + 1:D + 1 + S]
    return a, c, h


# ---------------- deterministic parameter construction (synthetic) ----------------

def init_attn_params(key, size, out_size):
    ks = jax.random.split(key, 7)
    bound = 1.0 / float(size) ** 0.5

    def u(k, shape):
        return jax.random.uniform(k, shape, jnp.float32, -bound, bound)

    wq = u(ks[0], (size, size))          # PyTorch layout (out, in)
    wk = u(ks[1], (size, size))
    wv = u(ks[2], (size, size))
    fc_w = u(ks[3], (size, size))
    fc_b = u(ks[4], (size,))
    fc2_w = u(ks[5], (out_size, size))
    fc2_b = u(ks[6], (out_size,))

    # OptimActivation params init to zeros -> softmax coefficients (plain JAX glue).
    act_params = jnp.zeros((5,), jnp.float32)
    coeffs = jax.nn.softmax(act_params)[:3]

    return {
        "wq_t": wq.T, "wk_t": wk.T, "wv_t": wv.T,            # (in, out)
        "coeffs": coeffs,                                     # (3,)
        "fc_w_t": fc_w.T, "fc_b": fc_b.reshape(1, size),
        "ln1_g": jnp.ones((1, size), jnp.float32),
        "ln1_b": jnp.zeros((1, size), jnp.float32),
        "fc2_w_t": fc2_w.T, "fc2_b": fc2_b.reshape(1, out_size),
        "ln2_g": jnp.ones((1, out_size), jnp.float32),
        "ln2_b": jnp.zeros((1, out_size), jnp.float32),
    }


def pack_optimnet_params(params, S, D):
    """One-time packing of all parameters into a single lane-dense (rows,128) slab."""
    L = _slab_layout(S)

    def pad_cols(x, w):
        return jnp.pad(x, ((0, 0), (0, w - x.shape[1])))

    def wqkv(p):
        return jnp.concatenate([p["wq_t"], p["wk_t"], p["wv_t"]], axis=1)   # (S, 3S)

    blocks = [params["linear_h"], params["linear_h2"], params["linear_a"]]
    slab = jnp.zeros((L["rows"], LANES), jnp.float32)
    for i, b in enumerate(blocks):
        slab = slab.at[L["wqkv"][i]:L["wqkv"][i] + S, 0:3 * S].set(wqkv(b))
        fcw2 = jnp.concatenate([b["fc_w_t"], pad_cols(b["fc2_w_t"], S)], axis=1)  # (S, 2S)
        slab = slab.at[L["fcw"][i]:L["fcw"][i] + S, 0:2 * S].set(fcw2)
        vec_row = jnp.concatenate(
            [b["fc_b"], b["ln1_g"], b["ln1_b"],
             pad_cols(b["fc2_b"], S), pad_cols(b["ln2_g"], S), pad_cols(b["ln2_b"], S)],
            axis=1)                                                          # (1, 6S)
        slab = slab.at[L["vec"] + i, 0:6 * S].set(vec_row[0])
        coef_row = jnp.concatenate(
            [jnp.full((S,), b["coeffs"][j], jnp.float32) for j in range(3)])  # (3S,)
        slab = slab.at[L["coef"] + i, 0:3 * S].set(coef_row)
    slab = slab.at[L["hid"], 0:S].set(params["hidden"][0])
    # linear_c output constant: LayerNorm over a single feature == its beta.
    slab = slab.at[L["cc"], 0].set(params["linear_c"]["ln2_b"][0, 0])
    return slab


# ---------------- pure-JAX reference (numerical sanity check) ----------------

def _layernorm_ref(x, g, b, eps=1e-5):
    mu = jnp.mean(x, axis=-1, keepdims=True)
    var = jnp.mean((x - mu) * (x - mu), axis=-1, keepdims=True)
    return (x - mu) * jax.lax.rsqrt(var + eps) * g + b


def _attn_ref(x, p):
    q = x @ p["wq_t"]
    k = x @ p["wk_t"]
    v = x @ p["wv_t"]
    B, S = x.shape
    att = q[:, :, None] * k[:, None, :]
    att = jax.nn.softmax(att.reshape(B, S * S), axis=-1).reshape(B, S, S)
    valued = jnp.einsum("bij,bj->bi", att, v)
    c = p["coeffs"]
    act = jax.nn.sigmoid(valued) * valued * c[0] + jnp.sin(valued) * c[1] + valued * c[2]
    fc = _layernorm_ref(act @ p["fc_w_t"] + p["fc_b"], p["ln1_g"], p["ln1_b"])
    return _layernorm_ref(fc @ p["fc2_w_t"] + p["fc2_b"], p["ln2_g"], p["ln2_b"])


def _forward_ref(p_grad, params, is_forget=True):
    h = _attn_ref(p_grad, params["linear_h"])
    h = _attn_ref(h + params["hidden"], params["linear_h2"])
    c = _attn_ref(h, params["linear_c"])
    a = _attn_ref(h, params["linear_a"])
    if is_forget:
        a = jax.nn.sigmoid(a)
    return a, c, h


if __name__ == "__main__":
    D = 8               # params.size()[-1]
    S = 2 * D           # OptimAttn size
    B = 2               # batch of gradient rows

    key = jax.random.PRNGKey(0)
    k_in, k_h, k_h2, k_c, k_a = jax.random.split(key, 5)

    p_grad = jax.random.normal(k_in, (B, S), jnp.float32)
    params = {
        "linear_h": init_attn_params(k_h, S, S),
        "linear_h2": init_attn_params(k_h2, S, S),
        "linear_c": init_attn_params(k_c, S, 1),
        "linear_a": init_attn_params(k_a, S, D),
        "hidden": jnp.zeros((1, S), jnp.float32),
    }
    param_slab = pack_optimnet_params(params, S, D)

    fwd = jax.jit(functools.partial(optimnet_forward, S=S, D=D, is_forget=True))
    a, c, h = jax.block_until_ready(fwd(p_grad, param_slab))

    a_r, c_r, h_r = _forward_ref(p_grad, params, is_forget=True)
    assert a.shape == (B, D) and c.shape == (B, 1) and h.shape == (B, S)
    for got, ref in ((a, a_r), (c, c_r), (h, h_r)):
        assert jnp.allclose(got, ref, rtol=2e-4, atol=2e-5), "mismatch vs reference"

    print("KERNEL_OK")
</pallas_src>

<mosaic_0001>
module attributes {stable_mosaic.version = 11 : i64} {
  func.func @optimnet_kernel(%arg0: memref<2x16xf32, #tpu.memory_space<vmem>>, %arg1: memref<104x128xf32, #tpu.memory_space<vmem>>, %arg2: memref<2x128xf32, #tpu.memory_space<vmem>>) attributes {dimension_semantics = [], scalar_prefetch = 0 : i64, scratch_operands = 0 : i64, tpu.core_type = #tpu.core_type<tc>} {
    %c0 = arith.constant 0 : index
    %c0_0 = arith.constant 0 : index
    %0 = vector.load %arg0[%c0, %c0_0] : memref<2x16xf32, #tpu.memory_space<vmem>>, vector<2x16xf32>
    %c0_1 = arith.constant 0 : index
    %c0_2 = arith.constant 0 : index
    %1 = vector.load %arg1[%c0_1, %c0_2] : memref<104x128xf32, #tpu.memory_space<vmem>>, vector<16x48xf32>
    %cst = arith.constant dense<0.000000e+00> : vector<2x48xf32>
    %2 = tpu.matmul %0, %1, %cst {dimension_numbers = #tpu.dot_dimension_numbers<[1], [0], [0], [1], [0, 0, 1, 1], [], []>} : vector<2x16xf32>, vector<16x48xf32>, vector<2x48xf32> -> vector<2x48xf32>
    %3 = vector.extract_strided_slice %2 {offsets = [0, 0], sizes = [2, 16], strides = [1, 1]} : vector<2x48xf32> to vector<2x16xf32>
    %4 = vector.extract_strided_slice %2 {offsets = [0, 16], sizes = [2, 16], strides = [1, 1]} : vector<2x48xf32> to vector<2x16xf32>
    %5 = vector.extract_strided_slice %2 {offsets = [0, 32], sizes = [2, 16], strides = [1, 1]} : vector<2x48xf32> to vector<2x16xf32>
    %cst_3 = arith.constant dense<0xFF800000> : vector<2xf32>
    %6 = vector.multi_reduction <maximumf>, %3, %cst_3 [1] : vector<2x16xf32> to vector<2xf32>
    %7 = vector.shape_cast %6 : vector<2xf32> to vector<2x1xf32>
    %cst_4 = arith.constant dense<0x7F800000> : vector<2xf32>
    %8 = vector.multi_reduction <minimumf>, %3, %cst_4 [1] : vector<2x16xf32> to vector<2xf32>
    %9 = vector.shape_cast %8 : vector<2xf32> to vector<2x1xf32>
    %cst_5 = arith.constant dense<0xFF800000> : vector<2xf32>
    %10 = vector.multi_reduction <maximumf>, %4, %cst_5 [1] : vector<2x16xf32> to vector<2xf32>
    %11 = vector.shape_cast %10 : vector<2xf32> to vector<2x1xf32>
    %cst_6 = arith.constant dense<0x7F800000> : vector<2xf32>
    %12 = vector.multi_reduction <minimumf>, %4, %cst_6 [1] : vector<2x16xf32> to vector<2xf32>
    %13 = vector.shape_cast %12 : vector<2xf32> to vector<2x1xf32>
    %14 = arith.mulf %7, %11 : vector<2x1xf32>
    %15 = arith.mulf %7, %13 : vector<2x1xf32>
    %16 = arith.maximumf %14, %15 : vector<2x1xf32>
    %17 = arith.mulf %9, %11 : vector<2x1xf32>
    %18 = arith.mulf %9, %13 : vector<2x1xf32>
    %19 = arith.maximumf %17, %18 : vector<2x1xf32>
    %20 = arith.maximumf %16, %19 : vector<2x1xf32>
    %21 = vector.shape_cast %3 : vector<2x16xf32> to vector<2x16x1xf32>
    %22 = vector.shape_cast %4 : vector<2x16xf32> to vector<2x1x16xf32>
    %23 = vector.broadcast %21 : vector<2x16x1xf32> to vector<2x16x16xf32>
    %24 = vector.broadcast %22 : vector<2x1x16xf32> to vector<2x16x16xf32>
    %25 = arith.mulf %23, %24 : vector<2x16x16xf32>
    %26 = vector.shape_cast %20 : vector<2x1xf32> to vector<2x1x1xf32>
    %27 = vector.broadcast %26 : vector<2x1x1xf32> to vector<2x16x16xf32>
    %28 = arith.subf %25, %27 : vector<2x16x16xf32>
    %29 = math.exp %28 : vector<2x16x16xf32>
    %cst_7 = arith.constant dense<0.000000e+00> : vector<2x16xf32>
    %30 = vector.multi_reduction <add>, %29, %cst_7 [2] : vector<2x16x16xf32> to vector<2x16xf32>
    %cst_8 = arith.constant dense<0.000000e+00> : vector<2xf32>
    %31 = vector.multi_reduction <add>, %30, %cst_8 [1] : vector<2x16xf32> to vector<2xf32>
    %32 = vector.shape_cast %31 : vector<2xf32> to vector<2x1xf32>
    %33 = vector.shape_cast %5 : vector<2x16xf32> to vector<2x1x16xf32>
    %34 = vector.broadcast %33 : vector<2x1x16xf32> to vector<2x16x16xf32>
    %35 = arith.mulf %29, %34 : vector<2x16x16xf32>
    %cst_9 = arith.constant dense<0.000000e+00> : vector<2x16xf32>
    %36 = vector.multi_reduction <add>, %35, %cst_9 [2] : vector<2x16x16xf32> to vector<2x16xf32>
    %37 = tpu.reciprocal %32 : vector<2x1xf32> -> vector<2x1xf32>
    %38 = vector.broadcast %37 : vector<2x1xf32> to vector<2x16xf32>
    %39 = arith.mulf %36, %38 : vector<2x16xf32>
    %cst_10 = arith.constant 5.000000e-01 : f32
    %40 = vector.broadcast %cst_10 : f32 to vector<2x16xf32>
    %41 = arith.mulf %40, %39 : vector<2x16xf32>
    %42 = math.tanh %41 : vector<2x16xf32>
    %cst_11 = arith.constant 5.000000e-01 : f32
    %43 = vector.broadcast %cst_11 : f32 to vector<2x16xf32>
    %44 = arith.mulf %43, %42 : vector<2x16xf32>
    %cst_12 = arith.constant 5.000000e-01 : f32
    %45 = vector.broadcast %cst_12 : f32 to vector<2x16xf32>
    %46 = arith.addf %44, %45 : vector<2x16xf32>
    %c99 = arith.constant 99 : index
    %c0_13 = arith.constant 0 : index
    %47 = vector.load %arg1[%c99, %c0_13] : memref<104x128xf32, #tpu.memory_space<vmem>>, vector<1x16xf32>
    %48 = vector.broadcast %47 : vector<1x16xf32> to vector<2x16xf32>
    %49 = arith.mulf %46, %48 : vector<2x16xf32>
    %c99_14 = arith.constant 99 : index
    %c32 = arith.constant 32 : index
    %50 = vector.load %arg1[%c99_14, %c32] : memref<104x128xf32, #tpu.memory_space<vmem>>, vector<1x16xf32>
    %51 = vector.broadcast %50 : vector<1x16xf32> to vector<2x16xf32>
    %52 = arith.addf %49, %51 : vector<2x16xf32>
    %53 = arith.mulf %39, %52 : vector<2x16xf32>
    %54 = math.sin %39 : vector<2x16xf32>
    %c99_15 = arith.constant 99 : index
    %c16 = arith.constant 16 : index
    %55 = vector.load %arg1[%c99_15, %c16] : memref<104x128xf32, #tpu.memory_space<vmem>>, vector<1x16xf32>
    %56 = vector.broadcast %55 : vector<1x16xf32> to vector<2x16xf32>
    %57 = arith.mulf %54, %56 : vector<2x16xf32>
    %58 = arith.addf %53, %57 : vector<2x16xf32>
    %c48 = arith.constant 48 : index
    %c0_16 = arith.constant 0 : index
    %59 = vector.load %arg1[%c48, %c0_16] : memref<104x128xf32, #tpu.memory_space<vmem>>, vector<16x16xf32>
    %cst_17 = arith.constant dense<0.000000e+00> : vector<2x16xf32>
    %60 = tpu.matmul %58, %59, %cst_17 {dimension_numbers = #tpu.dot_dimension_numbers<[1], [0], [0], [1], [0, 0, 1, 1], [], []>} : vector<2x16xf32>, vector<16x16xf32>, vector<2x16xf32> -> vector<2x16xf32>
    %c96 = arith.constant 96 : index
    %c0_18 = arith.constant 0 : index
    %61 = vector.load %arg1[%c96, %c0_18] : memref<104x128xf32, #tpu.memory_space<vmem>>, vector<1x16xf32>
    %62 = vector.broadcast %61 : vector<1x16xf32> to vector<2x16xf32>
    %63 = arith.addf %60, %62 : vector<2x16xf32>
    %c96_19 = arith.constant 96 : index
    %c16_20 = arith.constant 16 : index
    %64 = vector.load %arg1[%c96_19, %c16_20] : memref<104x128xf32, #tpu.memory_space<vmem>>, vector<1x16xf32>
    %c96_21 = arith.constant 96 : index
    %c32_22 = arith.constant 32 : index
    %65 = vector.load %arg1[%c96_21, %c32_22] : memref<104x128xf32, #tpu.memory_space<vmem>>, vector<1x16xf32>
    %cst_23 = arith.constant dense<0.000000e+00> : vector<2xf32>
    %66 = vector.multi_reduction <add>, %63, %cst_23 [1] : vector<2x16xf32> to vector<2xf32>
    %67 = vector.shape_cast %66 : vector<2xf32> to vector<2x1xf32>
    %cst_24 = arith.constant 1.600000e+01 : f32
    %68 = vector.broadcast %cst_24 : f32 to vector<2x1xf32>
    %69 = arith.divf %67, %68 : vector<2x1xf32>
    %70 = vector.broadcast %69 : vector<2x1xf32> to vector<2x16xf32>
    %71 = arith.subf %63, %70 : vector<2x16xf32>
    %72 = arith.mulf %71, %71 : vector<2x16xf32>
    %cst_25 = arith.constant dense<0.000000e+00> : vector<2xf32>
    %73 = vector.multi_reduction <add>, %72, %cst_25 [1] : vector<2x16xf32> to vector<2xf32>
    %74 = vector.shape_cast %73 : vector<2xf32> to vector<2x1xf32>
    %cst_26 = arith.constant 1.600000e+01 : f32
    %75 = vector.broadcast %cst_26 : f32 to vector<2x1xf32>
    %76 = arith.divf %74, %75 : vector<2x1xf32>
    %cst_27 = arith.constant 9.99999974E-6 : f32
    %77 = vector.broadcast %cst_27 : f32 to vector<2x1xf32>
    %78 = arith.addf %76, %77 : vector<2x1xf32>
    %79 = math.rsqrt %78 : vector<2x1xf32>
    %80 = vector.broadcast %79 : vector<2x1xf32> to vector<2x16xf32>
    %81 = arith.mulf %71, %80 : vector<2x16xf32>
    %82 = vector.broadcast %64 : vector<1x16xf32> to vector<2x16xf32>
    %83 = arith.mulf %81, %82 : vector<2x16xf32>
    %84 = vector.broadcast %65 : vector<1x16xf32> to vector<2x16xf32>
    %85 = arith.addf %83, %84 : vector<2x16xf32>
    %c48_28 = arith.constant 48 : index
    %c16_29 = arith.constant 16 : index
    %86 = vector.load %arg1[%c48_28, %c16_29] : memref<104x128xf32, #tpu.memory_space<vmem>>, vector<16x16xf32>
    %cst_30 = arith.constant dense<0.000000e+00> : vector<2x16xf32>
    %87 = tpu.matmul %85, %86, %cst_30 {dimension_numbers = #tpu.dot_dimension_numbers<[1], [0], [0], [1], [0, 0, 1, 1], [], []>} : vector<2x16xf32>, vector<16x16xf32>, vector<2x16xf32> -> vector<2x16xf32>
    %c96_31 = arith.constant 96 : index
    %c48_32 = arith.constant 48 : index
    %88 = vector.load %arg1[%c96_31, %c48_32] : memref<104x128xf32, #tpu.memory_space<vmem>>, vector<1x16xf32>
    %89 = vector.broadcast %88 : vector<1x16xf32> to vector<2x16xf32>
    %90 = arith.addf %87, %89 : vector<2x16xf32>
    %c96_33 = arith.constant 96 : index
    %c64 = arith.constant 64 : index
    %91 = vector.load %arg1[%c96_33, %c64] : memref<104x128xf32, #tpu.memory_space<vmem>>, vector<1x16xf32>
    %c96_34 = arith.constant 96 : index
    %c80 = arith.constant 80 : index
    %92 = vector.load %arg1[%c96_34, %c80] : memref<104x128xf32, #tpu.memory_space<vmem>>, vector<1x16xf32>
    %cst_35 = arith.constant dense<0.000000e+00> : vector<2xf32>
    %93 = vector.multi_reduction <add>, %90, %cst_35 [1] : vector<2x16xf32> to vector<2xf32>
    %94 = vector.shape_cast %93 : vector<2xf32> to vector<2x1xf32>
    %cst_36 = arith.constant 1.600000e+01 : f32
    %95 = vector.broadcast %cst_36 : f32 to vector<2x1xf32>
    %96 = arith.divf %94, %95 : vector<2x1xf32>
    %97 = vector.broadcast %96 : vector<2x1xf32> to vector<2x16xf32>
    %98 = arith.subf %90, %97 : vector<2x16xf32>
    %99 = arith.mulf %98, %98 : vector<2x16xf32>
    %cst_37 = arith.constant dense<0.000000e+00> : vector<2xf32>
    %100 = vector.multi_reduction <add>, %99, %cst_37 [1] : vector<2x16xf32> to vector<2xf32>
    %101 = vector.shape_cast %100 : vector<2xf32> to vector<2x1xf32>
    %cst_38 = arith.constant 1.600000e+01 : f32
    %102 = vector.broadcast %cst_38 : f32 to vector<2x1xf32>
    %103 = arith.divf %101, %102 : vector<2x1xf32>
    %cst_39 = arith.constant 9.99999974E-6 : f32
    %104 = vector.broadcast %cst_39 : f32 to vector<2x1xf32>
    %105 = arith.addf %103, %104 : vector<2x1xf32>
    %106 = math.rsqrt %105 : vector<2x1xf32>
    %107 = vector.broadcast %106 : vector<2x1xf32> to vector<2x16xf32>
    %108 = arith.mulf %98, %107 : vector<2x16xf32>
    %109 = vector.broadcast %91 : vector<1x16xf32> to vector<2x16xf32>
    %110 = arith.mulf %108, %109 : vector<2x16xf32>
    %111 = vector.broadcast %92 : vector<1x16xf32> to vector<2x16xf32>
    %112 = arith.addf %110, %111 : vector<2x16xf32>
    %c102 = arith.constant 102 : index
    %c0_40 = arith.constant 0 : index
    %113 = vector.load %arg1[%c102, %c0_40] : memref<104x128xf32, #tpu.memory_space<vmem>>, vector<1x16xf32>
    %114 = vector.broadcast %113 : vector<1x16xf32> to vector<2x16xf32>
    %115 = arith.addf %112, %114 : vector<2x16xf32>
    %c16_41 = arith.constant 16 : index
    %c0_42 = arith.constant 0 : index
    %116 = vector.load %arg1[%c16_41, %c0_42] : memref<104x128xf32, #tpu.memory_space<vmem>>, vector<16x48xf32>
    %cst_43 = arith.constant dense<0.000000e+00> : vector<2x48xf32>
    %117 = tpu.matmul %115, %116, %cst_43 {dimension_numbers = #tpu.dot_dimension_numbers<[1], [0], [0], [1], [0, 0, 1, 1], [], []>} : vector<2x16xf32>, vector<16x48xf32>, vector<2x48xf32> -> vector<2x48xf32>
    %118 = vector.extract_strided_slice %117 {offsets = [0, 0], sizes = [2, 16], strides = [1, 1]} : vector<2x48xf32> to vector<2x16xf32>
    %119 = vector.extract_strided_slice %117 {offsets = [0, 16], sizes = [2, 16], strides = [1, 1]} : vector<2x48xf32> to vector<2x16xf32>
    %120 = vector.extract_strided_slice %117 {offsets = [0, 32], sizes = [2, 16], strides = [1, 1]} : vector<2x48xf32> to vector<2x16xf32>
    %cst_44 = arith.constant dense<0xFF800000> : vector<2xf32>
    %121 = vector.multi_reduction <maximumf>, %118, %cst_44 [1] : vector<2x16xf32> to vector<2xf32>
    %122 = vector.shape_cast %121 : vector<2xf32> to vector<2x1xf32>
    %cst_45 = arith.constant dense<0x7F800000> : vector<2xf32>
    %123 = vector.multi_reduction <minimumf>, %118, %cst_45 [1] : vector<2x16xf32> to vector<2xf32>
    %124 = vector.shape_cast %123 : vector<2xf32> to vector<2x1xf32>
    %cst_46 = arith.constant dense<0xFF800000> : vector<2xf32>
    %125 = vector.multi_reduction <maximumf>, %119, %cst_46 [1] : vector<2x16xf32> to vector<2xf32>
    %126 = vector.shape_cast %125 : vector<2xf32> to vector<2x1xf32>
    %cst_47 = arith.constant dense<0x7F800000> : vector<2xf32>
    %127 = vector.multi_reduction <minimumf>, %119, %cst_47 [1] : vector<2x16xf32> to vector<2xf32>
    %128 = vector.shape_cast %127 : vector<2xf32> to vector<2x1xf32>
    %129 = arith.mulf %122, %126 : vector<2x1xf32>
    %130 = arith.mulf %122, %128 : vector<2x1xf32>
    %131 = arith.maximumf %129, %130 : vector<2x1xf32>
    %132 = arith.mulf %124, %126 : vector<2x1xf32>
    %133 = arith.mulf %124, %128 : vector<2x1xf32>
    %134 = arith.maximumf %132, %133 : vector<2x1xf32>
    %135 = arith.maximumf %131, %134 : vector<2x1xf32>
    %136 = vector.shape_cast %118 : vector<2x16xf32> to vector<2x16x1xf32>
    %137 = vector.shape_cast %119 : vector<2x16xf32> to vector<2x1x16xf32>
    %138 = vector.broadcast %136 : vector<2x16x1xf32> to vector<2x16x16xf32>
    %139 = vector.broadcast %137 : vector<2x1x16xf32> to vector<2x16x16xf32>
    %140 = arith.mulf %138, %139 : vector<2x16x16xf32>
    %141 = vector.shape_cast %135 : vector<2x1xf32> to vector<2x1x1xf32>
    %142 = vector.broadcast %141 : vector<2x1x1xf32> to vector<2x16x16xf32>
    %143 = arith.subf %140, %142 : vector<2x16x16xf32>
    %144 = math.exp %143 : vector<2x16x16xf32>
    %cst_48 = arith.constant dense<0.000000e+00> : vector<2x16xf32>
    %145 = vector.multi_reduction <add>, %144, %cst_48 [2] : vector<2x16x16xf32> to vector<2x16xf32>
    %cst_49 = arith.constant dense<0.000000e+00> : vector<2xf32>
    %146 = vector.multi_reduction <add>, %145, %cst_49 [1] : vector<2x16xf32> to vector<2xf32>
    %147 = vector.shape_cast %146 : vector<2xf32> to vector<2x1xf32>
    %148 = vector.shape_cast %120 : vector<2x16xf32> to vector<2x1x16xf32>
    %149 = vector.broadcast %148 : vector<2x1x16xf32> to vector<2x16x16xf32>
    %150 = arith.mulf %144, %149 : vector<2x16x16xf32>
    %cst_50 = arith.constant dense<0.000000e+00> : vector<2x16xf32>
    %151 = vector.multi_reduction <add>, %150, %cst_50 [2] : vector<2x16x16xf32> to vector<2x16xf32>
    %152 = tpu.reciprocal %147 : vector<2x1xf32> -> vector<2x1xf32>
    %153 = vector.broadcast %152 : vector<2x1xf32> to vector<2x16xf32>
    %154 = arith.mulf %151, %153 : vector<2x16xf32>
    %cst_51 = arith.constant 5.000000e-01 : f32
    %155 = vector.broadcast %cst_51 : f32 to vector<2x16xf32>
    %156 = arith.mulf %155, %154 : vector<2x16xf32>
    %157 = math.tanh %156 : vector<2x16xf32>
    %cst_52 = arith.constant 5.000000e-01 : f32
    %158 = vector.broadcast %cst_52 : f32 to vector<2x16xf32>
    %159 = arith.mulf %158, %157 : vector<2x16xf32>
    %cst_53 = arith.constant 5.000000e-01 : f32
    %160 = vector.broadcast %cst_53 : f32 to vector<2x16xf32>
    %161 = arith.addf %159, %160 : vector<2x16xf32>
    %c100 = arith.constant 100 : index
    %c0_54 = arith.constant 0 : index
    %162 = vector.load %arg1[%c100, %c0_54] : memref<104x128xf32, #tpu.memory_space<vmem>>, vector<1x16xf32>
    %163 = vector.broadcast %162 : vector<1x16xf32> to vector<2x16xf32>
    %164 = arith.mulf %161, %163 : vector<2x16xf32>
    %c100_55 = arith.constant 100 : index
    %c32_56 = arith.constant 32 : index
    %165 = vector.load %arg1[%c100_55, %c32_56] : memref<104x128xf32, #tpu.memory_space<vmem>>, vector<1x16xf32>
    %166 = vector.broadcast %165 : vector<1x16xf32> to vector<2x16xf32>
    %167 = arith.addf %164, %166 : vector<2x16xf32>
    %168 = arith.mulf %154, %167 : vector<2x16xf32>
    %169 = math.sin %154 : vector<2x16xf32>
    %c100_57 = arith.constant 100 : index
    %c16_58 = arith.constant 16 : index
    %170 = vector.load %arg1[%c100_57, %c16_58] : memref<104x128xf32, #tpu.memory_space<vmem>>, vector<1x16xf32>
    %171 = vector.broadcast %170 : vector<1x16xf32> to vector<2x16xf32>
    %172 = arith.mulf %169, %171 : vector<2x16xf32>
    %173 = arith.addf %168, %172 : vector<2x16xf32>
    %c64_59 = arith.constant 64 : index
    %c0_60 = arith.constant 0 : index
    %174 = vector.load %arg1[%c64_59, %c0_60] : memref<104x128xf32, #tpu.memory_space<vmem>>, vector<16x16xf32>
    %cst_61 = arith.constant dense<0.000000e+00> : vector<2x16xf32>
    %175 = tpu.matmul %173, %174, %cst_61 {dimension_numbers = #tpu.dot_dimension_numbers<[1], [0], [0], [1], [0, 0, 1, 1], [], []>} : vector<2x16xf32>, vector<16x16xf32>, vector<2x16xf32> -> vector<2x16xf32>
    %c97 = arith.constant 97 : index
    %c0_62 = arith.constant 0 : index
    %176 = vector.load %arg1[%c97, %c0_62] : memref<104x128xf32, #tpu.memory_space<vmem>>, vector<1x16xf32>
    %177 = vector.broadcast %176 : vector<1x16xf32> to vector<2x16xf32>
    %178 = arith.addf %175, %177 : vector<2x16xf32>
    %c97_63 = arith.constant 97 : index
    %c16_64 = arith.constant 16 : index
    %179 = vector.load %arg1[%c97_63, %c16_64] : memref<104x128xf32, #tpu.memory_space<vmem>>, vector<1x16xf32>
    %c97_65 = arith.constant 97 : index
    %c32_66 = arith.constant 32 : index
    %180 = vector.load %arg1[%c97_65, %c32_66] : memref<104x128xf32, #tpu.memory_space<vmem>>, vector<1x16xf32>
    %cst_67 = arith.constant dense<0.000000e+00> : vector<2xf32>
    %181 = vector.multi_reduction <add>, %178, %cst_67 [1] : vector<2x16xf32> to vector<2xf32>
    %182 = vector.shape_cast %181 : vector<2xf32> to vector<2x1xf32>
    %cst_68 = arith.constant 1.600000e+01 : f32
    %183 = vector.broadcast %cst_68 : f32 to vector<2x1xf32>
    %184 = arith.divf %182, %183 : vector<2x1xf32>
    %185 = vector.broadcast %184 : vector<2x1xf32> to vector<2x16xf32>
    %186 = arith.subf %178, %185 : vector<2x16xf32>
    %187 = arith.mulf %186, %186 : vector<2x16xf32>
    %cst_69 = arith.constant dense<0.000000e+00> : vector<2xf32>
    %188 = vector.multi_reduction <add>, %187, %cst_69 [1] : vector<2x16xf32> to vector<2xf32>
    %189 = vector.shape_cast %188 : vector<2xf32> to vector<2x1xf32>
    %cst_70 = arith.constant 1.600000e+01 : f32
    %190 = vector.broadcast %cst_70 : f32 to vector<2x1xf32>
    %191 = arith.divf %189, %190 : vector<2x1xf32>
    %cst_71 = arith.constant 9.99999974E-6 : f32
    %192 = vector.broadcast %cst_71 : f32 to vector<2x1xf32>
    %193 = arith.addf %191, %192 : vector<2x1xf32>
    %194 = math.rsqrt %193 : vector<2x1xf32>
    %195 = vector.broadcast %194 : vector<2x1xf32> to vector<2x16xf32>
    %196 = arith.mulf %186, %195 : vector<2x16xf32>
    %197 = vector.broadcast %179 : vector<1x16xf32> to vector<2x16xf32>
    %198 = arith.mulf %196, %197 : vector<2x16xf32>
    %199 = vector.broadcast %180 : vector<1x16xf32> to vector<2x16xf32>
    %200 = arith.addf %198, %199 : vector<2x16xf32>
    %c64_72 = arith.constant 64 : index
    %c16_73 = arith.constant 16 : index
    %201 = vector.load %arg1[%c64_72, %c16_73] : memref<104x128xf32, #tpu.memory_space<vmem>>, vector<16x16xf32>
    %cst_74 = arith.constant dense<0.000000e+00> : vector<2x16xf32>
    %202 = tpu.matmul %200, %201, %cst_74 {dimension_numbers = #tpu.dot_dimension_numbers<[1], [0], [0], [1], [0, 0, 1, 1], [], []>} : vector<2x16xf32>, vector<16x16xf32>, vector<2x16xf32> -> vector<2x16xf32>
    %c97_75 = arith.constant 97 : index
    %c48_76 = arith.constant 48 : index
    %203 = vector.load %arg1[%c97_75, %c48_76] : memref<104x128xf32, #tpu.memory_space<vmem>>, vector<1x16xf32>
    %204 = vector.broadcast %203 : vector<1x16xf32> to vector<2x16xf32>
    %205 = arith.addf %202, %204 : vector<2x16xf32>
    %c97_77 = arith.constant 97 : index
    %c64_78 = arith.constant 64 : index
    %206 = vector.load %arg1[%c97_77, %c64_78] : memref<104x128xf32, #tpu.memory_space<vmem>>, vector<1x16xf32>
    %c97_79 = arith.constant 97 : index
    %c80_80 = arith.constant 80 : index
    %207 = vector.load %arg1[%c97_79, %c80_80] : memref<104x128xf32, #tpu.memory_space<vmem>>, vector<1x16xf32>
    %cst_81 = arith.constant dense<0.000000e+00> : vector<2xf32>
    %208 = vector.multi_reduction <add>, %205, %cst_81 [1] : vector<2x16xf32> to vector<2xf32>
    %209 = vector.shape_cast %208 : vector<2xf32> to vector<2x1xf32>
    %cst_82 = arith.constant 1.600000e+01 : f32
    %210 = vector.broadcast %cst_82 : f32 to vector<2x1xf32>
    %211 = arith.divf %209, %210 : vector<2x1xf32>
    %212 = vector.broadcast %211 : vector<2x1xf32> to vector<2x16xf32>
    %213 = arith.subf %205, %212 : vector<2x16xf32>
    %214 = arith.mulf %213, %213 : vector<2x16xf32>
    %cst_83 = arith.constant dense<0.000000e+00> : vector<2xf32>
    %215 = vector.multi_reduction <add>, %214, %cst_83 [1] : vector<2x16xf32> to vector<2xf32>
    %216 = vector.shape_cast %215 : vector<2xf32> to vector<2x1xf32>
    %cst_84 = arith.constant 1.600000e+01 : f32
    %217 = vector.broadcast %cst_84 : f32 to vector<2x1xf32>
    %218 = arith.divf %216, %217 : vector<2x1xf32>
    %cst_85 = arith.constant 9.99999974E-6 : f32
    %219 = vector.broadcast %cst_85 : f32 to vector<2x1xf32>
    %220 = arith.addf %218, %219 : vector<2x1xf32>
    %221 = math.rsqrt %220 : vector<2x1xf32>
    %222 = vector.broadcast %221 : vector<2x1xf32> to vector<2x16xf32>
    %223 = arith.mulf %213, %222 : vector<2x16xf32>
    %224 = vector.broadcast %206 : vector<1x16xf32> to vector<2x16xf32>
    %225 = arith.mulf %223, %224 : vector<2x16xf32>
    %226 = vector.broadcast %207 : vector<1x16xf32> to vector<2x16xf32>
    %227 = arith.addf %225, %226 : vector<2x16xf32>
    %c32_86 = arith.constant 32 : index
    %c0_87 = arith.constant 0 : index
    %228 = vector.load %arg1[%c32_86, %c0_87] : memref<104x128xf32, #tpu.memory_space<vmem>>, vector<16x48xf32>
    %cst_88 = arith.constant dense<0.000000e+00> : vector<2x48xf32>
    %229 = tpu.matmul %227, %228, %cst_88 {dimension_numbers = #tpu.dot_dimension_numbers<[1], [0], [0], [1], [0, 0, 1, 1], [], []>} : vector<2x16xf32>, vector<16x48xf32>, vector<2x48xf32> -> vector<2x48xf32>
    %230 = vector.extract_strided_slice %229 {offsets = [0, 0], sizes = [2, 16], strides = [1, 1]} : vector<2x48xf32> to vector<2x16xf32>
    %231 = vector.extract_strided_slice %229 {offsets = [0, 16], sizes = [2, 16], strides = [1, 1]} : vector<2x48xf32> to vector<2x16xf32>
    %232 = vector.extract_strided_slice %229 {offsets = [0, 32], sizes = [2, 16], strides = [1, 1]} : vector<2x48xf32> to vector<2x16xf32>
    %cst_89 = arith.constant dense<0xFF800000> : vector<2xf32>
    %233 = vector.multi_reduction <maximumf>, %230, %cst_89 [1] : vector<2x16xf32> to vector<2xf32>
    %234 = vector.shape_cast %233 : vector<2xf32> to vector<2x1xf32>
    %cst_90 = arith.constant dense<0x7F800000> : vector<2xf32>
    %235 = vector.multi_reduction <minimumf>, %230, %cst_90 [1] : vector<2x16xf32> to vector<2xf32>
    %236 = vector.shape_cast %235 : vector<2xf32> to vector<2x1xf32>
    %cst_91 = arith.constant dense<0xFF800000> : vector<2xf32>
    %237 = vector.multi_reduction <maximumf>, %231, %cst_91 [1] : vector<2x16xf32> to vector<2xf32>
    %238 = vector.shape_cast %237 : vector<2xf32> to vector<2x1xf32>
    %cst_92 = arith.constant dense<0x7F800000> : vector<2xf32>
    %239 = vector.multi_reduction <minimumf>, %231, %cst_92 [1] : vector<2x16xf32> to vector<2xf32>
    %240 = vector.shape_cast %239 : vector<2xf32> to vector<2x1xf32>
    %241 = arith.mulf %234, %238 : vector<2x1xf32>
    %242 = arith.mulf %234, %240 : vector<2x1xf32>
    %243 = arith.maximumf %241, %242 : vector<2x1xf32>
    %244 = arith.mulf %236, %238 : vector<2x1xf32>
    %245 = arith.mulf %236, %240 : vector<2x1xf32>
    %246 = arith.maximumf %244, %245 : vector<2x1xf32>
    %247 = arith.maximumf %243, %246 : vector<2x1xf32>
    %248 = vector.shape_cast %230 : vector<2x16xf32> to vector<2x16x1xf32>
    %249 = vector.shape_cast %231 : vector<2x16xf32> to vector<2x1x16xf32>
    %250 = vector.broadcast %248 : vector<2x16x1xf32> to vector<2x16x16xf32>
    %251 = vector.broadcast %249 : vector<2x1x16xf32> to vector<2x16x16xf32>
    %252 = arith.mulf %250, %251 : vector<2x16x16xf32>
    %253 = vector.shape_cast %247 : vector<2x1xf32> to vector<2x1x1xf32>
    %254 = vector.broadcast %253 : vector<2x1x1xf32> to vector<2x16x16xf32>
    %255 = arith.subf %252, %254 : vector<2x16x16xf32>
    %256 = math.exp %255 : vector<2x16x16xf32>
    %cst_93 = arith.constant dense<0.000000e+00> : vector<2x16xf32>
    %257 = vector.multi_reduction <add>, %256, %cst_93 [2] : vector<2x16x16xf32> to vector<2x16xf32>
    %cst_94 = arith.constant dense<0.000000e+00> : vector<2xf32>
    %258 = vector.multi_reduction <add>, %257, %cst_94 [1] : vector<2x16xf32> to vector<2xf32>
    %259 = vector.shape_cast %258 : vector<2xf32> to vector<2x1xf32>
    %260 = vector.shape_cast %232 : vector<2x16xf32> to vector<2x1x16xf32>
    %261 = vector.broadcast %260 : vector<2x1x16xf32> to vector<2x16x16xf32>
    %262 = arith.mulf %256, %261 : vector<2x16x16xf32>
    %cst_95 = arith.constant dense<0.000000e+00> : vector<2x16xf32>
    %263 = vector.multi_reduction <add>, %262, %cst_95 [2] : vector<2x16x16xf32> to vector<2x16xf32>
    %264 = tpu.reciprocal %259 : vector<2x1xf32> -> vector<2x1xf32>
    %265 = vector.broadcast %264 : vector<2x1xf32> to vector<2x16xf32>
    %266 = arith.mulf %263, %265 : vector<2x16xf32>
    %cst_96 = arith.constant 5.000000e-01 : f32
    %267 = vector.broadcast %cst_96 : f32 to vector<2x16xf32>
    %268 = arith.mulf %267, %266 : vector<2x16xf32>
    %269 = math.tanh %268 : vector<2x16xf32>
    %cst_97 = arith.constant 5.000000e-01 : f32
    %270 = vector.broadcast %cst_97 : f32 to vector<2x16xf32>
    %271 = arith.mulf %270, %269 : vector<2x16xf32>
    %cst_98 = arith.constant 5.000000e-01 : f32
    %272 = vector.broadcast %cst_98 : f32 to vector<2x16xf32>
    %273 = arith.addf %271, %272 : vector<2x16xf32>
    %c101 = arith.constant 101 : index
    %c0_99 = arith.constant 0 : index
    %274 = vector.load %arg1[%c101, %c0_99] : memref<104x128xf32, #tpu.memory_space<vmem>>, vector<1x16xf32>
    %275 = vector.broadcast %274 : vector<1x16xf32> to vector<2x16xf32>
    %276 = arith.mulf %273, %275 : vector<2x16xf32>
    %c101_100 = arith.constant 101 : index
    %c32_101 = arith.constant 32 : index
    %277 = vector.load %arg1[%c101_100, %c32_101] : memref<104x128xf32, #tpu.memory_space<vmem>>, vector<1x16xf32>
    %278 = vector.broadcast %277 : vector<1x16xf32> to vector<2x16xf32>
    %279 = arith.addf %276, %278 : vector<2x16xf32>
    %280 = arith.mulf %266, %279 : vector<2x16xf32>
    %281 = math.sin %266 : vector<2x16xf32>
    %c101_102 = arith.constant 101 : index
    %c16_103 = arith.constant 16 : index
    %282 = vector.load %arg1[%c101_102, %c16_103] : memref<104x128xf32, #tpu.memory_space<vmem>>, vector<1x16xf32>
    %283 = vector.broadcast %282 : vector<1x16xf32> to vector<2x16xf32>
    %284 = arith.mulf %281, %283 : vector<2x16xf32>
    %285 = arith.addf %280, %284 : vector<2x16xf32>
    %c80_104 = arith.constant 80 : index
    %c0_105 = arith.constant 0 : index
    %286 = vector.load %arg1[%c80_104, %c0_105] : memref<104x128xf32, #tpu.memory_space<vmem>>, vector<16x16xf32>
    %cst_106 = arith.constant dense<0.000000e+00> : vector<2x16xf32>
    %287 = tpu.matmul %285, %286, %cst_106 {dimension_numbers = #tpu.dot_dimension_numbers<[1], [0], [0], [1], [0, 0, 1, 1], [], []>} : vector<2x16xf32>, vector<16x16xf32>, vector<2x16xf32> -> vector<2x16xf32>
    %c98 = arith.constant 98 : index
    %c0_107 = arith.constant 0 : index
    %288 = vector.load %arg1[%c98, %c0_107] : memref<104x128xf32, #tpu.memory_space<vmem>>, vector<1x16xf32>
    %289 = vector.broadcast %288 : vector<1x16xf32> to vector<2x16xf32>
    %290 = arith.addf %287, %289 : vector<2x16xf32>
    %c98_108 = arith.constant 98 : index
    %c16_109 = arith.constant 16 : index
    %291 = vector.load %arg1[%c98_108, %c16_109] : memref<104x128xf32, #tpu.memory_space<vmem>>, vector<1x16xf32>
    %c98_110 = arith.constant 98 : index
    %c32_111 = arith.constant 32 : index
    %292 = vector.load %arg1[%c98_110, %c32_111] : memref<104x128xf32, #tpu.memory_space<vmem>>, vector<1x16xf32>
    %cst_112 = arith.constant dense<0.000000e+00> : vector<2xf32>
    %293 = vector.multi_reduction <add>, %290, %cst_112 [1] : vector<2x16xf32> to vector<2xf32>
    %294 = vector.shape_cast %293 : vector<2xf32> to vector<2x1xf32>
    %cst_113 = arith.constant 1.600000e+01 : f32
    %295 = vector.broadcast %cst_113 : f32 to vector<2x1xf32>
    %296 = arith.divf %294, %295 : vector<2x1xf32>
    %297 = vector.broadcast %296 : vector<2x1xf32> to vector<2x16xf32>
    %298 = arith.subf %290, %297 : vector<2x16xf32>
    %299 = arith.mulf %298, %298 : vector<2x16xf32>
    %cst_114 = arith.constant dense<0.000000e+00> : vector<2xf32>
    %300 = vector.multi_reduction <add>, %299, %cst_114 [1] : vector<2x16xf32> to vector<2xf32>
    %301 = vector.shape_cast %300 : vector<2xf32> to vector<2x1xf32>
    %cst_115 = arith.constant 1.600000e+01 : f32
    %302 = vector.broadcast %cst_115 : f32 to vector<2x1xf32>
    %303 = arith.divf %301, %302 : vector<2x1xf32>
    %cst_116 = arith.constant 9.99999974E-6 : f32
    %304 = vector.broadcast %cst_116 : f32 to vector<2x1xf32>
    %305 = arith.addf %303, %304 : vector<2x1xf32>
    %306 = math.rsqrt %305 : vector<2x1xf32>
    %307 = vector.broadcast %306 : vector<2x1xf32> to vector<2x16xf32>
    %308 = arith.mulf %298, %307 : vector<2x16xf32>
    %309 = vector.broadcast %291 : vector<1x16xf32> to vector<2x16xf32>
    %310 = arith.mulf %308, %309 : vector<2x16xf32>
    %311 = vector.broadcast %292 : vector<1x16xf32> to vector<2x16xf32>
    %312 = arith.addf %310, %311 : vector<2x16xf32>
    %c80_117 = arith.constant 80 : index
    %c16_118 = arith.constant 16 : index
    %313 = vector.load %arg1[%c80_117, %c16_118] : memref<104x128xf32, #tpu.memory_space<vmem>>, vector<16x16xf32>
    %cst_119 = arith.constant dense<0.000000e+00> : vector<2x16xf32>
    %314 = tpu.matmul %312, %313, %cst_119 {dimension_numbers = #tpu.dot_dimension_numbers<[1], [0], [0], [1], [0, 0, 1, 1], [], []>} : vector<2x16xf32>, vector<16x16xf32>, vector<2x16xf32> -> vector<2x16xf32>
    %315 = vector.extract_strided_slice %314 {offsets = [0, 0], sizes = [2, 8], strides = [1, 1]} : vector<2x16xf32> to vector<2x8xf32>
    %c98_120 = arith.constant 98 : index
    %c48_121 = arith.constant 48 : index
    %316 = vector.load %arg1[%c98_120, %c48_121] : memref<104x128xf32, #tpu.memory_space<vmem>>, vector<1x16xf32>
    %317 = vector.extract_strided_slice %316 {offsets = [0, 0], sizes = [1, 8], strides = [1, 1]} : vector<1x16xf32> to vector<1x8xf32>
    %318 = vector.broadcast %317 : vector<1x8xf32> to vector<2x8xf32>
    %319 = arith.addf %315, %318 : vector<2x8xf32>
    %c98_122 = arith.constant 98 : index
    %c64_123 = arith.constant 64 : index
    %320 = vector.load %arg1[%c98_122, %c64_123] : memref<104x128xf32, #tpu.memory_space<vmem>>, vector<1x16xf32>
    %321 = vector.extract_strided_slice %320 {offsets = [0, 0], sizes = [1, 8], strides = [1, 1]} : vector<1x16xf32> to vector<1x8xf32>
    %c98_124 = arith.constant 98 : index
    %c80_125 = arith.constant 80 : index
    %322 = vector.load %arg1[%c98_124, %c80_125] : memref<104x128xf32, #tpu.memory_space<vmem>>, vector<1x16xf32>
    %323 = vector.extract_strided_slice %322 {offsets = [0, 0], sizes = [1, 8], strides = [1, 1]} : vector<1x16xf32> to vector<1x8xf32>
    %cst_126 = arith.constant dense<0.000000e+00> : vector<2xf32>
    %324 = vector.multi_reduction <add>, %319, %cst_126 [1] : vector<2x8xf32> to vector<2xf32>
    %325 = vector.shape_cast %324 : vector<2xf32> to vector<2x1xf32>
    %cst_127 = arith.constant 8.000000e+00 : f32
    %326 = vector.broadcast %cst_127 : f32 to vector<2x1xf32>
    %327 = arith.divf %325, %326 : vector<2x1xf32>
    %328 = vector.broadcast %327 : vector<2x1xf32> to vector<2x8xf32>
    %329 = arith.subf %319, %328 : vector<2x8xf32>
    %330 = arith.mulf %329, %329 : vector<2x8xf32>
    %cst_128 = arith.constant dense<0.000000e+00> : vector<2xf32>
    %331 = vector.multi_reduction <add>, %330, %cst_128 [1] : vector<2x8xf32> to vector<2xf32>
    %332 = vector.shape_cast %331 : vector<2xf32> to vector<2x1xf32>
    %cst_129 = arith.constant 8.000000e+00 : f32
    %333 = vector.broadcast %cst_129 : f32 to vector<2x1xf32>
    %334 = arith.divf %332, %333 : vector<2x1xf32>
    %cst_130 = arith.constant 9.99999974E-6 : f32
    %335 = vector.broadcast %cst_130 : f32 to vector<2x1xf32>
    %336 = arith.addf %334, %335 : vector<2x1xf32>
    %337 = math.rsqrt %336 : vector<2x1xf32>
    %338 = vector.broadcast %337 : vector<2x1xf32> to vector<2x8xf32>
    %339 = arith.mulf %329, %338 : vector<2x8xf32>
    %340 = vector.broadcast %321 : vector<1x8xf32> to vector<2x8xf32>
    %341 = arith.mulf %339, %340 : vector<2x8xf32>
    %342 = vector.broadcast %323 : vector<1x8xf32> to vector<2x8xf32>
    %343 = arith.addf %341, %342 : vector<2x8xf32>
    %cst_131 = arith.constant 5.000000e-01 : f32
    %344 = vector.broadcast %cst_131 : f32 to vector<2x8xf32>
    %345 = arith.mulf %344, %343 : vector<2x8xf32>
    %346 = math.tanh %345 : vector<2x8xf32>
    %cst_132 = arith.constant 5.000000e-01 : f32
    %347 = vector.broadcast %cst_132 : f32 to vector<2x8xf32>
    %348 = arith.mulf %347, %346 : vector<2x8xf32>
    %cst_133 = arith.constant 5.000000e-01 : f32
    %349 = vector.broadcast %cst_133 : f32 to vector<2x8xf32>
    %350 = arith.addf %348, %349 : vector<2x8xf32>
    %c103 = arith.constant 103 : index
    %c0_134 = arith.constant 0 : index
    %351 = vector.load %arg1[%c103, %c0_134] : memref<104x128xf32, #tpu.memory_space<vmem>>, vector<1x1xf32>
    %352 = vector.shape_cast %351 : vector<1x1xf32> to vector<1x1xf32>
    %353 = vector.broadcast %352 : vector<1x1xf32> to vector<2x1xf32>
    %cst_135 = arith.constant 0.000000e+00 : f32
    %354 = vector.broadcast %cst_135 : f32 to vector<2x103xf32>
    %355 = tpu.concatenate %350, %353, %227, %354 in 1 : vector<2x8xf32>, vector<2x1xf32>, vector<2x16xf32>, vector<2x103xf32> -> vector<2x128xf32>
    %c0_136 = arith.constant 0 : index
    %c0_137 = arith.constant 0 : index
    %356 = vector.load %arg2[%c0_136, %c0_137] : memref<2x128xf32, #tpu.memory_space<vmem>>, vector<2x128xf32>
    tpu.vector_store %arg2[%c0_136, %c0_137], %355 {strides = array<i32>} : memref<2x128xf32, #tpu.memory_space<vmem>>, vector<2x128xf32>,
    return
  }
}

</mosaic_0001>

<llo_original>
// kernel: optimnet_forward.1
$region0: #{optimnet_forward.1}
  #allocation0 [shape = 'u32[]', space=smem, size = 0x4, offset = 0x4, fixed_abs, tag = 'smem constant byte address 0x4 - core index']
  #allocation1 [shape = 'u32[144,128]{1,0:T(1,128)}', space=vmem, size = 0x12000, scoped, tag = 'internal scratch']
  %s0 = inlined_call_operand.vmem [shape: f32[2,16], index: 0, kind: input, shape index: {}]
  %s1 = inlined_call_operand.hbm [shape: f32[104,128], index: 1, kind: input, shape index: {}]
  %s2 = inlined_call_operand.vmem [shape: f32[2,128], index: 2, kind: output, shape index: {}]
  %s3 = sld [smem:[#allocation0]]
  $region22: #{optimnet_forward.1} parent=0
    _
  %s5 = ssub.s32 1, %s3
  %s6 = scalar_select 0, %s5, %s3
  $region1: #{optimnet_forward.1} parent=0
    #allocation2 [shape = 'u8[53248]{0}', space=vmem, size = 0xd000, scoped, tag = 'input window, operand 1, single buffered']
    #allocation3 [shape = 's32[1]{0}', space=sflag, size = 0x4, scoped, tag = 'scoped memory for optimnet_forward.1']
    %7 = vsyncpa [#allocation3], 0
    // Predicated region
    $region2: #{optimnet_forward.1} parent=1 // pred_check
      _
    $region3: #{optimnet_forward.1} parent=1 // pred_check_branch
      %9 = sbr.rel (0) target = $region5
    $region4: #{optimnet_forward.1} parent=1 // pred_region
      _
    $region5: #{optimnet_forward.1} parent=1 // pred_fallthru
      _
    // Predicated region
    $region6: #{optimnet_forward.1} parent=1 // pred_check
      _
    $region7: #{optimnet_forward.1} parent=1 // pred_check_branch
      %11 = sbr.rel (0) target = $region9
    $region8: #{optimnet_forward.1} parent=1 // pred_region
      %s13 = ssub.s32 1664, 1664
      %14 = vsyncadd [#allocation3], %s13
      %s15 = sshll.u32 [#allocation2], 4
      %s16 = int_to_ptr.vmem [resolvable:$true] %s15
      %21 = dma.hbm_to_vmem [thread:$0]  %s1, 1664, %s16, [#allocation3], 128, 128, 8
    $region9: #{optimnet_forward.1} parent=1 // pred_fallthru
      _
    // Predicated region
    $region10: #{optimnet_forward.1} parent=1 // pred_check
      _
    $region11: #{optimnet_forward.1} parent=1 // pred_check_branch
      %23 = sbr.rel (0) target = $region13
    $region12: #{optimnet_forward.1} parent=1 // pred_region
      %24 = dma.done [#allocation3], 1664
    $region13: #{optimnet_forward.1} parent=1 // pred_fallthru
      _
    %v25 = vld [vmem:[%s0] sm:$0x3]
    %v26 = vld [vmem:[#allocation2] sm:$0xff]
    %v27 = vld [vmem:[#allocation2 + $0x8] sm:$0xff]
    %vm28 = vcmask 130048
    %v30 = vsel %vm28, %v25, 0
    %32 = vmatprep.subr.mxu0 0.0
    %33 = vmatpush1.msra.mxu0 %v26
    %34 = vmatprep.subr.mxu0 0.0
    %35 = vmatpush1.msra.mxu0 %v27
    %36 = vmatprep.subr.mxu0 0.0
    %37 = vmatpush1.msra.mxu0 0.0
    %38 = vmatprep.subr.mxu0 0.0
    %39 = vmatpush1.msra.mxu0 0.0
    %40 = vmatprep.subr.mxu0 0.0
    %41 = vmatpush1.msra.mxu0 0.0
    %42 = vmatprep.subr.mxu0 0.0
    %43 = vmatpush1.msra.mxu0 0.0
    %44 = vmatprep.subr.mxu0 0.0
    %45 = vmatpush1.msra.mxu0 0.0
    %46 = vmatprep.subr.mxu0 0.0
    %47 = vmatpush1.msra.mxu0 0.0
    %48 = vmatprep.subr.mxu0 0.0
    %49 = vmatpush1.msra.mxu0 0.0
    %50 = vmatprep.subr.mxu0 0.0
    %51 = vmatpush1.msra.mxu0 0.0
    %52 = vmatprep.subr.mxu0 0.0
    %53 = vmatpush1.msra.mxu0 0.0
    %54 = vmatprep.subr.mxu0 0.0
    %55 = vmatpush1.msra.mxu0 0.0
    %56 = vmatprep.subr.mxu0 0.0
    %57 = vmatpush1.msra.mxu0 0.0
    %58 = vmatprep.subr.mxu0 0.0
    %59 = vmatpush1.msra.mxu0 0.0
    %60 = vmatprep.subr.mxu0 0.0
    %61 = vmatpush1.msra.mxu0 0.0
    %62 = vmatprep.subr.mxu0 0.0
    %63 = vmatpush1.msra.mxu0 0.0
    %64 = vmatprep.subr.mxu0 0.0
    %65 = vmatpush1.msra.mxu0 0.0
    %66 = vmatprep.subr.mxu0 0.0
    %67 = vmatpush1.msra.mxu0 0.0
    %68 = vmatprep.subr.mxu0 0.0
    %69 = vmatpush1.msra.mxu0 0.0
    %70 = vmatprep.subr.mxu0 0.0
    %71 = vmatpush1.msra.mxu0 0.0
    %72 = vmatprep.subr.mxu0 0.0
    %73 = vmatpush1.msra.mxu0 0.0
    %74 = vmatprep.subr.mxu0 0.0
    %75 = vmatpush1.msra.mxu0 0.0
    %76 = vmatprep.subr.mxu0 0.0
    %77 = vmatpush1.msra.mxu0 0.0
    %78 = vmatprep.subr.mxu0 0.0
    %79 = vmatpush1.msra.mxu0 0.0
    %80 = vmatprep.subr.mxu0 0.0
    %81 = vmatpush1.msra.mxu0 0.0
    %82 = vmatprep.subr.mxu0 0.0
    %83 = vmatpush1.msra.mxu0 0.0
    %84 = vmatprep.subr.mxu0 0.0
    %85 = vmatpush1.msra.mxu0 0.0
    %86 = vmatprep.subr.mxu0 0.0
    %87 = vmatpush1.msra.mxu0 0.0
    %88 = vmatprep.subr.mxu0 0.0
    %89 = vmatpush1.msra.mxu0 0.0
    %90 = vmatprep.subr.mxu0 0.0
    %91 = vmatpush1.msra.mxu0 0.0
    %92 = vmatprep.subr.mxu0 0.0
    %93 = vmatpush1.msra.mxu0 0.0
    %94 = vmatprep.subr.mxu0 0.0
    %95 = vmatpush1.msra.mxu0 0.0
    %96 = vmatprep.mubr.f32.mxu0 0.0
    %97 = vmatmul.mubr.f32.gmra.mrb[0].mxu0 %v30
    %v98 = vpop.f32.mrb[0].mxu0
    %v99 = vadd.f32 0.0, %v98
    %v100 = vpop.f32.mrb[0].mxu0
    %101 = vdwg.mxu0
    %vm102 = vcmask 123904
    %v103 = vsel %vm102, %v99, -inf
    %104 = vmax.xlane.f32.xlu0 %v103
    %v105 = vpop.xlane.xlu0 %104
    %v106 = vsel %vm102, %v99, inf
    %107 = vmin.xlane.f32.xlu0 %v106
    %v108 = vpop.xlane.xlu0 %107
    %vm109 = vcmask 255104
    %v110 = vsel %vm109, %v99, -inf
    %111 = vmax.xlane.f32.xlu0 %v110
    %v112 = vpop.xlane.xlu0 %111
    %v113 = vsel %vm109, %v99, inf
    %114 = vmin.xlane.f32.xlu0 %v113
    %v115 = vpop.xlane.xlu0 %114
    %v116 = vmul.f32 %v105, %v112
    %v117 = vmul.f32 %v105, %v115
    %v118 = vmax.f32 %v116, %v117
    %v119 = vmul.f32 %v108, %v112
    %v120 = vmul.f32 %v108, %v115
    %v121 = vmax.f32 %v119, %v120
    %v122 = vmax.f32 %v118, %v121
    %v123 = vlaneseq
    %v124 = vshrl.u32 %v123, 7
    %v125 = vsub.s32 0, %v124
    %v126 = vrot.slane %v99, %v125
    %128 = vbcast.lane.b32.xlu0 %v126, 256
    %v129 = vpop.permute.xlu0 %128
    %s131 = sor.u32 256, 8
    %132 = vbcast.lane.b32.xlu0 %v126, %s131
    %v133 = vpop.permute.xlu0 %132
    %v134 = vlaneseq
    %v135 = vshrl.u32 %v134, 7
    %v136 = vsub.s32 1, %v135
    %v137 = vrot.slane %v99, %v136
    %139 = vbcast.lane.b32.xlu0 %v137, 256
    %v140 = vpop.permute.xlu0 %139
    %s142 = sor.u32 256, 8
    %143 = vbcast.lane.b32.xlu0 %v137, %s142
    %v144 = vpop.permute.xlu0 %143
    %v147 = vunpack.c.l.s4 1966171168
    %v148 = vunpack.c.0.s8 %v147
    %v149 = vlaneseq
    %v150 = vshrl.u32 %v149, 7
    %v151 = vsub.s32 %v148, %v150
    %v152 = vrot.slane %v99, %v151
    %v153 = vcombine.high %v152, %v152
    %v155 = vunpack.c.l.s4 1966171168
    %v156 = vunpack.c.0.s8 %v155
    %v157 = vlaneseq
    %v158 = vshrl.u32 %v157, 7
    %v159 = vsub.s32 %v156, %v158
    %v160 = vrot.slane %v152, %v159
    %v162 = vunpack.c.l.s4 1966171168
    %v163 = vunpack.c.0.s8 %v162
    %v164 = vlaneseq
    %v165 = vshrl.u32 %v164, 7
    %v166 = vsub.s32 %v163, %v165
    %v167 = vrot.slane %v153, %v166
    %v168 = vlaneseq
    %v169 = vshrl.u32 %v168, 7
    %v170 = vsub.s32 0, %v169
    %v171 = vrot.slane %v160, %v170
    %v172 = vlaneseq
    %v173 = vshrl.u32 %v172, 7
    %v174 = vsub.s32 0, %v173
    %v175 = vrot.slane %v167, %v174
    %v178 = vmul.f32 %v129, %v171
    %v179 = vmul.f32 %v133, %v171
    %v180 = vmul.f32 %v140, %v175
    %v181 = vmul.f32 %v144, %v175
    %v183 = vlaneseq
    %v184 = vshrl.u32 %v183, 7
    %v185 = vsub.s32 0, %v184
    %v186 = vrot.slane %v122, %v185
    %v187 = vlaneseq
    %v188 = vshrl.u32 %v187, 7
    %v189 = vsub.s32 1, %v188
    %v190 = vrot.slane %v122, %v189
    %v193 = vsub.f32 %v178, %v186
    %v194 = vsub.f32 %v179, %v186
    %v195 = vsub.f32 %v180, %v190
    %v196 = vsub.f32 %v181, %v190
    %v197 = vmul.f32 %v193, 1.442695
    %v198 = vpow.pop %v197
    %v199 = vmul.f32 %v194, 1.442695
    %v200 = vpow.pop %v199
    %v201 = vmul.f32 %v195, 1.442695
    %v202 = vpow.pop %v201
    %v203 = vmul.f32 %v196, 1.442695
    %v204 = vpow.pop %v203
    %209 = vrot.lane.b32.xlu0 %v198, 112
    %v210 = vpop.permute.xlu0 %209
    %211 = vrot.lane.b32.xlu0 %v200, 112
    %v212 = vpop.permute.xlu0 %211
    %213 = vrot.lane.b32.xlu0 %v202, 112
    %v214 = vpop.permute.xlu0 %213
    %215 = vrot.lane.b32.xlu0 %v204, 112
    %v216 = vpop.permute.xlu0 %215
    %v221 = vsel %vm28, %v210, 0.0
    %222 = vadd.xlane.f32.xlu0 %v221
    %v223 = vpop.xlane.xlu0 %222
    %v224 = vsel %vm28, %v212, 0.0
    %225 = vadd.xlane.f32.xlu0 %v224
    %v226 = vpop.xlane.xlu0 %225
    %v227 = vsel %vm28, %v214, 0.0
    %228 = vadd.xlane.f32.xlu0 %v227
    %v229 = vpop.xlane.xlu0 %228
    %v230 = vsel %vm28, %v216, 0.0
    %231 = vadd.xlane.f32.xlu0 %v230
    %v232 = vpop.xlane.xlu0 %231
    %v237 = vlaneseq
    %v238 = vand.u32 %v237, 127
    %v239 = vlaneseq
    %v240 = vshrl.u32 %v239, 7
    %v241 = vsub.s32 %v238, %v240
    %v242 = vrot.slane %v223, %v241
    %v243 = vadd.s32 %v238, 4294967288
    %v244 = vlaneseq
    %v245 = vshrl.u32 %v244, 7
    %v246 = vsub.s32 %v243, %v245
    %v247 = vrot.slane %v226, %v246
    %vm248 = vcmask 130112
    %v249 = vsel %vm248, %v247, %v242
    %v250 = vlaneseq
    %v251 = vshrl.u32 %v250, 7
    %v252 = vsub.s32 %v238, %v251
    %v253 = vrot.slane %v229, %v252
    %v254 = vlaneseq
    %v255 = vshrl.u32 %v254, 7
    %v256 = vsub.s32 %v243, %v255
    %v257 = vrot.slane %v232, %v256
    %v258 = vsel %vm248, %v257, %v253
    %vm259 = vcmask 1041409
    %v260 = vsel %vm259, %v258, %v249
    %v262 = vsel %vm102, %v260, 0.0
    %263 = vadd.xlane.f32.xlu0 %v262
    %v264 = vpop.xlane.xlu0 %263
    %265 = vrot.lane.b32.xlu0 %v171, 112
    %v266 = vpop.permute.xlu0 %265
    %267 = vrot.lane.b32.xlu0 %v175, 112
    %v268 = vpop.permute.xlu0 %267
    %v271 = vmul.f32 %v198, %v266
    %v272 = vmul.f32 %v200, %v266
    %v273 = vmul.f32 %v202, %v268
    %v274 = vmul.f32 %v204, %v268
    %279 = vrot.lane.b32.xlu0 %v271, 112
    %v280 = vpop.permute.xlu0 %279
    %281 = vrot.lane.b32.xlu0 %v272, 112
    %v282 = vpop.permute.xlu0 %281
    %283 = vrot.lane.b32.xlu0 %v273, 112
    %v284 = vpop.permute.xlu0 %283
    %285 = vrot.lane.b32.xlu0 %v274, 112
    %v286 = vpop.permute.xlu0 %285
    %v291 = vsel %vm28, %v280, 0.0
    %292 = vadd.xlane.f32.xlu0 %v291
    %v293 = vpop.xlane.xlu0 %292
    %v294 = vsel %vm28, %v282, 0.0
    %295 = vadd.xlane.f32.xlu0 %v294
    %v296 = vpop.xlane.xlu0 %295
    %v297 = vsel %vm28, %v284, 0.0
    %298 = vadd.xlane.f32.xlu0 %v297
    %v299 = vpop.xlane.xlu0 %298
    %v300 = vsel %vm28, %v286, 0.0
    %301 = vadd.xlane.f32.xlu0 %v300
    %v302 = vpop.xlane.xlu0 %301
    %v303 = vrcp.pop %v264
    %v305 = vlaneseq
    %v306 = vshrl.u32 %v305, 7
    %v307 = vsub.s32 0, %v306
    %v308 = vrot.slane %v303, %v307
    %v309 = vlaneseq
    %v310 = vshrl.u32 %v309, 7
    %v311 = vsub.s32 1, %v310
    %v312 = vrot.slane %v303, %v311
    %v315 = vmul.f32 %v293, %v308
    %v316 = vmul.f32 %v296, %v308
    %v317 = vmul.f32 %v299, %v312
    %v318 = vmul.f32 %v302, %v312
    %v319 = vmul.f32 %v315, 0.5
    %v320 = vmul.f32 %v316, 0.5
    %v321 = vmul.f32 %v317, 0.5
    %v322 = vmul.f32 %v318, 0.5
    %v323 = vtanh.pop %v319
    %v324 = vtanh.pop %v320
    %v325 = vtanh.pop %v321
    %v326 = vtanh.pop %v322
    %v327 = vmul.f32 %v323, 0.5
    %v328 = vmul.f32 %v324, 0.5
    %v329 = vmul.f32 %v325, 0.5
    %v330 = vmul.f32 %v326, 0.5
    %v331 = vadd.f32 %v327, 0.5
    %v332 = vadd.f32 %v328, 0.5
    %v333 = vadd.f32 %v329, 0.5
    %v334 = vadd.f32 %v330, 0.5
    %v335 = vld [vmem:[#allocation2 + $0x63] sm:$0x1]
    %v336 = vlaneseq
    %v337 = vshrl.u32 %v336, 7
    %v338 = vsub.s32 0, %v337
    %v339 = vrot.slane %v335, %v338
    %342 = vbcast.lane.b32.xlu0 %v339, 256
    %v343 = vpop.permute.xlu0 %342
    %s345 = sor.u32 256, 8
    %346 = vbcast.lane.b32.xlu0 %v339, %s345
    %v347 = vpop.permute.xlu0 %346
    %v350 = vmul.f32 %v331, %v343
    %v351 = vmul.f32 %v332, %v347
    %v352 = vmul.f32 %v333, %v343
    %v353 = vmul.f32 %v334, %v347
    %s355 = sor.u32 256, 32
    %356 = vbcast.lane.b32.xlu0 %v339, %s355
    %v357 = vpop.permute.xlu0 %356
    %s359 = sor.u32 256, 40
    %360 = vbcast.lane.b32.xlu0 %v339, %s359
    %v361 = vpop.permute.xlu0 %360
    %v364 = vadd.f32 %v350, %v357
    %v365 = vadd.f32 %v351, %v361
    %v366 = vadd.f32 %v352, %v357
    %v367 = vadd.f32 %v353, %v361
    %v368 = vmul.f32 %v315, %v364
    %v369 = vmul.f32 %v316, %v365
    %v370 = vmul.f32 %v317, %v366
    %v371 = vmul.f32 %v318, %v367
    %v372 = vand.u32 2147483647, %v315
    %vm373 = vcmp.le.f32.partialorder %v372, 0.7853982
    %vm374 = vcmp.lt.s32.totalorder %v315, 0
    %v375 = vand.u32 %v315, 2139095040
    %v376 = vshrl.u32 %v375, 23
    %v377 = vsub.s32 %v376, 127
    %v378 = vand.u32 2147483647, %v315
    %v379 = vand.u32 %v378, 8388607
    %v380 = vor.u32 %v379, 8388608
    %v381 = vsub.s32 0, %v380
    %v382 = vadd.s32 %v377, 1
    %vm383 = vcmp.gt.s32.totalorder %v382, 0
    %v384 = vsel %vm383, %v382, 0
    %v385 = vshrl.u32 %v384, 5
    %v386 = vand.u32 %v384, 31
    %v387 = vsub.s32 32, %v386
    %v388 = vshrl.u32 683565275, %v387
    %v389 = vshll.u32 683565275, %v386
    %v390 = vshrl.u32 2475754826, %v387
    %v391 = vor.u32 %v389, %v390
    %v392 = vshll.u32 2475754826, %v386
    %v393 = vshrl.u32 2131351028, %v387
    %v394 = vor.u32 %v392, %v393
    %v395 = vshll.u32 2131351028, %v386
    %v396 = vshrl.u32 2102212464, %v387
    %v397 = vor.u32 %v395, %v396
    %v398 = vshll.u32 2102212464, %v386
    %v399 = vshrl.u32 920167782, %v387
    %v400 = vor.u32 %v398, %v399
    %v401 = vshll.u32 920167782, %v386
    %v402 = vshrl.u32 1326507024, %v387
    %v403 = vor.u32 %v401, %v402
    %vm404 = vcmp.lt.s32.totalorder %v385, 1
    %vm405 = vcmp.lt.s32.totalorder %v385, 2
    %vm406 = vcmp.lt.s32.totalorder %v385, 3
    %vm407 = vcmp.lt.s32.totalorder %v385, 4
    %v408 = vsel %vm404, %v388, %v391
    %v409 = vsel %vm407, %v397, 2102212464
    %v410 = vsel %vm406, %v394, %v409
    %v411 = vsel %vm405, %v408, %v410
    %v412 = vsel %vm404, %v391, %v394
    %v413 = vsel %vm407, %v400, 920167782
    %v414 = vsel %vm406, %v397, %v413
    %v415 = vsel %vm405, %v412, %v414
    %v416 = vsel %vm404, %v394, %v397
    %v417 = vsel %vm407, %v403, 1326507024
    %v418 = vsel %vm406, %v400, %v417
    %v419 = vsel %vm405, %v416, %v418
    %v420 = vshll.u32 %v380, 8
    %v421 = vmul.u32.u64.compose %v420, %v419
    %v422 = vextract.low.u32 %v421
    %v423 = vextract.high.u32 %v421
    %v424 = vmul.u32.u64.compose %v420, %v415
    %v425 = vextract.low.u32 %v424
    %v426 = vextract.high.u32 %v424
    %v427 = vmul.u32 %v420, %v411
    %v428 = vadd.s32 %v423, %v425
    %vm429 = vc.u32 %v423, %v425
    %v430 = vadd.s32 %v426, 1
    %v431 = vsel %vm429, %v430, %v426
    %v432 = vadd.s32 %v427, %v431
    %v433 = vadd.s32 %v432, 536870912
    %v434 = vshrl.u32 %v433, 30
    %v435 = vshll.u32 %v434, 30
    %v436 = vsub.s32 %v432, %v435
    %vm437 = vcmp.lt.s32.totalorder %v436, 0
    %v438 = vsub.s32 0, %v436
    %v439 = vsel %vm437, %v438, %v436
    %v440 = vclz %v439
    %v441 = vsub.s32 %v440, 2
    %vm442 = vcmp.gt.s32.totalorder 0, %v441
    %v443 = vsel %vm442, 0, %v441
    %v444 = vsub.s32 32, %v443
    %v445 = vshll.u32 %v436, %v443
    %v446 = vshrl.u32 %v428, %v444
    %v447 = vor.u32 %v445, %v446
    %v448 = vsub.s32 4294967266, %v443
    %v449 = vadd.s32 %v448, 127
    %v450 = vshll.u32 %v449, 23
    %v451 = vor.u32 4788187, %v450
    %v452 = vand.u32 2147483647, %v451
    %v454 = vcvt.s32.f32 %v447
    %v455 = vmul.f32 %v454, %v452
    %v456 = vxor.u32 %v455, 2147483648
    %v457 = vsel %vm374, %v456, %v455
    %v458 = vsub.s32 4, %v434
    %v459 = vsel %vm374, %v458, %v434
    %v460 = vsel %vm373, %v315, %v457
    %v461 = vsel %vm373, 0, %v459
    %v462 = vcosq.f32.pop %v460
    %v463 = vsinq.f32.pop %v460
    %vm464 = vweird.f32 %v315
    %v465 = vadd.s32 %v461, 3
    %v466 = vand.u32 %v465, 3
    %vm467 = vcmp.lt.s32.totalorder %v466, 2
    %vm468 = vcmp.eq.s32.totalorder %v466, 0
    %v469 = vxor.u32 %v463, 2147483648
    %v470 = vsel %vm468, %v462, %v469
    %vm471 = vcmp.eq.s32.totalorder %v466, 2
    %v472 = vxor.u32 %v462, 2147483648
    %v473 = vsel %vm471, %v472, %v463
    %v474 = vsel %vm467, %v470, %v473
    %v475 = vsel %vm464, nan, %v474
    %v476 = vand.u32 2147483647, %v316
    %vm477 = vcmp.le.f32.partialorder %v476, 0.7853982
    %vm478 = vcmp.lt.s32.totalorder %v316, 0
    %v479 = vand.u32 %v316, 2139095040
    %v480 = vshrl.u32 %v479, 23
    %v481 = vsub.s32 %v480, 127
    %v482 = vand.u32 2147483647, %v316
    %v483 = vand.u32 %v482, 8388607
    %v484 = vor.u32 %v483, 8388608
    %v485 = vsub.s32 0, %v484
    %v486 = vadd.s32 %v481, 1
    %vm487 = vcmp.gt.s32.totalorder %v486, 0
    %v488 = vsel %vm487, %v486, 0
    %v489 = vshrl.u32 %v488, 5
    %v490 = vand.u32 %v488, 31
    %v491 = vsub.s32 32, %v490
    %v492 = vshrl.u32 683565275, %v491
    %v493 = vshll.u32 683565275, %v490
    %v494 = vshrl.u32 2475754826, %v491
    %v495 = vor.u32 %v493, %v494
    %v496 = vshll.u32 2475754826, %v490
    %v497 = vshrl.u32 2131351028, %v491
    %v498 = vor.u32 %v496, %v497
    %v499 = vshll.u32 2131351028, %v490
    %v500 = vshrl.u32 2102212464, %v491
    %v501 = vor.u32 %v499, %v500
    %v502 = vshll.u32 2102212464, %v490
    %v503 = vshrl.u32 920167782, %v491
    %v504 = vor.u32 %v502, %v503
    %v505 = vshll.u32 920167782, %v490
    %v506 = vshrl.u32 1326507024, %v491
    %v507 = vor.u32 %v505, %v506
    %vm508 = vcmp.lt.s32.totalorder %v489, 1
    %vm509 = vcmp.lt.s32.totalorder %v489, 2
    %vm510 = vcmp.lt.s32.totalorder %v489, 3
    %vm511 = vcmp.lt.s32.totalorder %v489, 4
    %v512 = vsel %vm508, %v492, %v495
    %v513 = vsel %vm511, %v501, 2102212464
    %v514 = vsel %vm510, %v498, %v513
    %v515 = vsel %vm509, %v512, %v514
    %v516 = vsel %vm508, %v495, %v498
    %v517 = vsel %vm511, %v504, 920167782
    %v518 = vsel %vm510, %v501, %v517
    %v519 = vsel %vm509, %v516, %v518
    %v520 = vsel %vm508, %v498, %v501
    %v521 = vsel %vm511, %v507, 1326507024
    %v522 = vsel %vm510, %v504, %v521
    %v523 = vsel %vm509, %v520, %v522
    %v524 = vshll.u32 %v484, 8
    %v525 = vmul.u32.u64.compose %v524, %v523
    %v526 = vextract.low.u32 %v525
    %v527 = vextract.high.u32 %v525
    %v528 = vmul.u32.u64.compose %v524, %v519
    %v529 = vextract.low.u32 %v528
    %v530 = vextract.high.u32 %v528
    %v531 = vmul.u32 %v524, %v515
    %v532 = vadd.s32 %v527, %v529
    %vm533 = vc.u32 %v527, %v529
    %v534 = vadd.s32 %v530, 1
    %v535 = vsel %vm533, %v534, %v530
    %v536 = vadd.s32 %v531, %v535
    %v537 = vadd.s32 %v536, 536870912
    %v538 = vshrl.u32 %v537, 30
    %v539 = vshll.u32 %v538, 30
    %v540 = vsub.s32 %v536, %v539
    %vm541 = vcmp.lt.s32.totalorder %v540, 0
    %v542 = vsub.s32 0, %v540
    %v543 = vsel %vm541, %v542, %v540
    %v544 = vclz %v543
    %v545 = vsub.s32 %v544, 2
    %vm546 = vcmp.gt.s32.totalorder 0, %v545
    %v547 = vsel %vm546, 0, %v545
    %v548 = vsub.s32 32, %v547
    %v549 = vshll.u32 %v540, %v547
    %v550 = vshrl.u32 %v532, %v548
    %v551 = vor.u32 %v549, %v550
    %v552 = vsub.s32 4294967266, %v547
    %v553 = vadd.s32 %v552, 127
    %v554 = vshll.u32 %v553, 23
    %v555 = vor.u32 4788187, %v554
    %v556 = vand.u32 2147483647, %v555
    %v558 = vcvt.s32.f32 %v551
    %v559 = vmul.f32 %v558, %v556
    %v560 = vxor.u32 %v559, 2147483648
    %v561 = vsel %vm478, %v560, %v559
    %v562 = vsub.s32 4, %v538
    %v563 = vsel %vm478, %v562, %v538
    %v564 = vsel %vm477, %v316, %v561
    %v565 = vsel %vm477, 0, %v563
    %v566 = vcosq.f32.pop %v564
    %v567 = vsinq.f32.pop %v564
    %vm568 = vweird.f32 %v316
    %v569 = vadd.s32 %v565, 3
    %v570 = vand.u32 %v569, 3
    %vm571 = vcmp.lt.s32.totalorder %v570, 2
    %vm572 = vcmp.eq.s32.totalorder %v570, 0
    %v573 = vxor.u32 %v567, 2147483648
    %v574 = vsel %vm572, %v566, %v573
    %vm575 = vcmp.eq.s32.totalorder %v570, 2
    %v576 = vxor.u32 %v566, 2147483648
    %v577 = vsel %vm575, %v576, %v567
    %v578 = vsel %vm571, %v574, %v577
    %v579 = vsel %vm568, nan, %v578
    %v580 = vand.u32 2147483647, %v317
    %vm581 = vcmp.le.f32.partialorder %v580, 0.7853982
    %vm582 = vcmp.lt.s32.totalorder %v317, 0
    %v583 = vand.u32 %v317, 2139095040
    %v584 = vshrl.u32 %v583, 23
    %v585 = vsub.s32 %v584, 127
    %v586 = vand.u32 2147483647, %v317
    %v587 = vand.u32 %v586, 8388607
    %v588 = vor.u32 %v587, 8388608
    %v589 = vsub.s32 0, %v588
    %v590 = vadd.s32 %v585, 1
    %vm591 = vcmp.gt.s32.totalorder %v590, 0
    %v592 = vsel %vm591, %v590, 0
    %v593 = vshrl.u32 %v592, 5
    %v594 = vand.u32 %v592, 31
    %v595 = vsub.s32 32, %v594
    %v596 = vshrl.u32 683565275, %v595
    %v597 = vshll.u32 683565275, %v594
    %v598 = vshrl.u32 2475754826, %v595
    %v599 = vor.u32 %v597, %v598
    %v600 = vshll.u32 2475754826, %v594
    %v601 = vshrl.u32 2131351028, %v595
    %v602 = vor.u32 %v600, %v601
    %v603 = vshll.u32 2131351028, %v594
    %v604 = vshrl.u32 2102212464, %v595
    %v605 = vor.u32 %v603, %v604
    %v606 = vshll.u32 2102212464, %v594
    %v607 = vshrl.u32 920167782, %v595
    %v608 = vor.u32 %v606, %v607
    %v609 = vshll.u32 920167782, %v594
    %v610 = vshrl.u32 1326507024, %v595
    %v611 = vor.u32 %v609, %v610
    %vm612 = vcmp.lt.s32.totalorder %v593, 1
    %vm613 = vcmp.lt.s32.totalorder %v593, 2
    %vm614 = vcmp.lt.s32.totalorder %v593, 3
    %vm615 = vcmp.lt.s32.totalorder %v593, 4
    %v616 = vsel %vm612, %v596, %v599
    %v617 = vsel %vm615, %v605, 2102212464
    %v618 = vsel %vm614, %v602, %v617
    %v619 = vsel %vm613, %v616, %v618
    %v620 = vsel %vm612, %v599, %v602
    %v621 = vsel %vm615, %v608, 920167782
    %v622 = vsel %vm614, %v605, %v621
    %v623 = vsel %vm613, %v620, %v622
    %v624 = vsel %vm612, %v602, %v605
    %v625 = vsel %vm615, %v611, 1326507024
    %v626 = vsel %vm614, %v608, %v625
    %v627 = vsel %vm613, %v624, %v626
    %v628 = vshll.u32 %v588, 8
    %v629 = vmul.u32.u64.compose %v628, %v627
    %v630 = vextract.low.u32 %v629
    %v631 = vextract.high.u32 %v629
    %v632 = vmul.u32.u64.compose %v628, %v623
    %v633 = vextract.low.u32 %v632
    %v634 = vextract.high.u32 %v632
    %v635 = vmul.u32 %v628, %v619
    %v636 = vadd.s32 %v631, %v633
    %vm637 = vc.u32 %v631, %v633
    %v638 = vadd.s32 %v634, 1
    %v639 = vsel %vm637, %v638, %v634
    %v640 = vadd.s32 %v635, %v639
    %v641 = vadd.s32 %v640, 536870912
    %v642 = vshrl.u32 %v641, 30
    %v643 = vshll.u32 %v642, 30
    %v644 = vsub.s32 %v640, %v643
    %vm645 = vcmp.lt.s32.totalorder %v644, 0
    %v646 = vsub.s32 0, %v644
    %v647 = vsel %vm645, %v646, %v644
    %v648 = vclz %v647
    %v649 = vsub.s32 %v648, 2
    %vm650 = vcmp.gt.s32.totalorder 0, %v649
    %v651 = vsel %vm650, 0, %v649
    %v652 = vsub.s32 32, %v651
    %v653 = vshll.u32 %v644, %v651
    %v654 = vshrl.u32 %v636, %v652
    %v655 = vor.u32 %v653, %v654
    %v656 = vsub.s32 4294967266, %v651
    %v657 = vadd.s32 %v656, 127
    %v658 = vshll.u32 %v657, 23
    %v659 = vor.u32 4788187, %v658
    %v660 = vand.u32 2147483647, %v659
    %v662 = vcvt.s32.f32 %v655
    %v663 = vmul.f32 %v662, %v660
    %v664 = vxor.u32 %v663, 2147483648
    %v665 = vsel %vm582, %v664, %v663
    %v666 = vsub.s32 4, %v642
    %v667 = vsel %vm582, %v666, %v642
    %v668 = vsel %vm581, %v317, %v665
    %v669 = vsel %vm581, 0, %v667
    %v670 = vcosq.f32.pop %v668
    %v671 = vsinq.f32.pop %v668
    %vm672 = vweird.f32 %v317
    %v673 = vadd.s32 %v669, 3
    %v674 = vand.u32 %v673, 3
    %vm675 = vcmp.lt.s32.totalorder %v674, 2
    %vm676 = vcmp.eq.s32.totalorder %v674, 0
    %v677 = vxor.u32 %v671, 2147483648
    %v678 = vsel %vm676, %v670, %v677
    %vm679 = vcmp.eq.s32.totalorder %v674, 2
    %v680 = vxor.u32 %v670, 2147483648
    %v681 = vsel %vm679, %v680, %v671
    %v682 = vsel %vm675, %v678, %v681
    %v683 = vsel %vm672, nan, %v682
    %v684 = vand.u32 2147483647, %v318
    %vm685 = vcmp.le.f32.partialorder %v684, 0.7853982
    %vm686 = vcmp.lt.s32.totalorder %v318, 0
    %v687 = vand.u32 %v318, 2139095040
    %v688 = vshrl.u32 %v687, 23
    %v689 = vsub.s32 %v688, 127
    %v690 = vand.u32 2147483647, %v318
    %v691 = vand.u32 %v690, 8388607
    %v692 = vor.u32 %v691, 8388608
    %v693 = vsub.s32 0, %v692
    %v694 = vadd.s32 %v689, 1
    %vm695 = vcmp.gt.s32.totalorder %v694, 0
    %v696 = vsel %vm695, %v694, 0
    %v697 = vshrl.u32 %v696, 5
    %v698 = vand.u32 %v696, 31
    %v699 = vsub.s32 32, %v698
    %v700 = vshrl.u32 683565275, %v699
    %v701 = vshll.u32 683565275, %v698
    %v702 = vshrl.u32 2475754826, %v699
    %v703 = vor.u32 %v701, %v702
    %v704 = vshll.u32 2475754826, %v698
    %v705 = vshrl.u32 2131351028, %v699
    %v706 = vor.u32 %v704, %v705
    %v707 = vshll.u32 2131351028, %v698
    %v708 = vshrl.u32 2102212464, %v699
    %v709 = vor.u32 %v707, %v708
    %v710 = vshll.u32 2102212464, %v698
    %v711 = vshrl.u32 920167782, %v699
    %v712 = vor.u32 %v710, %v711
    %v713 = vshll.u32 920167782, %v698
    %v714 = vshrl.u32 1326507024, %v699
    %v715 = vor.u32 %v713, %v714
    %vm716 = vcmp.lt.s32.totalorder %v697, 1
    %vm717 = vcmp.lt.s32.totalorder %v697, 2
    %vm718 = vcmp.lt.s32.totalorder %v697, 3
    %vm719 = vcmp.lt.s32.totalorder %v697, 4
    %v720 = vsel %vm716, %v700, %v703
    %v721 = vsel %vm719, %v709, 2102212464
    %v722 = vsel %vm718, %v706, %v721
    %v723 = vsel %vm717, %v720, %v722
    %v724 = vsel %vm716, %v703, %v706
    %v725 = vsel %vm719, %v712, 920167782
    %v726 = vsel %vm718, %v709, %v725
    %v727 = vsel %vm717, %v724, %v726
    %v728 = vsel %vm716, %v706, %v709
    %v729 = vsel %vm719, %v715, 1326507024
    %v730 = vsel %vm718, %v712, %v729
    %v731 = vsel %vm717, %v728, %v730
    %v732 = vshll.u32 %v692, 8
    %v733 = vmul.u32.u64.compose %v732, %v731
    %v734 = vextract.low.u32 %v733
    %v735 = vextract.high.u32 %v733
    %v736 = vmul.u32.u64.compose %v732, %v727
    %v737 = vextract.low.u32 %v736
    %v738 = vextract.high.u32 %v736
    %v739 = vmul.u32 %v732, %v723
    %v740 = vadd.s32 %v735, %v737
    %vm741 = vc.u32 %v735, %v737
    %v742 = vadd.s32 %v738, 1
    %v743 = vsel %vm741, %v742, %v738
    %v744 = vadd.s32 %v739, %v743
    %v745 = vadd.s32 %v744, 536870912
    %v746 = vshrl.u32 %v745, 30
    %v747 = vshll.u32 %v746, 30
    %v748 = vsub.s32 %v744, %v747
    %vm749 = vcmp.lt.s32.totalorder %v748, 0
    %v750 = vsub.s32 0, %v748
    %v751 = vsel %vm749, %v750, %v748
    %v752 = vclz %v751
    %v753 = vsub.s32 %v752, 2
    %vm754 = vcmp.gt.s32.totalorder 0, %v753
    %v755 = vsel %vm754, 0, %v753
    %v756 = vsub.s32 32, %v755
    %v757 = vshll.u32 %v748, %v755
    %v758 = vshrl.u32 %v740, %v756
    %v759 = vor.u32 %v757, %v758
    %v760 = vsub.s32 4294967266, %v755
    %v761 = vadd.s32 %v760, 127
    %v762 = vshll.u32 %v761, 23
    %v763 = vor.u32 4788187, %v762
    %v764 = vand.u32 2147483647, %v763
    %v766 = vcvt.s32.f32 %v759
    %v767 = vmul.f32 %v766, %v764
    %v768 = vxor.u32 %v767, 2147483648
    %v769 = vsel %vm686, %v768, %v767
    %v770 = vsub.s32 4, %v746
    %v771 = vsel %vm686, %v770, %v746
    %v772 = vsel %vm685, %v318, %v769
    %v773 = vsel %vm685, 0, %v771
    %v774 = vcosq.f32.pop %v772
    %v775 = vsinq.f32.pop %v772
    %vm776 = vweird.f32 %v318
    %v777 = vadd.s32 %v773, 3
    %v778 = vand.u32 %v777, 3
    %vm779 = vcmp.lt.s32.totalorder %v778, 2
    %vm780 = vcmp.eq.s32.totalorder %v778, 0
    %v781 = vxor.u32 %v775, 2147483648
    %v782 = vsel %vm780, %v774, %v781
    %vm783 = vcmp.eq.s32.totalorder %v778, 2
    %v784 = vxor.u32 %v774, 2147483648
    %v785 = vsel %vm783, %v784, %v775
    %v786 = vsel %vm779, %v782, %v785
    %v787 = vsel %vm776, nan, %v786
    %s789 = sor.u32 256, 16
    %790 = vbcast.lane.b32.xlu0 %v339, %s789
    %v791 = vpop.permute.xlu0 %790
    %s793 = sor.u32 256, 24
    %794 = vbcast.lane.b32.xlu0 %v339, %s793
    %v795 = vpop.permute.xlu0 %794
    %v798 = vmul.f32 %v475, %v791
    %v799 = vmul.f32 %v579, %v795
    %v800 = vmul.f32 %v683, %v791
    %v801 = vmul.f32 %v787, %v795
    %v802 = vadd.f32 %v368, %v798
    %v803 = vadd.f32 %v369, %v799
    %v804 = vadd.f32 %v370, %v800
    %v805 = vadd.f32 %v371, %v801
    %v806 = vld [vmem:[#allocation2 + $0x30] sm:$0xff]
    %v807 = vld [vmem:[#allocation2 + $0x38] sm:$0xff]
    %v808 = vld [vmem:[#allocation2 + $0x60] sm:$0x1]
    %v809 = vlaneseq
    %v810 = vshrl.u32 %v809, 7
    %v811 = vsub.s32 0, %v810
    %v812 = vrot.slane %v808, %v811
    %817 = vset.pattern.permute.xlu0 0
    %818 = vperm.xlu0 %817, %v802
    %v819 = vpop.permute.xlu0 %818
    %820 = vset.pattern.permute.xlu0 0
    %821 = vperm.xlu0 %820, %v803
    %v822 = vpop.permute.xlu0 %821
    %823 = vset.pattern.permute.xlu0 0
    %824 = vperm.xlu0 %823, %v804
    %v825 = vpop.permute.xlu0 %824
    %826 = vset.pattern.permute.xlu0 0
    %827 = vperm.xlu0 %826, %v805
    %v828 = vpop.permute.xlu0 %827
    %v829 = vlaneseq
    %v830 = vshrl.u32 %v829, 7
    %v831 = vsub.s32 %v238, %v830
    %v832 = vrot.slane %v819, %v831
    %v833 = vlaneseq
    %v834 = vshrl.u32 %v833, 7
    %v835 = vsub.s32 %v243, %v834
    %v836 = vrot.slane %v822, %v835
    %v837 = vsel %vm248, %v836, %v832
    %v838 = vlaneseq
    %v839 = vshrl.u32 %v838, 7
    %v840 = vsub.s32 %v238, %v839
    %v841 = vrot.slane %v825, %v840
    %v842 = vlaneseq
    %v843 = vshrl.u32 %v842, 7
    %v844 = vsub.s32 %v243, %v843
    %v845 = vrot.slane %v828, %v844
    %v846 = vsel %vm248, %v845, %v841
    %v847 = vsel %vm259, %v846, %v837
    %v848 = vsel %vm28, %v847, 0
    %850 = vmatprep.subr.mxu0 0.0
    %851 = vmatpush1.msra.mxu0 %v806
    %852 = vmatprep.subr.mxu0 0.0
    %853 = vmatpush1.msra.mxu0 %v807
    %854 = vmatprep.subr.mxu0 0.0
    %855 = vmatpush1.msra.mxu0 0.0
    %856 = vmatprep.subr.mxu0 0.0
    %857 = vmatpush1.msra.mxu0 0.0
    %858 = vmatprep.subr.mxu0 0.0
    %859 = vmatpush1.msra.mxu0 0.0
    %860 = vmatprep.subr.mxu0 0.0
    %861 = vmatpush1.msra.mxu0 0.0
    %862 = vmatprep.subr.mxu0 0.0
    %863 = vmatpush1.msra.mxu0 0.0
    %864 = vmatprep.subr.mxu0 0.0
    %865 = vmatpush1.msra.mxu0 0.0
    %866 = vmatprep.subr.mxu0 0.0
    %867 = vmatpush1.msra.mxu0 0.0
    %868 = vmatprep.subr.mxu0 0.0
    %869 = vmatpush1.msra.mxu0 0.0
    %870 = vmatprep.subr.mxu0 0.0
    %871 = vmatpush1.msra.mxu0 0.0
    %872 = vmatprep.subr.mxu0 0.0
    %873 = vmatpush1.msra.mxu0 0.0
    %874 = vmatprep.subr.mxu0 0.0
    %875 = vmatpush1.msra.mxu0 0.0
    %876 = vmatprep.subr.mxu0 0.0
    %877 = vmatpush1.msra.mxu0 0.0
    %878 = vmatprep.subr.mxu0 0.0
    %879 = vmatpush1.msra.mxu0 0.0
    %880 = vmatprep.subr.mxu0 0.0
    %881 = vmatpush1.msra.mxu0 0.0
    %882 = vmatprep.subr.mxu0 0.0
    %883 = vmatpush1.msra.mxu0 0.0
    %884 = vmatprep.subr.mxu0 0.0
    %885 = vmatpush1.msra.mxu0 0.0
    %886 = vmatprep.subr.mxu0 0.0
    %887 = vmatpush1.msra.mxu0 0.0
    %888 = vmatprep.subr.mxu0 0.0
    %889 = vmatpush1.msra.mxu0 0.0
    %890 = vmatprep.subr.mxu0 0.0
    %891 = vmatpush1.msra.mxu0 0.0
    %892 = vmatprep.subr.mxu0 0.0
    %893 = vmatpush1.msra.mxu0 0.0
    %894 = vmatprep.subr.mxu0 0.0
    %895 = vmatpush1.msra.mxu0 0.0
    %896 = vmatprep.subr.mxu0 0.0
    %897 = vmatpush1.msra.mxu0 0.0
    %898 = vmatprep.subr.mxu0 0.0
    %899 = vmatpush1.msra.mxu0 0.0
    %900 = vmatprep.subr.mxu0 0.0
    %901 = vmatpush1.msra.mxu0 0.0
    %902 = vmatprep.subr.mxu0 0.0
    %903 = vmatpush1.msra.mxu0 0.0
    %904 = vmatprep.subr.mxu0 0.0
    %905 = vmatpush1.msra.mxu0 0.0
    %906 = vmatprep.subr.mxu0 0.0
    %907 = vmatpush1.msra.mxu0 0.0
    %908 = vmatprep.subr.mxu0 0.0
    %909 = vmatpush1.msra.mxu0 0.0
    %910 = vmatprep.subr.mxu0 0.0
    %911 = vmatpush1.msra.mxu0 0.0
    %912 = vmatprep.subr.mxu0 0.0
    %913 = vmatpush1.msra.mxu0 0.0
    %914 = vmatprep.mubr.f32.mxu0 0.0
    %915 = vmatmul.mubr.f32.gmra.mrb[0].mxu0 %v848
    %v916 = vpop.f32.mrb[0].mxu0
    %v917 = vadd.f32 %v812, %v916
    %v918 = vpop.f32.mrb[0].mxu0
    %919 = vdwg.mxu0
    %v920 = vsel %vm102, %v917, 0.0
    %921 = vadd.xlane.f32.xlu0 %v920
    %v922 = vpop.xlane.xlu0 %921
    %v923 = vrcp.pop 16.0
    %v924 = vmul.f32 %v922, %v923
    %v925 = vsub.f32 %v917, %v924
    %v926 = vmul.f32 %v925, %v925
    %v927 = vsel %vm102, %v926, 0.0
    %928 = vadd.xlane.f32.xlu0 %v927
    %v929 = vpop.xlane.xlu0 %928
    %v930 = vmul.f32 %v929, %v923
    %v931 = vadd.f32 %v930, 1e-05
    %v932 = vrsqrt.pop %v931
    %v933 = vmul.f32 %v925, %v932
    %935 = vrot.lane.b32.xlu0 %v812, 112
    %v936 = vpop.permute.xlu0 %935
    %v938 = vmul.f32 %v933, %v936
    %939 = vrot.lane.b32.xlu0 %v812, 96
    %v940 = vpop.permute.xlu0 %939
    %v942 = vadd.f32 %v938, %v940
    %945 = vrot.lane.b32.xlu0 %v806, 112
    %v946 = vpop.permute.xlu0 %945
    %947 = vrot.lane.b32.xlu0 %v807, 112
    %v948 = vpop.permute.xlu0 %947
    %951 = vrot.lane.b32.xlu0 %v812, 80
    %v952 = vpop.permute.xlu0 %951
    %v955 = vsel %vm28, %v942, 0
    %957 = vmatprep.subr.mxu0 0.0
    %958 = vmatpush1.msra.mxu0 %v946
    %959 = vmatprep.subr.mxu0 0.0
    %960 = vmatpush1.msra.mxu0 %v948
    %961 = vmatprep.subr.mxu0 0.0
    %962 = vmatpush1.msra.mxu0 0.0
    %963 = vmatprep.subr.mxu0 0.0
    %964 = vmatpush1.msra.mxu0 0.0
    %965 = vmatprep.subr.mxu0 0.0
    %966 = vmatpush1.msra.mxu0 0.0
    %967 = vmatprep.subr.mxu0 0.0
    %968 = vmatpush1.msra.mxu0 0.0
    %969 = vmatprep.subr.mxu0 0.0
    %970 = vmatpush1.msra.mxu0 0.0
    %971 = vmatprep.subr.mxu0 0.0
    %972 = vmatpush1.msra.mxu0 0.0
    %973 = vmatprep.subr.mxu0 0.0
    %974 = vmatpush1.msra.mxu0 0.0
    %975 = vmatprep.subr.mxu0 0.0
    %976 = vmatpush1.msra.mxu0 0.0
    %977 = vmatprep.subr.mxu0 0.0
    %978 = vmatpush1.msra.mxu0 0.0
    %979 = vmatprep.subr.mxu0 0.0
    %980 = vmatpush1.msra.mxu0 0.0
    %981 = vmatprep.subr.mxu0 0.0
    %982 = vmatpush1.msra.mxu0 0.0
    %983 = vmatprep.subr.mxu0 0.0
    %984 = vmatpush1.msra.mxu0 0.0
    %985 = vmatprep.subr.mxu0 0.0
    %986 = vmatpush1.msra.mxu0 0.0
    %987 = vmatprep.subr.mxu0 0.0
    %988 = vmatpush1.msra.mxu0 0.0
    %989 = vmatprep.subr.mxu0 0.0
    %990 = vmatpush1.msra.mxu0 0.0
    %991 = vmatprep.subr.mxu0 0.0
    %992 = vmatpush1.msra.mxu0 0.0
    %993 = vmatprep.subr.mxu0 0.0
    %994 = vmatpush1.msra.mxu0 0.0
    %995 = vmatprep.subr.mxu0 0.0
    %996 = vmatpush1.msra.mxu0 0.0
    %997 = vmatprep.subr.mxu0 0.0
    %998 = vmatpush1.msra.mxu0 0.0
    %999 = vmatprep.subr.mxu0 0.0
    %1000 = vmatpush1.msra.mxu0 0.0
    %1001 = vmatprep.subr.mxu0 0.0
    %1002 = vmatpush1.msra.mxu0 0.0
    %1003 = vmatprep.subr.mxu0 0.0
    %1004 = vmatpush1.msra.mxu0 0.0
    %1005 = vmatprep.subr.mxu0 0.0
    %1006 = vmatpush1.msra.mxu0 0.0
    %1007 = vmatprep.subr.mxu0 0.0
    %1008 = vmatpush1.msra.mxu0 0.0
    %1009 = vmatprep.subr.mxu0 0.0
    %1010 = vmatpush1.msra.mxu0 0.0
    %1011 = vmatprep.subr.mxu0 0.0
    %1012 = vmatpush1.msra.mxu0 0.0
    %1013 = vmatprep.subr.mxu0 0.0
    %1014 = vmatpush1.msra.mxu0 0.0
    %1015 = vmatprep.subr.mxu0 0.0
    %1016 = vmatpush1.msra.mxu0 0.0
    %1017 = vmatprep.subr.mxu0 0.0
    %1018 = vmatpush1.msra.mxu0 0.0
    %1019 = vmatprep.subr.mxu0 0.0
    %1020 = vmatpush1.msra.mxu0 0.0
    %1021 = vmatprep.mubr.f32.mxu0 0.0
    %1022 = vmatmul.mubr.f32.gmra.mrb[0].mxu0 %v955
    %v1023 = vpop.f32.mrb[0].mxu0
    %v1024 = vadd.f32 %v952, %v1023
    %v1025 = vpop.f32.mrb[0].mxu0
    %1026 = vdwg.mxu0
    %v1027 = vsel %vm102, %v1024, 0.0
    %1028 = vadd.xlane.f32.xlu0 %v1027
    %v1029 = vpop.xlane.xlu0 %1028
    %v1030 = vmul.f32 %v1029, %v923
    %v1031 = vsub.f32 %v1024, %v1030
    %v1032 = vmul.f32 %v1031, %v1031
    %v1033 = vsel %vm102, %v1032, 0.0
    %1034 = vadd.xlane.f32.xlu0 %v1033
    %v1035 = vpop.xlane.xlu0 %1034
    %v1036 = vmul.f32 %v1035, %v923
    %v1037 = vadd.f32 %v1036, 1e-05
    %v1038 = vrsqrt.pop %v1037
    %v1039 = vmul.f32 %v1031, %v1038
    %1040 = vrot.lane.b32.xlu0 %v812, 64
    %v1041 = vpop.permute.xlu0 %1040
    %v1043 = vmul.f32 %v1039, %v1041
    %1044 = vrot.lane.b32.xlu0 %v812, 48
    %v1045 = vpop.permute.xlu0 %1044
    %v1047 = vadd.f32 %v1043, %v1045
    %v1048 = vld [vmem:[#allocation2 + $0x66] sm:$0x1]
    %v1049 = vlaneseq
    %v1050 = vshrl.u32 %v1049, 7
    %v1051 = vsub.s32 0, %v1050
    %v1052 = vrot.slane %v1048, %v1051
    %v1053 = vadd.f32 %v1047, %v1052
    %v1054 = vld [vmem:[#allocation2 + $0x10] sm:$0xff]
    %v1055 = vld [vmem:[#allocation2 + $0x18] sm:$0xff]
    %v1057 = vsel %vm28, %v1053, 0
    %1059 = vmatprep.subr.mxu0 0.0
    %1060 = vmatpush1.msra.mxu0 %v1054
    %1061 = vmatprep.subr.mxu0 0.0
    %1062 = vmatpush1.msra.mxu0 %v1055
    %1063 = vmatprep.subr.mxu0 0.0
    %1064 = vmatpush1.msra.mxu0 0.0
    %1065 = vmatprep.subr.mxu0 0.0
    %1066 = vmatpush1.msra.mxu0 0.0
    %1067 = vmatprep.subr.mxu0 0.0
    %1068 = vmatpush1.msra.mxu0 0.0
    %1069 = vmatprep.subr.mxu0 0.0
    %1070 = vmatpush1.msra.mxu0 0.0
    %1071 = vmatprep.subr.mxu0 0.0
    %1072 = vmatpush1.msra.mxu0 0.0
    %1073 = vmatprep.subr.mxu0 0.0
    %1074 = vmatpush1.msra.mxu0 0.0
    %1075 = vmatprep.subr.mxu0 0.0
    %1076 = vmatpush1.msra.mxu0 0.0
    %1077 = vmatprep.subr.mxu0 0.0
    %1078 = vmatpush1.msra.mxu0 0.0
    %1079 = vmatprep.subr.mxu0 0.0
    %1080 = vmatpush1.msra.mxu0 0.0
    %1081 = vmatprep.subr.mxu0 0.0
    %1082 = vmatpush1.msra.mxu0 0.0
    %1083 = vmatprep.subr.mxu0 0.0
    %1084 = vmatpush1.msra.mxu0 0.0
    %1085 = vmatprep.subr.mxu0 0.0
    %1086 = vmatpush1.msra.mxu0 0.0
    %1087 = vmatprep.subr.mxu0 0.0
    %1088 = vmatpush1.msra.mxu0 0.0
    %1089 = vmatprep.subr.mxu0 0.0
    %1090 = vmatpush1.msra.mxu0 0.0
    %1091 = vmatprep.subr.mxu0 0.0
    %1092 = vmatpush1.msra.mxu0 0.0
    %1093 = vmatprep.subr.mxu0 0.0
    %1094 = vmatpush1.msra.mxu0 0.0
    %1095 = vmatprep.subr.mxu0 0.0
    %1096 = vmatpush1.msra.mxu0 0.0
    %1097 = vmatprep.subr.mxu0 0.0
    %1098 = vmatpush1.msra.mxu0 0.0
    %1099 = vmatprep.subr.mxu0 0.0
    %1100 = vmatpush1.msra.mxu0 0.0
    %1101 = vmatprep.subr.mxu0 0.0
    %1102 = vmatpush1.msra.mxu0 0.0
    %1103 = vmatprep.subr.mxu0 0.0
    %1104 = vmatpush1.msra.mxu0 0.0
    %1105 = vmatprep.subr.mxu0 0.0
    %1106 = vmatpush1.msra.mxu0 0.0
    %1107 = vmatprep.subr.mxu0 0.0
    %1108 = vmatpush1.msra.mxu0 0.0
    %1109 = vmatprep.subr.mxu0 0.0
    %1110 = vmatpush1.msra.mxu0 0.0
    %1111 = vmatprep.subr.mxu0 0.0
    %1112 = vmatpush1.msra.mxu0 0.0
    %1113 = vmatprep.subr.mxu0 0.0
    %1114 = vmatpush1.msra.mxu0 0.0
    %1115 = vmatprep.subr.mxu0 0.0
    %1116 = vmatpush1.msra.mxu0 0.0
    %1117 = vmatprep.subr.mxu0 0.0
    %1118 = vmatpush1.msra.mxu0 0.0
    %1119 = vmatprep.subr.mxu0 0.0
    %1120 = vmatpush1.msra.mxu0 0.0
    %1121 = vmatprep.subr.mxu0 0.0
    %1122 = vmatpush1.msra.mxu0 0.0
    %1123 = vmatprep.mubr.f32.mxu0 0.0
    %1124 = vmatmul.mubr.f32.gmra.mrb[0].mxu0 %v1057
    %v1125 = vpop.f32.mrb[0].mxu0
    %v1126 = vadd.f32 0.0, %v1125
    %v1127 = vpop.f32.mrb[0].mxu0
    %1128 = vdwg.mxu0
    %v1129 = vsel %vm102, %v1126, -inf
    %1130 = vmax.xlane.f32.xlu0 %v1129
    %v1131 = vpop.xlane.xlu0 %1130
    %v1132 = vsel %vm102, %v1126, inf
    %1133 = vmin.xlane.f32.xlu0 %v1132
    %v1134 = vpop.xlane.xlu0 %1133
    %v1135 = vsel %vm109, %v1126, -inf
    %1136 = vmax.xlane.f32.xlu0 %v1135
    %v1137 = vpop.xlane.xlu0 %1136
    %v1138 = vsel %vm109, %v1126, inf
    %1139 = vmin.xlane.f32.xlu0 %v1138
    %v1140 = vpop.xlane.xlu0 %1139
    %v1141 = vmul.f32 %v1131, %v1137
    %v1142 = vmul.f32 %v1131, %v1140
    %v1143 = vmax.f32 %v1141, %v1142
    %v1144 = vmul.f32 %v1134, %v1137
    %v1145 = vmul.f32 %v1134, %v1140
    %v1146 = vmax.f32 %v1144, %v1145
    %v1147 = vmax.f32 %v1143, %v1146
    %v1148 = vlaneseq
    %v1149 = vshrl.u32 %v1148, 7
    %v1150 = vsub.s32 0, %v1149
    %v1151 = vrot.slane %v1126, %v1150
    %1153 = vbcast.lane.b32.xlu0 %v1151, 256
    %v1154 = vpop.permute.xlu0 %1153
    %s1156 = sor.u32 256, 8
    %1157 = vbcast.lane.b32.xlu0 %v1151, %s1156
    %v1158 = vpop.permute.xlu0 %1157
    %v1159 = vlaneseq
    %v1160 = vshrl.u32 %v1159, 7
    %v1161 = vsub.s32 1, %v1160
    %v1162 = vrot.slane %v1126, %v1161
    %1164 = vbcast.lane.b32.xlu0 %v1162, 256
    %v1165 = vpop.permute.xlu0 %1164
    %s1167 = sor.u32 256, 8
    %1168 = vbcast.lane.b32.xlu0 %v1162, %s1167
    %v1169 = vpop.permute.xlu0 %1168
    %v1172 = vunpack.c.l.s4 1966171168
    %v1173 = vunpack.c.0.s8 %v1172
    %v1174 = vlaneseq
    %v1175 = vshrl.u32 %v1174, 7
    %v1176 = vsub.s32 %v1173, %v1175
    %v1177 = vrot.slane %v1126, %v1176
    %v1178 = vcombine.high %v1177, %v1177
    %v1180 = vunpack.c.l.s4 1966171168
    %v1181 = vunpack.c.0.s8 %v1180
    %v1182 = vlaneseq
    %v1183 = vshrl.u32 %v1182, 7
    %v1184 = vsub.s32 %v1181, %v1183
    %v1185 = vrot.slane %v1177, %v1184
    %v1187 = vunpack.c.l.s4 1966171168
    %v1188 = vunpack.c.0.s8 %v1187
    %v1189 = vlaneseq
    %v1190 = vshrl.u32 %v1189, 7
    %v1191 = vsub.s32 %v1188, %v1190
    %v1192 = vrot.slane %v1178, %v1191
    %v1193 = vlaneseq
    %v1194 = vshrl.u32 %v1193, 7
    %v1195 = vsub.s32 0, %v1194
    %v1196 = vrot.slane %v1185, %v1195
    %v1197 = vlaneseq
    %v1198 = vshrl.u32 %v1197, 7
    %v1199 = vsub.s32 0, %v1198
    %v1200 = vrot.slane %v1192, %v1199
    %v1203 = vmul.f32 %v1154, %v1196
    %v1204 = vmul.f32 %v1158, %v1196
    %v1205 = vmul.f32 %v1165, %v1200
    %v1206 = vmul.f32 %v1169, %v1200
    %v1208 = vlaneseq
    %v1209 = vshrl.u32 %v1208, 7
    %v1210 = vsub.s32 0, %v1209
    %v1211 = vrot.slane %v1147, %v1210
    %v1212 = vlaneseq
    %v1213 = vshrl.u32 %v1212, 7
    %v1214 = vsub.s32 1, %v1213
    %v1215 = vrot.slane %v1147, %v1214
    %v1218 = vsub.f32 %v1203, %v1211
    %v1219 = vsub.f32 %v1204, %v1211
    %v1220 = vsub.f32 %v1205, %v1215
    %v1221 = vsub.f32 %v1206, %v1215
    %v1222 = vmul.f32 %v1218, 1.442695
    %v1223 = vpow.pop %v1222
    %v1224 = vmul.f32 %v1219, 1.442695
    %v1225 = vpow.pop %v1224
    %v1226 = vmul.f32 %v1220, 1.442695
    %v1227 = vpow.pop %v1226
    %v1228 = vmul.f32 %v1221, 1.442695
    %v1229 = vpow.pop %v1228
    %1234 = vrot.lane.b32.xlu0 %v1223, 112
    %v1235 = vpop.permute.xlu0 %1234
    %1236 = vrot.lane.b32.xlu0 %v1225, 112
    %v1237 = vpop.permute.xlu0 %1236
    %1238 = vrot.lane.b32.xlu0 %v1227, 112
    %v1239 = vpop.permute.xlu0 %1238
    %1240 = vrot.lane.b32.xlu0 %v1229, 112
    %v1241 = vpop.permute.xlu0 %1240
    %v1246 = vsel %vm28, %v1235, 0.0
    %1247 = vadd.xlane.f32.xlu0 %v1246
    %v1248 = vpop.xlane.xlu0 %1247
    %v1249 = vsel %vm28, %v1237, 0.0
    %1250 = vadd.xlane.f32.xlu0 %v1249
    %v1251 = vpop.xlane.xlu0 %1250
    %v1252 = vsel %vm28, %v1239, 0.0
    %1253 = vadd.xlane.f32.xlu0 %v1252
    %v1254 = vpop.xlane.xlu0 %1253
    %v1255 = vsel %vm28, %v1241, 0.0
    %1256 = vadd.xlane.f32.xlu0 %v1255
    %v1257 = vpop.xlane.xlu0 %1256
    %v1262 = vlaneseq
    %v1263 = vshrl.u32 %v1262, 7
    %v1264 = vsub.s32 %v238, %v1263
    %v1265 = vrot.slane %v1248, %v1264
    %v1266 = vlaneseq
    %v1267 = vshrl.u32 %v1266, 7
    %v1268 = vsub.s32 %v243, %v1267
    %v1269 = vrot.slane %v1251, %v1268
    %v1270 = vsel %vm248, %v1269, %v1265
    %v1271 = vlaneseq
    %v1272 = vshrl.u32 %v1271, 7
    %v1273 = vsub.s32 %v238, %v1272
    %v1274 = vrot.slane %v1254, %v1273
    %v1275 = vlaneseq
    %v1276 = vshrl.u32 %v1275, 7
    %v1277 = vsub.s32 %v243, %v1276
    %v1278 = vrot.slane %v1257, %v1277
    %v1279 = vsel %vm248, %v1278, %v1274
    %v1280 = vsel %vm259, %v1279, %v1270
    %v1282 = vsel %vm102, %v1280, 0.0
    %1283 = vadd.xlane.f32.xlu0 %v1282
    %v1284 = vpop.xlane.xlu0 %1283
    %1285 = vrot.lane.b32.xlu0 %v1196, 112
    %v1286 = vpop.permute.xlu0 %1285
    %1287 = vrot.lane.b32.xlu0 %v1200, 112
    %v1288 = vpop.permute.xlu0 %1287
    %v1291 = vmul.f32 %v1223, %v1286
    %v1292 = vmul.f32 %v1225, %v1286
    %v1293 = vmul.f32 %v1227, %v1288
    %v1294 = vmul.f32 %v1229, %v1288
    %1299 = vrot.lane.b32.xlu0 %v1291, 112
    %v1300 = vpop.permute.xlu0 %1299
    %1301 = vrot.lane.b32.xlu0 %v1292, 112
    %v1302 = vpop.permute.xlu0 %1301
    %1303 = vrot.lane.b32.xlu0 %v1293, 112
    %v1304 = vpop.permute.xlu0 %1303
    %1305 = vrot.lane.b32.xlu0 %v1294, 112
    %v1306 = vpop.permute.xlu0 %1305
    %v1311 = vsel %vm28, %v1300, 0.0
    %1312 = vadd.xlane.f32.xlu0 %v1311
    %v1313 = vpop.xlane.xlu0 %1312
    %v1314 = vsel %vm28, %v1302, 0.0
    %1315 = vadd.xlane.f32.xlu0 %v1314
    %v1316 = vpop.xlane.xlu0 %1315
    %v1317 = vsel %vm28, %v1304, 0.0
    %1318 = vadd.xlane.f32.xlu0 %v1317
    %v1319 = vpop.xlane.xlu0 %1318
    %v1320 = vsel %vm28, %v1306, 0.0
    %1321 = vadd.xlane.f32.xlu0 %v1320
    %v1322 = vpop.xlane.xlu0 %1321
    %v1323 = vrcp.pop %v1284
    %v1325 = vlaneseq
    %v1326 = vshrl.u32 %v1325, 7
    %v1327 = vsub.s32 0, %v1326
    %v1328 = vrot.slane %v1323, %v1327
    %v1329 = vlaneseq
    %v1330 = vshrl.u32 %v1329, 7
    %v1331 = vsub.s32 1, %v1330
    %v1332 = vrot.slane %v1323, %v1331
    %v1335 = vmul.f32 %v1313, %v1328
    %v1336 = vmul.f32 %v1316, %v1328
    %v1337 = vmul.f32 %v1319, %v1332
    %v1338 = vmul.f32 %v1322, %v1332
    %v1339 = vmul.f32 %v1335, 0.5
    %v1340 = vmul.f32 %v1336, 0.5
    %v1341 = vmul.f32 %v1337, 0.5
    %v1342 = vmul.f32 %v1338, 0.5
    %v1343 = vtanh.pop %v1339
    %v1344 = vtanh.pop %v1340
    %v1345 = vtanh.pop %v1341
    %v1346 = vtanh.pop %v1342
    %v1347 = vmul.f32 %v1343, 0.5
    %v1348 = vmul.f32 %v1344, 0.5
    %v1349 = vmul.f32 %v1345, 0.5
    %v1350 = vmul.f32 %v1346, 0.5
    %v1351 = vadd.f32 %v1347, 0.5
    %v1352 = vadd.f32 %v1348, 0.5
    %v1353 = vadd.f32 %v1349, 0.5
    %v1354 = vadd.f32 %v1350, 0.5
    %v1355 = vld [vmem:[#allocation2 + $0x64] sm:$0x1]
    %v1356 = vlaneseq
    %v1357 = vshrl.u32 %v1356, 7
    %v1358 = vsub.s32 0, %v1357
    %v1359 = vrot.slane %v1355, %v1358
    %1362 = vbcast.lane.b32.xlu0 %v1359, 256
    %v1363 = vpop.permute.xlu0 %1362
    %s1365 = sor.u32 256, 8
    %1366 = vbcast.lane.b32.xlu0 %v1359, %s1365
    %v1367 = vpop.permute.xlu0 %1366
    %v1370 = vmul.f32 %v1351, %v1363
    %v1371 = vmul.f32 %v1352, %v1367
    %v1372 = vmul.f32 %v1353, %v1363
    %v1373 = vmul.f32 %v1354, %v1367
    %s1375 = sor.u32 256, 32
    %1376 = vbcast.lane.b32.xlu0 %v1359, %s1375
    %v1377 = vpop.permute.xlu0 %1376
    %s1379 = sor.u32 256, 40
    %1380 = vbcast.lane.b32.xlu0 %v1359, %s1379
    %v1381 = vpop.permute.xlu0 %1380
    %v1384 = vadd.f32 %v1370, %v1377
    %v1385 = vadd.f32 %v1371, %v1381
    %v1386 = vadd.f32 %v1372, %v1377
    %v1387 = vadd.f32 %v1373, %v1381
    %v1388 = vmul.f32 %v1335, %v1384
    %v1389 = vmul.f32 %v1336, %v1385
    %v1390 = vmul.f32 %v1337, %v1386
    %v1391 = vmul.f32 %v1338, %v1387
    %v1392 = vand.u32 2147483647, %v1335
    %vm1393 = vcmp.le.f32.partialorder %v1392, 0.7853982
    %vm1394 = vcmp.lt.s32.totalorder %v1335, 0
    %v1395 = vand.u32 %v1335, 2139095040
    %v1396 = vshrl.u32 %v1395, 23
    %v1397 = vsub.s32 %v1396, 127
    %v1398 = vand.u32 2147483647, %v1335
    %v1399 = vand.u32 %v1398, 8388607
    %v1400 = vor.u32 %v1399, 8388608
    %v1401 = vsub.s32 0, %v1400
    %v1402 = vadd.s32 %v1397, 1
    %vm1403 = vcmp.gt.s32.totalorder %v1402, 0
    %v1404 = vsel %vm1403, %v1402, 0
    %v1405 = vshrl.u32 %v1404, 5
    %v1406 = vand.u32 %v1404, 31
    %v1407 = vsub.s32 32, %v1406
    %v1408 = vshrl.u32 683565275, %v1407
    %v1409 = vshll.u32 683565275, %v1406
    %v1410 = vshrl.u32 2475754826, %v1407
    %v1411 = vor.u32 %v1409, %v1410
    %v1412 = vshll.u32 2475754826, %v1406
    %v1413 = vshrl.u32 2131351028, %v1407
    %v1414 = vor.u32 %v1412, %v1413
    %v1415 = vshll.u32 2131351028, %v1406
    %v1416 = vshrl.u32 2102212464, %v1407
    %v1417 = vor.u32 %v1415, %v1416
    %v1418 = vshll.u32 2102212464, %v1406
    %v1419 = vshrl.u32 920167782, %v1407
    %v1420 = vor.u32 %v1418, %v1419
    %v1421 = vshll.u32 920167782, %v1406
    %v1422 = vshrl.u32 1326507024, %v1407
    %v1423 = vor.u32 %v1421, %v1422
    %vm1424 = vcmp.lt.s32.totalorder %v1405, 1
    %vm1425 = vcmp.lt.s32.totalorder %v1405, 2
    %vm1426 = vcmp.lt.s32.totalorder %v1405, 3
    %vm1427 = vcmp.lt.s32.totalorder %v1405, 4
    %v1428 = vsel %vm1424, %v1408, %v1411
    %v1429 = vsel %vm1427, %v1417, 2102212464
    %v1430 = vsel %vm1426, %v1414, %v1429
    %v1431 = vsel %vm1425, %v1428, %v1430
    %v1432 = vsel %vm1424, %v1411, %v1414
    %v1433 = vsel %vm1427, %v1420, 920167782
    %v1434 = vsel %vm1426, %v1417, %v1433
    %v1435 = vsel %vm1425, %v1432, %v1434
    %v1436 = vsel %vm1424, %v1414, %v1417
    %v1437 = vsel %vm1427, %v1423, 1326507024
    %v1438 = vsel %vm1426, %v1420, %v1437
    %v1439 = vsel %vm1425, %v1436, %v1438
    %v1440 = vshll.u32 %v1400, 8
    %v1441 = vmul.u32.u64.compose %v1440, %v1439
    %v1442 = vextract.low.u32 %v1441
    %v1443 = vextract.high.u32 %v1441
    %v1444 = vmul.u32.u64.compose %v1440, %v1435
    %v1445 = vextract.low.u32 %v1444
    %v1446 = vextract.high.u32 %v1444
    %v1447 = vmul.u32 %v1440, %v1431
    %v1448 = vadd.s32 %v1443, %v1445
    %vm1449 = vc.u32 %v1443, %v1445
    %v1450 = vadd.s32 %v1446, 1
    %v1451 = vsel %vm1449, %v1450, %v1446
    %v1452 = vadd.s32 %v1447, %v1451
    %v1453 = vadd.s32 %v1452, 536870912
    %v1454 = vshrl.u32 %v1453, 30
    %v1455 = vshll.u32 %v1454, 30
    %v1456 = vsub.s32 %v1452, %v1455
    %vm1457 = vcmp.lt.s32.totalorder %v1456, 0
    %v1458 = vsub.s32 0, %v1456
    %v1459 = vsel %vm1457, %v1458, %v1456
    %v1460 = vclz %v1459
    %v1461 = vsub.s32 %v1460, 2
    %vm1462 = vcmp.gt.s32.totalorder 0, %v1461
    %v1463 = vsel %vm1462, 0, %v1461
    %v1464 = vsub.s32 32, %v1463
    %v1465 = vshll.u32 %v1456, %v1463
    %v1466 = vshrl.u32 %v1448, %v1464
    %v1467 = vor.u32 %v1465, %v1466
    %v1468 = vsub.s32 4294967266, %v1463
    %v1469 = vadd.s32 %v1468, 127
    %v1470 = vshll.u32 %v1469, 23
    %v1471 = vor.u32 4788187, %v1470
    %v1472 = vand.u32 2147483647, %v1471
    %v1474 = vcvt.s32.f32 %v1467
    %v1475 = vmul.f32 %v1474, %v1472
    %v1476 = vxor.u32 %v1475, 2147483648
    %v1477 = vsel %vm1394, %v1476, %v1475
    %v1478 = vsub.s32 4, %v1454
    %v1479 = vsel %vm1394, %v1478, %v1454
    %v1480 = vsel %vm1393, %v1335, %v1477
    %v1481 = vsel %vm1393, 0, %v1479
    %v1482 = vcosq.f32.pop %v1480
    %v1483 = vsinq.f32.pop %v1480
    %vm1484 = vweird.f32 %v1335
    %v1485 = vadd.s32 %v1481, 3
    %v1486 = vand.u32 %v1485, 3
    %vm1487 = vcmp.lt.s32.totalorder %v1486, 2
    %vm1488 = vcmp.eq.s32.totalorder %v1486, 0
    %v1489 = vxor.u32 %v1483, 2147483648
    %v1490 = vsel %vm1488, %v1482, %v1489
    %vm1491 = vcmp.eq.s32.totalorder %v1486, 2
    %v1492 = vxor.u32 %v1482, 2147483648
    %v1493 = vsel %vm1491, %v1492, %v1483
    %v1494 = vsel %vm1487, %v1490, %v1493
    %v1495 = vsel %vm1484, nan, %v1494
    %v1496 = vand.u32 2147483647, %v1336
    %vm1497 = vcmp.le.f32.partialorder %v1496, 0.7853982
    %vm1498 = vcmp.lt.s32.totalorder %v1336, 0
    %v1499 = vand.u32 %v1336, 2139095040
    %v1500 = vshrl.u32 %v1499, 23
    %v1501 = vsub.s32 %v1500, 127
    %v1502 = vand.u32 2147483647, %v1336
    %v1503 = vand.u32 %v1502, 8388607
    %v1504 = vor.u32 %v1503, 8388608
    %v1505 = vsub.s32 0, %v1504
    %v1506 = vadd.s32 %v1501, 1
    %vm1507 = vcmp.gt.s32.totalorder %v1506, 0
    %v1508 = vsel %vm1507, %v1506, 0
    %v1509 = vshrl.u32 %v1508, 5
    %v1510 = vand.u32 %v1508, 31
    %v1511 = vsub.s32 32, %v1510
    %v1512 = vshrl.u32 683565275, %v1511
    %v1513 = vshll.u32 683565275, %v1510
    %v1514 = vshrl.u32 2475754826, %v1511
    %v1515 = vor.u32 %v1513, %v1514
    %v1516 = vshll.u32 2475754826, %v1510
    %v1517 = vshrl.u32 2131351028, %v1511
    %v1518 = vor.u32 %v1516, %v1517
    %v1519 = vshll.u32 2131351028, %v1510
    %v1520 = vshrl.u32 2102212464, %v1511
    %v1521 = vor.u32 %v1519, %v1520
    %v1522 = vshll.u32 2102212464, %v1510
    %v1523 = vshrl.u32 920167782, %v1511
    %v1524 = vor.u32 %v1522, %v1523
    %v1525 = vshll.u32 920167782, %v1510
    %v1526 = vshrl.u32 1326507024, %v1511
    %v1527 = vor.u32 %v1525, %v1526
    %vm1528 = vcmp.lt.s32.totalorder %v1509, 1
    %vm1529 = vcmp.lt.s32.totalorder %v1509, 2
    %vm1530 = vcmp.lt.s32.totalorder %v1509, 3
    %vm1531 = vcmp.lt.s32.totalorder %v1509, 4
    %v1532 = vsel %vm1528, %v1512, %v1515
    %v1533 = vsel %vm1531, %v1521, 2102212464
    %v1534 = vsel %vm1530, %v1518, %v1533
    %v1535 = vsel %vm1529, %v1532, %v1534
    %v1536 = vsel %vm1528, %v1515, %v1518
    %v1537 = vsel %vm1531, %v1524, 920167782
    %v1538 = vsel %vm1530, %v1521, %v1537
    %v1539 = vsel %vm1529, %v1536, %v1538
    %v1540 = vsel %vm1528, %v1518, %v1521
    %v1541 = vsel %vm1531, %v1527, 1326507024
    %v1542 = vsel %vm1530, %v1524, %v1541
    %v1543 = vsel %vm1529, %v1540, %v1542
    %v1544 = vshll.u32 %v1504, 8
    %v1545 = vmul.u32.u64.compose %v1544, %v1543
    %v1546 = vextract.low.u32 %v1545
    %v1547 = vextract.high.u32 %v1545
    %v1548 = vmul.u32.u64.compose %v1544, %v1539
    %v1549 = vextract.low.u32 %v1548
    %v1550 = vextract.high.u32 %v1548
    %v1551 = vmul.u32 %v1544, %v1535
    %v1552 = vadd.s32 %v1547, %v1549
    %vm1553 = vc.u32 %v1547, %v1549
    %v1554 = vadd.s32 %v1550, 1
    %v1555 = vsel %vm1553, %v1554, %v1550
    %v1556 = vadd.s32 %v1551, %v1555
    %v1557 = vadd.s32 %v1556, 536870912
    %v1558 = vshrl.u32 %v1557, 30
    %v1559 = vshll.u32 %v1558, 30
    %v1560 = vsub.s32 %v1556, %v1559
    %vm1561 = vcmp.lt.s32.totalorder %v1560, 0
    %v1562 = vsub.s32 0, %v1560
    %v1563 = vsel %vm1561, %v1562, %v1560
    %v1564 = vclz %v1563
    %v1565 = vsub.s32 %v1564, 2
    %vm1566 = vcmp.gt.s32.totalorder 0, %v1565
    %v1567 = vsel %vm1566, 0, %v1565
    %v1568 = vsub.s32 32, %v1567
    %v1569 = vshll.u32 %v1560, %v1567
    %v1570 = vshrl.u32 %v1552, %v1568
    %v1571 = vor.u32 %v1569, %v1570
    %v1572 = vsub.s32 4294967266, %v1567
    %v1573 = vadd.s32 %v1572, 127
    %v1574 = vshll.u32 %v1573, 23
    %v1575 = vor.u32 4788187, %v1574
    %v1576 = vand.u32 2147483647, %v1575
    %v1578 = vcvt.s32.f32 %v1571
    %v1579 = vmul.f32 %v1578, %v1576
    %v1580 = vxor.u32 %v1579, 2147483648
    %v1581 = vsel %vm1498, %v1580, %v1579
    %v1582 = vsub.s32 4, %v1558
    %v1583 = vsel %vm1498, %v1582, %v1558
    %v1584 = vsel %vm1497, %v1336, %v1581
    %v1585 = vsel %vm1497, 0, %v1583
    %v1586 = vcosq.f32.pop %v1584
    %v1587 = vsinq.f32.pop %v1584
    %vm1588 = vweird.f32 %v1336
    %v1589 = vadd.s32 %v1585, 3
    %v1590 = vand.u32 %v1589, 3
    %vm1591 = vcmp.lt.s32.totalorder %v1590, 2
    %vm1592 = vcmp.eq.s32.totalorder %v1590, 0
    %v1593 = vxor.u32 %v1587, 2147483648
    %v1594 = vsel %vm1592, %v1586, %v1593
    %vm1595 = vcmp.eq.s32.totalorder %v1590, 2
    %v1596 = vxor.u32 %v1586, 2147483648
    %v1597 = vsel %vm1595, %v1596, %v1587
    %v1598 = vsel %vm1591, %v1594, %v1597
    %v1599 = vsel %vm1588, nan, %v1598
    %v1600 = vand.u32 2147483647, %v1337
    %vm1601 = vcmp.le.f32.partialorder %v1600, 0.7853982
    %vm1602 = vcmp.lt.s32.totalorder %v1337, 0
    %v1603 = vand.u32 %v1337, 2139095040
    %v1604 = vshrl.u32 %v1603, 23
    %v1605 = vsub.s32 %v1604, 127
    %v1606 = vand.u32 2147483647, %v1337
    %v1607 = vand.u32 %v1606, 8388607
    %v1608 = vor.u32 %v1607, 8388608
    %v1609 = vsub.s32 0, %v1608
    %v1610 = vadd.s32 %v1605, 1
    %vm1611 = vcmp.gt.s32.totalorder %v1610, 0
    %v1612 = vsel %vm1611, %v1610, 0
    %v1613 = vshrl.u32 %v1612, 5
    %v1614 = vand.u32 %v1612, 31
    %v1615 = vsub.s32 32, %v1614
    %v1616 = vshrl.u32 683565275, %v1615
    %v1617 = vshll.u32 683565275, %v1614
    %v1618 = vshrl.u32 2475754826, %v1615
    %v1619 = vor.u32 %v1617, %v1618
    %v1620 = vshll.u32 2475754826, %v1614
    %v1621 = vshrl.u32 2131351028, %v1615
    %v1622 = vor.u32 %v1620, %v1621
    %v1623 = vshll.u32 2131351028, %v1614
    %v1624 = vshrl.u32 2102212464, %v1615
    %v1625 = vor.u32 %v1623, %v1624
    %v1626 = vshll.u32 2102212464, %v1614
    %v1627 = vshrl.u32 920167782, %v1615
    %v1628 = vor.u32 %v1626, %v1627
    %v1629 = vshll.u32 920167782, %v1614
    %v1630 = vshrl.u32 1326507024, %v1615
    %v1631 = vor.u32 %v1629, %v1630
    %vm1632 = vcmp.lt.s32.totalorder %v1613, 1
    %vm1633 = vcmp.lt.s32.totalorder %v1613, 2
    %vm1634 = vcmp.lt.s32.totalorder %v1613, 3
    %vm1635 = vcmp.lt.s32.totalorder %v1613, 4
    %v1636 = vsel %vm1632, %v1616, %v1619
    %v1637 = vsel %vm1635, %v1625, 2102212464
    %v1638 = vsel %vm1634, %v1622, %v1637
    %v1639 = vsel %vm1633, %v1636, %v1638
    %v1640 = vsel %vm1632, %v1619, %v1622
    %v1641 = vsel %vm1635, %v1628, 920167782
    %v1642 = vsel %vm1634, %v1625, %v1641
    %v1643 = vsel %vm1633, %v1640, %v1642
    %v1644 = vsel %vm1632, %v1622, %v1625
    %v1645 = vsel %vm1635, %v1631, 1326507024
    %v1646 = vsel %vm1634, %v1628, %v1645
    %v1647 = vsel %vm1633, %v1644, %v1646
    %v1648 = vshll.u32 %v1608, 8
    %v1649 = vmul.u32.u64.compose %v1648, %v1647
    %v1650 = vextract.low.u32 %v1649
    %v1651 = vextract.high.u32 %v1649
    %v1652 = vmul.u32.u64.compose %v1648, %v1643
    %v1653 = vextract.low.u32 %v1652
    %v1654 = vextract.high.u32 %v1652
    %v1655 = vmul.u32 %v1648, %v1639
    %v1656 = vadd.s32 %v1651, %v1653
    %vm1657 = vc.u32 %v1651, %v1653
    %v1658 = vadd.s32 %v1654, 1
    %v1659 = vsel %vm1657, %v1658, %v1654
    %v1660 = vadd.s32 %v1655, %v1659
    %v1661 = vadd.s32 %v1660, 536870912
    %v1662 = vshrl.u32 %v1661, 30
    %v1663 = vshll.u32 %v1662, 30
    %v1664 = vsub.s32 %v1660, %v1663
    %vm1665 = vcmp.lt.s32.totalorder %v1664, 0
    %v1666 = vsub.s32 0, %v1664
    %v1667 = vsel %vm1665, %v1666, %v1664
    %v1668 = vclz %v1667
    %v1669 = vsub.s32 %v1668, 2
    %vm1670 = vcmp.gt.s32.totalorder 0, %v1669
    %v1671 = vsel %vm1670, 0, %v1669
    %v1672 = vsub.s32 32, %v1671
    %v1673 = vshll.u32 %v1664, %v1671
    %v1674 = vshrl.u32 %v1656, %v1672
    %v1675 = vor.u32 %v1673, %v1674
    %v1676 = vsub.s32 4294967266, %v1671
    %v1677 = vadd.s32 %v1676, 127
    %v1678 = vshll.u32 %v1677, 23
    %v1679 = vor.u32 4788187, %v1678
    %v1680 = vand.u32 2147483647, %v1679
    %v1682 = vcvt.s32.f32 %v1675
    %v1683 = vmul.f32 %v1682, %v1680
    %v1684 = vxor.u32 %v1683, 2147483648
    %v1685 = vsel %vm1602, %v1684, %v1683
    %v1686 = vsub.s32 4, %v1662
    %v1687 = vsel %vm1602, %v1686, %v1662
    %v1688 = vsel %vm1601, %v1337, %v1685
    %v1689 = vsel %vm1601, 0, %v1687
    %v1690 = vcosq.f32.pop %v1688
    %v1691 = vsinq.f32.pop %v1688
    %vm1692 = vweird.f32 %v1337
    %v1693 = vadd.s32 %v1689, 3
    %v1694 = vand.u32 %v1693, 3
    %vm1695 = vcmp.lt.s32.totalorder %v1694, 2
    %vm1696 = vcmp.eq.s32.totalorder %v1694, 0
    %v1697 = vxor.u32 %v1691, 2147483648
    %v1698 = vsel %vm1696, %v1690, %v1697
    %vm1699 = vcmp.eq.s32.totalorder %v1694, 2
    %v1700 = vxor.u32 %v1690, 2147483648
    %v1701 = vsel %vm1699, %v1700, %v1691
    %v1702 = vsel %vm1695, %v1698, %v1701
    %v1703 = vsel %vm1692, nan, %v1702
    %v1704 = vand.u32 2147483647, %v1338
    %vm1705 = vcmp.le.f32.partialorder %v1704, 0.7853982
    %vm1706 = vcmp.lt.s32.totalorder %v1338, 0
    %v1707 = vand.u32 %v1338, 2139095040
    %v1708 = vshrl.u32 %v1707, 23
    %v1709 = vsub.s32 %v1708, 127
    %v1710 = vand.u32 2147483647, %v1338
    %v1711 = vand.u32 %v1710, 8388607
    %v1712 = vor.u32 %v1711, 8388608
    %v1713 = vsub.s32 0, %v1712
    %v1714 = vadd.s32 %v1709, 1
    %vm1715 = vcmp.gt.s32.totalorder %v1714, 0
    %v1716 = vsel %vm1715, %v1714, 0
    %v1717 = vshrl.u32 %v1716, 5
    %v1718 = vand.u32 %v1716, 31
    %v1719 = vsub.s32 32, %v1718
    %v1720 = vshrl.u32 683565275, %v1719
    %v1721 = vshll.u32 683565275, %v1718
    %v1722 = vshrl.u32 2475754826, %v1719
    %v1723 = vor.u32 %v1721, %v1722
    %v1724 = vshll.u32 2475754826, %v1718
    %v1725 = vshrl.u32 2131351028, %v1719
    %v1726 = vor.u32 %v1724, %v1725
    %v1727 = vshll.u32 2131351028, %v1718
    %v1728 = vshrl.u32 2102212464, %v1719
    %v1729 = vor.u32 %v1727, %v1728
    %v1730 = vshll.u32 2102212464, %v1718
    %v1731 = vshrl.u32 920167782, %v1719
    %v1732 = vor.u32 %v1730, %v1731
    %v1733 = vshll.u32 920167782, %v1718
    %v1734 = vshrl.u32 1326507024, %v1719
    %v1735 = vor.u32 %v1733, %v1734
    %vm1736 = vcmp.lt.s32.totalorder %v1717, 1
    %vm1737 = vcmp.lt.s32.totalorder %v1717, 2
    %vm1738 = vcmp.lt.s32.totalorder %v1717, 3
    %vm1739 = vcmp.lt.s32.totalorder %v1717, 4
    %v1740 = vsel %vm1736, %v1720, %v1723
    %v1741 = vsel %vm1739, %v1729, 2102212464
    %v1742 = vsel %vm1738, %v1726, %v1741
    %v1743 = vsel %vm1737, %v1740, %v1742
    %v1744 = vsel %vm1736, %v1723, %v1726
    %v1745 = vsel %vm1739, %v1732, 920167782
    %v1746 = vsel %vm1738, %v1729, %v1745
    %v1747 = vsel %vm1737, %v1744, %v1746
    %v1748 = vsel %vm1736, %v1726, %v1729
    %v1749 = vsel %vm1739, %v1735, 1326507024
    %v1750 = vsel %vm1738, %v1732, %v1749
    %v1751 = vsel %vm1737, %v1748, %v1750
    %v1752 = vshll.u32 %v1712, 8
    %v1753 = vmul.u32.u64.compose %v1752, %v1751
    %v1754 = vextract.low.u32 %v1753
    %v1755 = vextract.high.u32 %v1753
    %v1756 = vmul.u32.u64.compose %v1752, %v1747
    %v1757 = vextract.low.u32 %v1756
    %v1758 = vextract.high.u32 %v1756
    %v1759 = vmul.u32 %v1752, %v1743
    %v1760 = vadd.s32 %v1755, %v1757
    %vm1761 = vc.u32 %v1755, %v1757
    %v1762 = vadd.s32 %v1758, 1
    %v1763 = vsel %vm1761, %v1762, %v1758
    %v1764 = vadd.s32 %v1759, %v1763
    %v1765 = vadd.s32 %v1764, 536870912
    %v1766 = vshrl.u32 %v1765, 30
    %v1767 = vshll.u32 %v1766, 30
    %v1768 = vsub.s32 %v1764, %v1767
    %vm1769 = vcmp.lt.s32.totalorder %v1768, 0
    %v1770 = vsub.s32 0, %v1768
    %v1771 = vsel %vm1769, %v1770, %v1768
    %v1772 = vclz %v1771
    %v1773 = vsub.s32 %v1772, 2
    %vm1774 = vcmp.gt.s32.totalorder 0, %v1773
    %v1775 = vsel %vm1774, 0, %v1773
    %v1776 = vsub.s32 32, %v1775
    %v1777 = vshll.u32 %v1768, %v1775
    %v1778 = vshrl.u32 %v1760, %v1776
    %v1779 = vor.u32 %v1777, %v1778
    %v1780 = vsub.s32 4294967266, %v1775
    %v1781 = vadd.s32 %v1780, 127
    %v1782 = vshll.u32 %v1781, 23
    %v1783 = vor.u32 4788187, %v1782
    %v1784 = vand.u32 2147483647, %v1783
    %v1786 = vcvt.s32.f32 %v1779
    %v1787 = vmul.f32 %v1786, %v1784
    %v1788 = vxor.u32 %v1787, 2147483648
    %v1789 = vsel %vm1706, %v1788, %v1787
    %v1790 = vsub.s32 4, %v1766
    %v1791 = vsel %vm1706, %v1790, %v1766
    %v1792 = vsel %vm1705, %v1338, %v1789
    %v1793 = vsel %vm1705, 0, %v1791
    %v1794 = vcosq.f32.pop %v1792
    %v1795 = vsinq.f32.pop %v1792
    %vm1796 = vweird.f32 %v1338
    %v1797 = vadd.s32 %v1793, 3
    %v1798 = vand.u32 %v1797, 3
    %vm1799 = vcmp.lt.s32.totalorder %v1798, 2
    %vm1800 = vcmp.eq.s32.totalorder %v1798, 0
    %v1801 = vxor.u32 %v1795, 2147483648
    %v1802 = vsel %vm1800, %v1794, %v1801
    %vm1803 = vcmp.eq.s32.totalorder %v1798, 2
    %v1804 = vxor.u32 %v1794, 2147483648
    %v1805 = vsel %vm1803, %v1804, %v1795
    %v1806 = vsel %vm1799, %v1802, %v1805
    %v1807 = vsel %vm1796, nan, %v1806
    %s1809 = sor.u32 256, 16
    %1810 = vbcast.lane.b32.xlu0 %v1359, %s1809
    %v1811 = vpop.permute.xlu0 %1810
    %s1813 = sor.u32 256, 24
    %1814 = vbcast.lane.b32.xlu0 %v1359, %s1813
    %v1815 = vpop.permute.xlu0 %1814
    %v1818 = vmul.f32 %v1495, %v1811
    %v1819 = vmul.f32 %v1599, %v1815
    %v1820 = vmul.f32 %v1703, %v1811
    %v1821 = vmul.f32 %v1807, %v1815
    %v1822 = vadd.f32 %v1388, %v1818
    %v1823 = vadd.f32 %v1389, %v1819
    %v1824 = vadd.f32 %v1390, %v1820
    %v1825 = vadd.f32 %v1391, %v1821
    %v1826 = vld [vmem:[#allocation2 + $0x40] sm:$0xff]
    %v1827 = vld [vmem:[#allocation2 + $0x48] sm:$0xff]
    %v1828 = vld [vmem:[#allocation2 + $0x61] sm:$0x1]
    %v1829 = vlaneseq
    %v1830 = vshrl.u32 %v1829, 7
    %v1831 = vsub.s32 0, %v1830
    %v1832 = vrot.slane %v1828, %v1831
    %1837 = vset.pattern.permute.xlu0 0
    %1838 = vperm.xlu0 %1837, %v1822
    %v1839 = vpop.permute.xlu0 %1838
    %1840 = vset.pattern.permute.xlu0 0
    %1841 = vperm.xlu0 %1840, %v1823
    %v1842 = vpop.permute.xlu0 %1841
    %1843 = vset.pattern.permute.xlu0 0
    %1844 = vperm.xlu0 %1843, %v1824
    %v1845 = vpop.permute.xlu0 %1844
    %1846 = vset.pattern.permute.xlu0 0
    %1847 = vperm.xlu0 %1846, %v1825
    %v1848 = vpop.permute.xlu0 %1847
    %v1849 = vlaneseq
    %v1850 = vshrl.u32 %v1849, 7
    %v1851 = vsub.s32 %v238, %v1850
    %v1852 = vrot.slane %v1839, %v1851
    %v1853 = vlaneseq
    %v1854 = vshrl.u32 %v1853, 7
    %v1855 = vsub.s32 %v243, %v1854
    %v1856 = vrot.slane %v1842, %v1855
    %v1857 = vsel %vm248, %v1856, %v1852
    %v1858 = vlaneseq
    %v1859 = vshrl.u32 %v1858, 7
    %v1860 = vsub.s32 %v238, %v1859
    %v1861 = vrot.slane %v1845, %v1860
    %v1862 = vlaneseq
    %v1863 = vshrl.u32 %v1862, 7
    %v1864 = vsub.s32 %v243, %v1863
    %v1865 = vrot.slane %v1848, %v1864
    %v1866 = vsel %vm248, %v1865, %v1861
    %v1867 = vsel %vm259, %v1866, %v1857
    %v1868 = vsel %vm28, %v1867, 0
    %1870 = vmatprep.subr.mxu0 0.0
    %1871 = vmatpush1.msra.mxu0 %v1826
    %1872 = vmatprep.subr.mxu0 0.0
    %1873 = vmatpush1.msra.mxu0 %v1827
    %1874 = vmatprep.subr.mxu0 0.0
    %1875 = vmatpush1.msra.mxu0 0.0
    %1876 = vmatprep.subr.mxu0 0.0
    %1877 = vmatpush1.msra.mxu0 0.0
    %1878 = vmatprep.subr.mxu0 0.0
    %1879 = vmatpush1.msra.mxu0 0.0
    %1880 = vmatprep.subr.mxu0 0.0
    %1881 = vmatpush1.msra.mxu0 0.0
    %1882 = vmatprep.subr.mxu0 0.0
    %1883 = vmatpush1.msra.mxu0 0.0
    %1884 = vmatprep.subr.mxu0 0.0
    %1885 = vmatpush1.msra.mxu0 0.0
    %1886 = vmatprep.subr.mxu0 0.0
    %1887 = vmatpush1.msra.mxu0 0.0
    %1888 = vmatprep.subr.mxu0 0.0
    %1889 = vmatpush1.msra.mxu0 0.0
    %1890 = vmatprep.subr.mxu0 0.0
    %1891 = vmatpush1.msra.mxu0 0.0
    %1892 = vmatprep.subr.mxu0 0.0
    %1893 = vmatpush1.msra.mxu0 0.0
    %1894 = vmatprep.subr.mxu0 0.0
    %1895 = vmatpush1.msra.mxu0 0.0
    %1896 = vmatprep.subr.mxu0 0.0
    %1897 = vmatpush1.msra.mxu0 0.0
    %1898 = vmatprep.subr.mxu0 0.0
    %1899 = vmatpush1.msra.mxu0 0.0
    %1900 = vmatprep.subr.mxu0 0.0
    %1901 = vmatpush1.msra.mxu0 0.0
    %1902 = vmatprep.subr.mxu0 0.0
    %1903 = vmatpush1.msra.mxu0 0.0
    %1904 = vmatprep.subr.mxu0 0.0
    %1905 = vmatpush1.msra.mxu0 0.0
    %1906 = vmatprep.subr.mxu0 0.0
    %1907 = vmatpush1.msra.mxu0 0.0
    %1908 = vmatprep.subr.mxu0 0.0
    %1909 = vmatpush1.msra.mxu0 0.0
    %1910 = vmatprep.subr.mxu0 0.0
    %1911 = vmatpush1.msra.mxu0 0.0
    %1912 = vmatprep.subr.mxu0 0.0
    %1913 = vmatpush1.msra.mxu0 0.0
    %1914 = vmatprep.subr.mxu0 0.0
    %1915 = vmatpush1.msra.mxu0 0.0
    %1916 = vmatprep.subr.mxu0 0.0
    %1917 = vmatpush1.msra.mxu0 0.0
    %1918 = vmatprep.subr.mxu0 0.0
    %1919 = vmatpush1.msra.mxu0 0.0
    %1920 = vmatprep.subr.mxu0 0.0
    %1921 = vmatpush1.msra.mxu0 0.0
    %1922 = vmatprep.subr.mxu0 0.0
    %1923 = vmatpush1.msra.mxu0 0.0
    %1924 = vmatprep.subr.mxu0 0.0
    %1925 = vmatpush1.msra.mxu0 0.0
    %1926 = vmatprep.subr.mxu0 0.0
    %1927 = vmatpush1.msra.mxu0 0.0
    %1928 = vmatprep.subr.mxu0 0.0
    %1929 = vmatpush1.msra.mxu0 0.0
    %1930 = vmatprep.subr.mxu0 0.0
    %1931 = vmatpush1.msra.mxu0 0.0
    %1932 = vmatprep.subr.mxu0 0.0
    %1933 = vmatpush1.msra.mxu0 0.0
    %1934 = vmatprep.mubr.f32.mxu0 0.0
    %1935 = vmatmul.mubr.f32.gmra.mrb[0].mxu0 %v1868
    %v1936 = vpop.f32.mrb[0].mxu0
    %v1937 = vadd.f32 %v1832, %v1936
    %v1938 = vpop.f32.mrb[0].mxu0
    %1939 = vdwg.mxu0
    %v1940 = vsel %vm102, %v1937, 0.0
    %1941 = vadd.xlane.f32.xlu0 %v1940
    %v1942 = vpop.xlane.xlu0 %1941
    %v1943 = vmul.f32 %v1942, %v923
    %v1944 = vsub.f32 %v1937, %v1943
    %v1945 = vmul.f32 %v1944, %v1944
    %v1946 = vsel %vm102, %v1945, 0.0
    %1947 = vadd.xlane.f32.xlu0 %v1946
    %v1948 = vpop.xlane.xlu0 %1947
    %v1949 = vmul.f32 %v1948, %v923
    %v1950 = vadd.f32 %v1949, 1e-05
    %v1951 = vrsqrt.pop %v1950
    %v1952 = vmul.f32 %v1944, %v1951
    %1954 = vrot.lane.b32.xlu0 %v1832, 112
    %v1955 = vpop.permute.xlu0 %1954
    %v1957 = vmul.f32 %v1952, %v1955
    %1958 = vrot.lane.b32.xlu0 %v1832, 96
    %v1959 = vpop.permute.xlu0 %1958
    %v1961 = vadd.f32 %v1957, %v1959
    %1964 = vrot.lane.b32.xlu0 %v1826, 112
    %v1965 = vpop.permute.xlu0 %1964
    %1966 = vrot.lane.b32.xlu0 %v1827, 112
    %v1967 = vpop.permute.xlu0 %1966
    %1970 = vrot.lane.b32.xlu0 %v1832, 80
    %v1971 = vpop.permute.xlu0 %1970
    %v1974 = vsel %vm28, %v1961, 0
    %1976 = vmatprep.subr.mxu0 0.0
    %1977 = vmatpush1.msra.mxu0 %v1965
    %1978 = vmatprep.subr.mxu0 0.0
    %1979 = vmatpush1.msra.mxu0 %v1967
    %1980 = vmatprep.subr.mxu0 0.0
    %1981 = vmatpush1.msra.mxu0 0.0
    %1982 = vmatprep.subr.mxu0 0.0
    %1983 = vmatpush1.msra.mxu0 0.0
    %1984 = vmatprep.subr.mxu0 0.0
    %1985 = vmatpush1.msra.mxu0 0.0
    %1986 = vmatprep.subr.mxu0 0.0
    %1987 = vmatpush1.msra.mxu0 0.0
    %1988 = vmatprep.subr.mxu0 0.0
    %1989 = vmatpush1.msra.mxu0 0.0
    %1990 = vmatprep.subr.mxu0 0.0
    %1991 = vmatpush1.msra.mxu0 0.0
    %1992 = vmatprep.subr.mxu0 0.0
    %1993 = vmatpush1.msra.mxu0 0.0
    %1994 = vmatprep.subr.mxu0 0.0
    %1995 = vmatpush1.msra.mxu0 0.0
    %1996 = vmatprep.subr.mxu0 0.0
    %1997 = vmatpush1.msra.mxu0 0.0
    %1998 = vmatprep.subr.mxu0 0.0
    %1999 = vmatpush1.msra.mxu0 0.0
    %2000 = vmatprep.subr.mxu0 0.0
    %2001 = vmatpush1.msra.mxu0 0.0
    %2002 = vmatprep.subr.mxu0 0.0
    %2003 = vmatpush1.msra.mxu0 0.0
    %2004 = vmatprep.subr.mxu0 0.0
    %2005 = vmatpush1.msra.mxu0 0.0
    %2006 = vmatprep.subr.mxu0 0.0
    %2007 = vmatpush1.msra.mxu0 0.0
    %2008 = vmatprep.subr.mxu0 0.0
    %2009 = vmatpush1.msra.mxu0 0.0
    %2010 = vmatprep.subr.mxu0 0.0
    %2011 = vmatpush1.msra.mxu0 0.0
    %2012 = vmatprep.subr.mxu0 0.0
    %2013 = vmatpush1.msra.mxu0 0.0
    %2014 = vmatprep.subr.mxu0 0.0
    %2015 = vmatpush1.msra.mxu0 0.0
    %2016 = vmatprep.subr.mxu0 0.0
    %2017 = vmatpush1.msra.mxu0 0.0
    %2018 = vmatprep.subr.mxu0 0.0
    %2019 = vmatpush1.msra.mxu0 0.0
    %2020 = vmatprep.subr.mxu0 0.0
    %2021 = vmatpush1.msra.mxu0 0.0
    %2022 = vmatprep.subr.mxu0 0.0
    %2023 = vmatpush1.msra.mxu0 0.0
    %2024 = vmatprep.subr.mxu0 0.0
    %2025 = vmatpush1.msra.mxu0 0.0
    %2026 = vmatprep.subr.mxu0 0.0
    %2027 = vmatpush1.msra.mxu0 0.0
    %2028 = vmatprep.subr.mxu0 0.0
    %2029 = vmatpush1.msra.mxu0 0.0
    %2030 = vmatprep.subr.mxu0 0.0
    %2031 = vmatpush1.msra.mxu0 0.0
    %2032 = vmatprep.subr.mxu0 0.0
    %2033 = vmatpush1.msra.mxu0 0.0
    %2034 = vmatprep.subr.mxu0 0.0
    %2035 = vmatpush1.msra.mxu0 0.0
    %2036 = vmatprep.subr.mxu0 0.0
    %2037 = vmatpush1.msra.mxu0 0.0
    %2038 = vmatprep.subr.mxu0 0.0
    %2039 = vmatpush1.msra.mxu0 0.0
    %2040 = vmatprep.mubr.f32.mxu0 0.0
    %2041 = vmatmul.mubr.f32.gmra.mrb[0].mxu0 %v1974
    %v2042 = vpop.f32.mrb[0].mxu0
    %v2043 = vadd.f32 %v1971, %v2042
    %v2044 = vpop.f32.mrb[0].mxu0
    %2045 = vdwg.mxu0
    %v2046 = vsel %vm102, %v2043, 0.0
    %2047 = vadd.xlane.f32.xlu0 %v2046
    %v2048 = vpop.xlane.xlu0 %2047
    %v2049 = vmul.f32 %v2048, %v923
    %v2050 = vsub.f32 %v2043, %v2049
    %v2051 = vmul.f32 %v2050, %v2050
    %v2052 = vsel %vm102, %v2051, 0.0
    %2053 = vadd.xlane.f32.xlu0 %v2052
    %v2054 = vpop.xlane.xlu0 %2053
    %v2055 = vmul.f32 %v2054, %v923
    %v2056 = vadd.f32 %v2055, 1e-05
    %v2057 = vrsqrt.pop %v2056
    %v2058 = vmul.f32 %v2050, %v2057
    %2059 = vrot.lane.b32.xlu0 %v1832, 64
    %v2060 = vpop.permute.xlu0 %2059
    %v2062 = vmul.f32 %v2058, %v2060
    %2063 = vrot.lane.b32.xlu0 %v1832, 48
    %v2064 = vpop.permute.xlu0 %2063
    %v2066 = vadd.f32 %v2062, %v2064
    %v2067 = vld [vmem:[#allocation2 + $0x20] sm:$0xff]
    %v2068 = vld [vmem:[#allocation2 + $0x28] sm:$0xff]
    %v2070 = vsel %vm28, %v2066, 0
    %2072 = vmatprep.subr.mxu0 0.0
    %2073 = vmatpush1.msra.mxu0 %v2067
    %2074 = vmatprep.subr.mxu0 0.0
    %2075 = vmatpush1.msra.mxu0 %v2068
    %2076 = vmatprep.subr.mxu0 0.0
    %2077 = vmatpush1.msra.mxu0 0.0
    %2078 = vmatprep.subr.mxu0 0.0
    %2079 = vmatpush1.msra.mxu0 0.0
    %2080 = vmatprep.subr.mxu0 0.0
    %2081 = vmatpush1.msra.mxu0 0.0
    %2082 = vmatprep.subr.mxu0 0.0
    %2083 = vmatpush1.msra.mxu0 0.0
    %2084 = vmatprep.subr.mxu0 0.0
    %2085 = vmatpush1.msra.mxu0 0.0
    %2086 = vmatprep.subr.mxu0 0.0
    %2087 = vmatpush1.msra.mxu0 0.0
    %2088 = vmatprep.subr.mxu0 0.0
    %2089 = vmatpush1.msra.mxu0 0.0
    %2090 = vmatprep.subr.mxu0 0.0
    %2091 = vmatpush1.msra.mxu0 0.0
    %2092 = vmatprep.subr.mxu0 0.0
    %2093 = vmatpush1.msra.mxu0 0.0
    %2094 = vmatprep.subr.mxu0 0.0
    %2095 = vmatpush1.msra.mxu0 0.0
    %2096 = vmatprep.subr.mxu0 0.0
    %2097 = vmatpush1.msra.mxu0 0.0
    %2098 = vmatprep.subr.mxu0 0.0
    %2099 = vmatpush1.msra.mxu0 0.0
    %2100 = vmatprep.subr.mxu0 0.0
    %2101 = vmatpush1.msra.mxu0 0.0
    %2102 = vmatprep.subr.mxu0 0.0
    %2103 = vmatpush1.msra.mxu0 0.0
    %2104 = vmatprep.subr.mxu0 0.0
    %2105 = vmatpush1.msra.mxu0 0.0
    %2106 = vmatprep.subr.mxu0 0.0
    %2107 = vmatpush1.msra.mxu0 0.0
    %2108 = vmatprep.subr.mxu0 0.0
    %2109 = vmatpush1.msra.mxu0 0.0
    %2110 = vmatprep.subr.mxu0 0.0
    %2111 = vmatpush1.msra.mxu0 0.0
    %2112 = vmatprep.subr.mxu0 0.0
    %2113 = vmatpush1.msra.mxu0 0.0
    %2114 = vmatprep.subr.mxu0 0.0
    %2115 = vmatpush1.msra.mxu0 0.0
    %2116 = vmatprep.subr.mxu0 0.0
    %2117 = vmatpush1.msra.mxu0 0.0
    %2118 = vmatprep.subr.mxu0 0.0
    %2119 = vmatpush1.msra.mxu0 0.0
    %2120 = vmatprep.subr.mxu0 0.0
    %2121 = vmatpush1.msra.mxu0 0.0
    %2122 = vmatprep.subr.mxu0 0.0
    %2123 = vmatpush1.msra.mxu0 0.0
    %2124 = vmatprep.subr.mxu0 0.0
    %2125 = vmatpush1.msra.mxu0 0.0
    %2126 = vmatprep.subr.mxu0 0.0
    %2127 = vmatpush1.msra.mxu0 0.0
    %2128 = vmatprep.subr.mxu0 0.0
    %2129 = vmatpush1.msra.mxu0 0.0
    %2130 = vmatprep.subr.mxu0 0.0
    %2131 = vmatpush1.msra.mxu0 0.0
    %2132 = vmatprep.subr.mxu0 0.0
    %2133 = vmatpush1.msra.mxu0 0.0
    %2134 = vmatprep.subr.mxu0 0.0
    %2135 = vmatpush1.msra.mxu0 0.0
    %2136 = vmatprep.mubr.f32.mxu0 0.0
    %2137 = vmatmul.mubr.f32.gmra.mrb[0].mxu0 %v2070
    %v2138 = vpop.f32.mrb[0].mxu0
    %v2139 = vadd.f32 0.0, %v2138
    %v2140 = vpop.f32.mrb[0].mxu0
    %2141 = vdwg.mxu0
    %v2142 = vsel %vm102, %v2139, -inf
    %2143 = vmax.xlane.f32.xlu0 %v2142
    %v2144 = vpop.xlane.xlu0 %2143
    %v2145 = vsel %vm102, %v2139, inf
    %2146 = vmin.xlane.f32.xlu0 %v2145
    %v2147 = vpop.xlane.xlu0 %2146
    %v2148 = vsel %vm109, %v2139, -inf
    %2149 = vmax.xlane.f32.xlu0 %v2148
    %v2150 = vpop.xlane.xlu0 %2149
    %v2151 = vsel %vm109, %v2139, inf
    %2152 = vmin.xlane.f32.xlu0 %v2151
    %v2153 = vpop.xlane.xlu0 %2152
    %v2154 = vmul.f32 %v2144, %v2150
    %v2155 = vmul.f32 %v2144, %v2153
    %v2156 = vmax.f32 %v2154, %v2155
    %v2157 = vmul.f32 %v2147, %v2150
    %v2158 = vmul.f32 %v2147, %v2153
    %v2159 = vmax.f32 %v2157, %v2158
    %v2160 = vmax.f32 %v2156, %v2159
    %v2161 = vlaneseq
    %v2162 = vshrl.u32 %v2161, 7
    %v2163 = vsub.s32 0, %v2162
    %v2164 = vrot.slane %v2139, %v2163
    %2166 = vbcast.lane.b32.xlu0 %v2164, 256
    %v2167 = vpop.permute.xlu0 %2166
    %s2169 = sor.u32 256, 8
    %2170 = vbcast.lane.b32.xlu0 %v2164, %s2169
    %v2171 = vpop.permute.xlu0 %2170
    %v2172 = vlaneseq
    %v2173 = vshrl.u32 %v2172, 7
    %v2174 = vsub.s32 1, %v2173
    %v2175 = vrot.slane %v2139, %v2174
    %2177 = vbcast.lane.b32.xlu0 %v2175, 256
    %v2178 = vpop.permute.xlu0 %2177
    %s2180 = sor.u32 256, 8
    %2181 = vbcast.lane.b32.xlu0 %v2175, %s2180
    %v2182 = vpop.permute.xlu0 %2181
    %v2185 = vunpack.c.l.s4 1966171168
    %v2186 = vunpack.c.0.s8 %v2185
    %v2187 = vlaneseq
    %v2188 = vshrl.u32 %v2187, 7
    %v2189 = vsub.s32 %v2186, %v2188
    %v2190 = vrot.slane %v2139, %v2189
    %v2191 = vcombine.high %v2190, %v2190
    %v2193 = vunpack.c.l.s4 1966171168
    %v2194 = vunpack.c.0.s8 %v2193
    %v2195 = vlaneseq
    %v2196 = vshrl.u32 %v2195, 7
    %v2197 = vsub.s32 %v2194, %v2196
    %v2198 = vrot.slane %v2190, %v2197
    %v2200 = vunpack.c.l.s4 1966171168
    %v2201 = vunpack.c.0.s8 %v2200
    %v2202 = vlaneseq
    %v2203 = vshrl.u32 %v2202, 7
    %v2204 = vsub.s32 %v2201, %v2203
    %v2205 = vrot.slane %v2191, %v2204
    %v2206 = vlaneseq
    %v2207 = vshrl.u32 %v2206, 7
    %v2208 = vsub.s32 0, %v2207
    %v2209 = vrot.slane %v2198, %v2208
    %v2210 = vlaneseq
    %v2211 = vshrl.u32 %v2210, 7
    %v2212 = vsub.s32 0, %v2211
    %v2213 = vrot.slane %v2205, %v2212
    %v2216 = vmul.f32 %v2167, %v2209
    %v2217 = vmul.f32 %v2171, %v2209
    %v2218 = vmul.f32 %v2178, %v2213
    %v2219 = vmul.f32 %v2182, %v2213
    %v2221 = vlaneseq
    %v2222 = vshrl.u32 %v2221, 7
    %v2223 = vsub.s32 0, %v2222
    %v2224 = vrot.slane %v2160, %v2223
    %v2225 = vlaneseq
    %v2226 = vshrl.u32 %v2225, 7
    %v2227 = vsub.s32 1, %v2226
    %v2228 = vrot.slane %v2160, %v2227
    %v2231 = vsub.f32 %v2216, %v2224
    %v2232 = vsub.f32 %v2217, %v2224
    %v2233 = vsub.f32 %v2218, %v2228
    %v2234 = vsub.f32 %v2219, %v2228
    %v2235 = vmul.f32 %v2231, 1.442695
    %v2236 = vpow.pop %v2235
    %v2237 = vmul.f32 %v2232, 1.442695
    %v2238 = vpow.pop %v2237
    %v2239 = vmul.f32 %v2233, 1.442695
    %v2240 = vpow.pop %v2239
    %v2241 = vmul.f32 %v2234, 1.442695
    %v2242 = vpow.pop %v2241
    %2247 = vrot.lane.b32.xlu0 %v2236, 112
    %v2248 = vpop.permute.xlu0 %2247
    %2249 = vrot.lane.b32.xlu0 %v2238, 112
    %v2250 = vpop.permute.xlu0 %2249
    %2251 = vrot.lane.b32.xlu0 %v2240, 112
    %v2252 = vpop.permute.xlu0 %2251
    %2253 = vrot.lane.b32.xlu0 %v2242, 112
    %v2254 = vpop.permute.xlu0 %2253
    %v2259 = vsel %vm28, %v2248, 0.0
    %2260 = vadd.xlane.f32.xlu0 %v2259
    %v2261 = vpop.xlane.xlu0 %2260
    %v2262 = vsel %vm28, %v2250, 0.0
    %2263 = vadd.xlane.f32.xlu0 %v2262
    %v2264 = vpop.xlane.xlu0 %2263
    %v2265 = vsel %vm28, %v2252, 0.0
    %2266 = vadd.xlane.f32.xlu0 %v2265
    %v2267 = vpop.xlane.xlu0 %2266
    %v2268 = vsel %vm28, %v2254, 0.0
    %2269 = vadd.xlane.f32.xlu0 %v2268
    %v2270 = vpop.xlane.xlu0 %2269
    %v2275 = vlaneseq
    %v2276 = vshrl.u32 %v2275, 7
    %v2277 = vsub.s32 %v238, %v2276
    %v2278 = vrot.slane %v2261, %v2277
    %v2279 = vlaneseq
    %v2280 = vshrl.u32 %v2279, 7
    %v2281 = vsub.s32 %v243, %v2280
    %v2282 = vrot.slane %v2264, %v2281
    %v2283 = vsel %vm248, %v2282, %v2278
    %v2284 = vlaneseq
    %v2285 = vshrl.u32 %v2284, 7
    %v2286 = vsub.s32 %v238, %v2285
    %v2287 = vrot.slane %v2267, %v2286
    %v2288 = vlaneseq
    %v2289 = vshrl.u32 %v2288, 7
    %v2290 = vsub.s32 %v243, %v2289
    %v2291 = vrot.slane %v2270, %v2290
    %v2292 = vsel %vm248, %v2291, %v2287
    %v2293 = vsel %vm259, %v2292, %v2283
    %v2295 = vsel %vm102, %v2293, 0.0
    %2296 = vadd.xlane.f32.xlu0 %v2295
    %v2297 = vpop.xlane.xlu0 %2296
    %2298 = vrot.lane.b32.xlu0 %v2209, 112
    %v2299 = vpop.permute.xlu0 %2298
    %2300 = vrot.lane.b32.xlu0 %v2213, 112
    %v2301 = vpop.permute.xlu0 %2300
    %v2304 = vmul.f32 %v2236, %v2299
    %v2305 = vmul.f32 %v2238, %v2299
    %v2306 = vmul.f32 %v2240, %v2301
    %v2307 = vmul.f32 %v2242, %v2301
    %2312 = vrot.lane.b32.xlu0 %v2304, 112
    %v2313 = vpop.permute.xlu0 %2312
    %2314 = vrot.lane.b32.xlu0 %v2305, 112
    %v2315 = vpop.permute.xlu0 %2314
    %2316 = vrot.lane.b32.xlu0 %v2306, 112
    %v2317 = vpop.permute.xlu0 %2316
    %2318 = vrot.lane.b32.xlu0 %v2307, 112
    %v2319 = vpop.permute.xlu0 %2318
    %v2324 = vsel %vm28, %v2313, 0.0
    %2325 = vadd.xlane.f32.xlu0 %v2324
    %v2326 = vpop.xlane.xlu0 %2325
    %v2327 = vsel %vm28, %v2315, 0.0
    %2328 = vadd.xlane.f32.xlu0 %v2327
    %v2329 = vpop.xlane.xlu0 %2328
    %v2330 = vsel %vm28, %v2317, 0.0
    %2331 = vadd.xlane.f32.xlu0 %v2330
    %v2332 = vpop.xlane.xlu0 %2331
    %v2333 = vsel %vm28, %v2319, 0.0
    %2334 = vadd.xlane.f32.xlu0 %v2333
    %v2335 = vpop.xlane.xlu0 %2334
    %v2336 = vrcp.pop %v2297
    %v2338 = vlaneseq
    %v2339 = vshrl.u32 %v2338, 7
    %v2340 = vsub.s32 0, %v2339
    %v2341 = vrot.slane %v2336, %v2340
    %v2342 = vlaneseq
    %v2343 = vshrl.u32 %v2342, 7
    %v2344 = vsub.s32 1, %v2343
    %v2345 = vrot.slane %v2336, %v2344
    %v2348 = vmul.f32 %v2326, %v2341
    %v2349 = vmul.f32 %v2329, %v2341
    %v2350 = vmul.f32 %v2332, %v2345
    %v2351 = vmul.f32 %v2335, %v2345
    %v2352 = vmul.f32 %v2348, 0.5
    %v2353 = vmul.f32 %v2349, 0.5
    %v2354 = vmul.f32 %v2350, 0.5
    %v2355 = vmul.f32 %v2351, 0.5
    %v2356 = vtanh.pop %v2352
    %v2357 = vtanh.pop %v2353
    %v2358 = vtanh.pop %v2354
    %v2359 = vtanh.pop %v2355
    %v2360 = vmul.f32 %v2356, 0.5
    %v2361 = vmul.f32 %v2357, 0.5
    %v2362 = vmul.f32 %v2358, 0.5
    %v2363 = vmul.f32 %v2359, 0.5
    %v2364 = vadd.f32 %v2360, 0.5
    %v2365 = vadd.f32 %v2361, 0.5
    %v2366 = vadd.f32 %v2362, 0.5
    %v2367 = vadd.f32 %v2363, 0.5
    %v2368 = vld [vmem:[#allocation2 + $0x65] sm:$0x1]
    %v2369 = vlaneseq
    %v2370 = vshrl.u32 %v2369, 7
    %v2371 = vsub.s32 0, %v2370
    %v2372 = vrot.slane %v2368, %v2371
    %2375 = vbcast.lane.b32.xlu0 %v2372, 256
    %v2376 = vpop.permute.xlu0 %2375
    %s2378 = sor.u32 256, 8
    %2379 = vbcast.lane.b32.xlu0 %v2372, %s2378
    %v2380 = vpop.permute.xlu0 %2379
    %v2383 = vmul.f32 %v2364, %v2376
    %v2384 = vmul.f32 %v2365, %v2380
    %v2385 = vmul.f32 %v2366, %v2376
    %v2386 = vmul.f32 %v2367, %v2380
    %s2388 = sor.u32 256, 32
    %2389 = vbcast.lane.b32.xlu0 %v2372, %s2388
    %v2390 = vpop.permute.xlu0 %2389
    %s2392 = sor.u32 256, 40
    %2393 = vbcast.lane.b32.xlu0 %v2372, %s2392
    %v2394 = vpop.permute.xlu0 %2393
    %v2397 = vadd.f32 %v2383, %v2390
    %v2398 = vadd.f32 %v2384, %v2394
    %v2399 = vadd.f32 %v2385, %v2390
    %v2400 = vadd.f32 %v2386, %v2394
    %v2401 = vmul.f32 %v2348, %v2397
    %v2402 = vmul.f32 %v2349, %v2398
    %v2403 = vmul.f32 %v2350, %v2399
    %v2404 = vmul.f32 %v2351, %v2400
    %v2405 = vand.u32 2147483647, %v2348
    %vm2406 = vcmp.le.f32.partialorder %v2405, 0.7853982
    %vm2407 = vcmp.lt.s32.totalorder %v2348, 0
    %v2408 = vand.u32 %v2348, 2139095040
    %v2409 = vshrl.u32 %v2408, 23
    %v2410 = vsub.s32 %v2409, 127
    %v2411 = vand.u32 2147483647, %v2348
    %v2412 = vand.u32 %v2411, 8388607
    %v2413 = vor.u32 %v2412, 8388608
    %v2414 = vsub.s32 0, %v2413
    %v2415 = vadd.s32 %v2410, 1
    %vm2416 = vcmp.gt.s32.totalorder %v2415, 0
    %v2417 = vsel %vm2416, %v2415, 0
    %v2418 = vshrl.u32 %v2417, 5
    %v2419 = vand.u32 %v2417, 31
    %v2420 = vsub.s32 32, %v2419
    %v2421 = vshrl.u32 683565275, %v2420
    %v2422 = vshll.u32 683565275, %v2419
    %v2423 = vshrl.u32 2475754826, %v2420
    %v2424 = vor.u32 %v2422, %v2423
    %v2425 = vshll.u32 2475754826, %v2419
    %v2426 = vshrl.u32 2131351028, %v2420
    %v2427 = vor.u32 %v2425, %v2426
    %v2428 = vshll.u32 2131351028, %v2419
    %v2429 = vshrl.u32 2102212464, %v2420
    %v2430 = vor.u32 %v2428, %v2429
    %v2431 = vshll.u32 2102212464, %v2419
    %v2432 = vshrl.u32 920167782, %v2420
    %v2433 = vor.u32 %v2431, %v2432
    %v2434 = vshll.u32 920167782, %v2419
    %v2435 = vshrl.u32 1326507024, %v2420
    %v2436 = vor.u32 %v2434, %v2435
    %vm2437 = vcmp.lt.s32.totalorder %v2418, 1
    %vm2438 = vcmp.lt.s32.totalorder %v2418, 2
    %vm2439 = vcmp.lt.s32.totalorder %v2418, 3
    %vm2440 = vcmp.lt.s32.totalorder %v2418, 4
    %v2441 = vsel %vm2437, %v2421, %v2424
    %v2442 = vsel %vm2440, %v2430, 2102212464
    %v2443 = vsel %vm2439, %v2427, %v2442
    %v2444 = vsel %vm2438, %v2441, %v2443
    %v2445 = vsel %vm2437, %v2424, %v2427
    %v2446 = vsel %vm2440, %v2433, 920167782
    %v2447 = vsel %vm2439, %v2430, %v2446
    %v2448 = vsel %vm2438, %v2445, %v2447
    %v2449 = vsel %vm2437, %v2427, %v2430
    %v2450 = vsel %vm2440, %v2436, 1326507024
    %v2451 = vsel %vm2439, %v2433, %v2450
    %v2452 = vsel %vm2438, %v2449, %v2451
    %v2453 = vshll.u32 %v2413, 8
    %v2454 = vmul.u32.u64.compose %v2453, %v2452
    %v2455 = vextract.low.u32 %v2454
    %v2456 = vextract.high.u32 %v2454
    %v2457 = vmul.u32.u64.compose %v2453, %v2448
    %v2458 = vextract.low.u32 %v2457
    %v2459 = vextract.high.u32 %v2457
    %v2460 = vmul.u32 %v2453, %v2444
    %v2461 = vadd.s32 %v2456, %v2458
    %vm2462 = vc.u32 %v2456, %v2458
    %v2463 = vadd.s32 %v2459, 1
    %v2464 = vsel %vm2462, %v2463, %v2459
    %v2465 = vadd.s32 %v2460, %v2464
    %v2466 = vadd.s32 %v2465, 536870912
    %v2467 = vshrl.u32 %v2466, 30
    %v2468 = vshll.u32 %v2467, 30
    %v2469 = vsub.s32 %v2465, %v2468
    %vm2470 = vcmp.lt.s32.totalorder %v2469, 0
    %v2471 = vsub.s32 0, %v2469
    %v2472 = vsel %vm2470, %v2471, %v2469
    %v2473 = vclz %v2472
    %v2474 = vsub.s32 %v2473, 2
    %vm2475 = vcmp.gt.s32.totalorder 0, %v2474
    %v2476 = vsel %vm2475, 0, %v2474
    %v2477 = vsub.s32 32, %v2476
    %v2478 = vshll.u32 %v2469, %v2476
    %v2479 = vshrl.u32 %v2461, %v2477
    %v2480 = vor.u32 %v2478, %v2479
    %v2481 = vsub.s32 4294967266, %v2476
    %v2482 = vadd.s32 %v2481, 127
    %v2483 = vshll.u32 %v2482, 23
    %v2484 = vor.u32 4788187, %v2483
    %v2485 = vand.u32 2147483647, %v2484
    %v2487 = vcvt.s32.f32 %v2480
    %v2488 = vmul.f32 %v2487, %v2485
    %v2489 = vxor.u32 %v2488, 2147483648
    %v2490 = vsel %vm2407, %v2489, %v2488
    %v2491 = vsub.s32 4, %v2467
    %v2492 = vsel %vm2407, %v2491, %v2467
    %v2493 = vsel %vm2406, %v2348, %v2490
    %v2494 = vsel %vm2406, 0, %v2492
    %v2495 = vcosq.f32.pop %v2493
    %v2496 = vsinq.f32.pop %v2493
    %vm2497 = vweird.f32 %v2348
    %v2498 = vadd.s32 %v2494, 3
    %v2499 = vand.u32 %v2498, 3
    %vm2500 = vcmp.lt.s32.totalorder %v2499, 2
    %vm2501 = vcmp.eq.s32.totalorder %v2499, 0
    %v2502 = vxor.u32 %v2496, 2147483648
    %v2503 = vsel %vm2501, %v2495, %v2502
    %vm2504 = vcmp.eq.s32.totalorder %v2499, 2
    %v2505 = vxor.u32 %v2495, 2147483648
    %v2506 = vsel %vm2504, %v2505, %v2496
    %v2507 = vsel %vm2500, %v2503, %v2506
    %v2508 = vsel %vm2497, nan, %v2507
    %v2509 = vand.u32 2147483647, %v2349
    %vm2510 = vcmp.le.f32.partialorder %v2509, 0.7853982
    %vm2511 = vcmp.lt.s32.totalorder %v2349, 0
    %v2512 = vand.u32 %v2349, 2139095040
    %v2513 = vshrl.u32 %v2512, 23
    %v2514 = vsub.s32 %v2513, 127
    %v2515 = vand.u32 2147483647, %v2349
    %v2516 = vand.u32 %v2515, 8388607
    %v2517 = vor.u32 %v2516, 8388608
    %v2518 = vsub.s32 0, %v2517
    %v2519 = vadd.s32 %v2514, 1
    %vm2520 = vcmp.gt.s32.totalorder %v2519, 0
    %v2521 = vsel %vm2520, %v2519, 0
    %v2522 = vshrl.u32 %v2521, 5
    %v2523 = vand.u32 %v2521, 31
    %v2524 = vsub.s32 32, %v2523
    %v2525 = vshrl.u32 683565275, %v2524
    %v2526 = vshll.u32 683565275, %v2523
    %v2527 = vshrl.u32 2475754826, %v2524
    %v2528 = vor.u32 %v2526, %v2527
    %v2529 = vshll.u32 2475754826, %v2523
    %v2530 = vshrl.u32 2131351028, %v2524
    %v2531 = vor.u32 %v2529, %v2530
    %v2532 = vshll.u32 2131351028, %v2523
    %v2533 = vshrl.u32 2102212464, %v2524
    %v2534 = vor.u32 %v2532, %v2533
    %v2535 = vshll.u32 2102212464, %v2523
    %v2536 = vshrl.u32 920167782, %v2524
    %v2537 = vor.u32 %v2535, %v2536
    %v2538 = vshll.u32 920167782, %v2523
    %v2539 = vshrl.u32 1326507024, %v2524
    %v2540 = vor.u32 %v2538, %v2539
    %vm2541 = vcmp.lt.s32.totalorder %v2522, 1
    %vm2542 = vcmp.lt.s32.totalorder %v2522, 2
    %vm2543 = vcmp.lt.s32.totalorder %v2522, 3
    %vm2544 = vcmp.lt.s32.totalorder %v2522, 4
    %v2545 = vsel %vm2541, %v2525, %v2528
    %v2546 = vsel %vm2544, %v2534, 2102212464
    %v2547 = vsel %vm2543, %v2531, %v2546
    %v2548 = vsel %vm2542, %v2545, %v2547
    %v2549 = vsel %vm2541, %v2528, %v2531
    %v2550 = vsel %vm2544, %v2537, 920167782
    %v2551 = vsel %vm2543, %v2534, %v2550
    %v2552 = vsel %vm2542, %v2549, %v2551
    %v2553 = vsel %vm2541, %v2531, %v2534
    %v2554 = vsel %vm2544, %v2540, 1326507024
    %v2555 = vsel %vm2543, %v2537, %v2554
    %v2556 = vsel %vm2542, %v2553, %v2555
    %v2557 = vshll.u32 %v2517, 8
    %v2558 = vmul.u32.u64.compose %v2557, %v2556
    %v2559 = vextract.low.u32 %v2558
    %v2560 = vextract.high.u32 %v2558
    %v2561 = vmul.u32.u64.compose %v2557, %v2552
    %v2562 = vextract.low.u32 %v2561
    %v2563 = vextract.high.u32 %v2561
    %v2564 = vmul.u32 %v2557, %v2548
    %v2565 = vadd.s32 %v2560, %v2562
    %vm2566 = vc.u32 %v2560, %v2562
    %v2567 = vadd.s32 %v2563, 1
    %v2568 = vsel %vm2566, %v2567, %v2563
    %v2569 = vadd.s32 %v2564, %v2568
    %v2570 = vadd.s32 %v2569, 536870912
    %v2571 = vshrl.u32 %v2570, 30
    %v2572 = vshll.u32 %v2571, 30
    %v2573 = vsub.s32 %v2569, %v2572
    %vm2574 = vcmp.lt.s32.totalorder %v2573, 0
    %v2575 = vsub.s32 0, %v2573
    %v2576 = vsel %vm2574, %v2575, %v2573
    %v2577 = vclz %v2576
    %v2578 = vsub.s32 %v2577, 2
    %vm2579 = vcmp.gt.s32.totalorder 0, %v2578
    %v2580 = vsel %vm2579, 0, %v2578
    %v2581 = vsub.s32 32, %v2580
    %v2582 = vshll.u32 %v2573, %v2580
    %v2583 = vshrl.u32 %v2565, %v2581
    %v2584 = vor.u32 %v2582, %v2583
    %v2585 = vsub.s32 4294967266, %v2580
    %v2586 = vadd.s32 %v2585, 127
    %v2587 = vshll.u32 %v2586, 23
    %v2588 = vor.u32 4788187, %v2587
    %v2589 = vand.u32 2147483647, %v2588
    %v2591 = vcvt.s32.f32 %v2584
    %v2592 = vmul.f32 %v2591, %v2589
    %v2593 = vxor.u32 %v2592, 2147483648
    %v2594 = vsel %vm2511, %v2593, %v2592
    %v2595 = vsub.s32 4, %v2571
    %v2596 = vsel %vm2511, %v2595, %v2571
    %v2597 = vsel %vm2510, %v2349, %v2594
    %v2598 = vsel %vm2510, 0, %v2596
    %v2599 = vcosq.f32.pop %v2597
    %v2600 = vsinq.f32.pop %v2597
    %vm2601 = vweird.f32 %v2349
    %v2602 = vadd.s32 %v2598, 3
    %v2603 = vand.u32 %v2602, 3
    %vm2604 = vcmp.lt.s32.totalorder %v2603, 2
    %vm2605 = vcmp.eq.s32.totalorder %v2603, 0
    %v2606 = vxor.u32 %v2600, 2147483648
    %v2607 = vsel %vm2605, %v2599, %v2606
    %vm2608 = vcmp.eq.s32.totalorder %v2603, 2
    %v2609 = vxor.u32 %v2599, 2147483648
    %v2610 = vsel %vm2608, %v2609, %v2600
    %v2611 = vsel %vm2604, %v2607, %v2610
    %v2612 = vsel %vm2601, nan, %v2611
    %v2613 = vand.u32 2147483647, %v2350
    %vm2614 = vcmp.le.f32.partialorder %v2613, 0.7853982
    %vm2615 = vcmp.lt.s32.totalorder %v2350, 0
    %v2616 = vand.u32 %v2350, 2139095040
    %v2617 = vshrl.u32 %v2616, 23
    %v2618 = vsub.s32 %v2617, 127
    %v2619 = vand.u32 2147483647, %v2350
    %v2620 = vand.u32 %v2619, 8388607
    %v2621 = vor.u32 %v2620, 8388608
    %v2622 = vsub.s32 0, %v2621
    %v2623 = vadd.s32 %v2618, 1
    %vm2624 = vcmp.gt.s32.totalorder %v2623, 0
    %v2625 = vsel %vm2624, %v2623, 0
    %v2626 = vshrl.u32 %v2625, 5
    %v2627 = vand.u32 %v2625, 31
    %v2628 = vsub.s32 32, %v2627
    %v2629 = vshrl.u32 683565275, %v2628
    %v2630 = vshll.u32 683565275, %v2627
    %v2631 = vshrl.u32 2475754826, %v2628
    %v2632 = vor.u32 %v2630, %v2631
    %v2633 = vshll.u32 2475754826, %v2627
    %v2634 = vshrl.u32 2131351028, %v2628
    %v2635 = vor.u32 %v2633, %v2634
    %v2636 = vshll.u32 2131351028, %v2627
    %v2637 = vshrl.u32 2102212464, %v2628
    %v2638 = vor.u32 %v2636, %v2637
    %v2639 = vshll.u32 2102212464, %v2627
    %v2640 = vshrl.u32 920167782, %v2628
    %v2641 = vor.u32 %v2639, %v2640
    %v2642 = vshll.u32 920167782, %v2627
    %v2643 = vshrl.u32 1326507024, %v2628
    %v2644 = vor.u32 %v2642, %v2643
    %vm2645 = vcmp.lt.s32.totalorder %v2626, 1
    %vm2646 = vcmp.lt.s32.totalorder %v2626, 2
    %vm2647 = vcmp.lt.s32.totalorder %v2626, 3
    %vm2648 = vcmp.lt.s32.totalorder %v2626, 4
    %v2649 = vsel %vm2645, %v2629, %v2632
    %v2650 = vsel %vm2648, %v2638, 2102212464
    %v2651 = vsel %vm2647, %v2635, %v2650
    %v2652 = vsel %vm2646, %v2649, %v2651
    %v2653 = vsel %vm2645, %v2632, %v2635
    %v2654 = vsel %vm2648, %v2641, 920167782
    %v2655 = vsel %vm2647, %v2638, %v2654
    %v2656 = vsel %vm2646, %v2653, %v2655
    %v2657 = vsel %vm2645, %v2635, %v2638
    %v2658 = vsel %vm2648, %v2644, 1326507024
    %v2659 = vsel %vm2647, %v2641, %v2658
    %v2660 = vsel %vm2646, %v2657, %v2659
    %v2661 = vshll.u32 %v2621, 8
    %v2662 = vmul.u32.u64.compose %v2661, %v2660
    %v2663 = vextract.low.u32 %v2662
    %v2664 = vextract.high.u32 %v2662
    %v2665 = vmul.u32.u64.compose %v2661, %v2656
    %v2666 = vextract.low.u32 %v2665
    %v2667 = vextract.high.u32 %v2665
    %v2668 = vmul.u32 %v2661, %v2652
    %v2669 = vadd.s32 %v2664, %v2666
    %vm2670 = vc.u32 %v2664, %v2666
    %v2671 = vadd.s32 %v2667, 1
    %v2672 = vsel %vm2670, %v2671, %v2667
    %v2673 = vadd.s32 %v2668, %v2672
    %v2674 = vadd.s32 %v2673, 536870912
    %v2675 = vshrl.u32 %v2674, 30
    %v2676 = vshll.u32 %v2675, 30
    %v2677 = vsub.s32 %v2673, %v2676
    %vm2678 = vcmp.lt.s32.totalorder %v2677, 0
    %v2679 = vsub.s32 0, %v2677
    %v2680 = vsel %vm2678, %v2679, %v2677
    %v2681 = vclz %v2680
    %v2682 = vsub.s32 %v2681, 2
    %vm2683 = vcmp.gt.s32.totalorder 0, %v2682
    %v2684 = vsel %vm2683, 0, %v2682
    %v2685 = vsub.s32 32, %v2684
    %v2686 = vshll.u32 %v2677, %v2684
    %v2687 = vshrl.u32 %v2669, %v2685
    %v2688 = vor.u32 %v2686, %v2687
    %v2689 = vsub.s32 4294967266, %v2684
    %v2690 = vadd.s32 %v2689, 127
    %v2691 = vshll.u32 %v2690, 23
    %v2692 = vor.u32 4788187, %v2691
    %v2693 = vand.u32 2147483647, %v2692
    %v2695 = vcvt.s32.f32 %v2688
    %v2696 = vmul.f32 %v2695, %v2693
    %v2697 = vxor.u32 %v2696, 2147483648
    %v2698 = vsel %vm2615, %v2697, %v2696
    %v2699 = vsub.s32 4, %v2675
    %v2700 = vsel %vm2615, %v2699, %v2675
    %v2701 = vsel %vm2614, %v2350, %v2698
    %v2702 = vsel %vm2614, 0, %v2700
    %v2703 = vcosq.f32.pop %v2701
    %v2704 = vsinq.f32.pop %v2701
    %vm2705 = vweird.f32 %v2350
    %v2706 = vadd.s32 %v2702, 3
    %v2707 = vand.u32 %v2706, 3
    %vm2708 = vcmp.lt.s32.totalorder %v2707, 2
    %vm2709 = vcmp.eq.s32.totalorder %v2707, 0
    %v2710 = vxor.u32 %v2704, 2147483648
    %v2711 = vsel %vm2709, %v2703, %v2710
    %vm2712 = vcmp.eq.s32.totalorder %v2707, 2
    %v2713 = vxor.u32 %v2703, 2147483648
    %v2714 = vsel %vm2712, %v2713, %v2704
    %v2715 = vsel %vm2708, %v2711, %v2714
    %v2716 = vsel %vm2705, nan, %v2715
    %v2717 = vand.u32 2147483647, %v2351
    %vm2718 = vcmp.le.f32.partialorder %v2717, 0.7853982
    %vm2719 = vcmp.lt.s32.totalorder %v2351, 0
    %v2720 = vand.u32 %v2351, 2139095040
    %v2721 = vshrl.u32 %v2720, 23
    %v2722 = vsub.s32 %v2721, 127
    %v2723 = vand.u32 2147483647, %v2351
    %v2724 = vand.u32 %v2723, 8388607
    %v2725 = vor.u32 %v2724, 8388608
    %v2726 = vsub.s32 0, %v2725
    %v2727 = vadd.s32 %v2722, 1
    %vm2728 = vcmp.gt.s32.totalorder %v2727, 0
    %v2729 = vsel %vm2728, %v2727, 0
    %v2730 = vshrl.u32 %v2729, 5
    %v2731 = vand.u32 %v2729, 31
    %v2732 = vsub.s32 32, %v2731
    %v2733 = vshrl.u32 683565275, %v2732
    %v2734 = vshll.u32 683565275, %v2731
    %v2735 = vshrl.u32 2475754826, %v2732
    %v2736 = vor.u32 %v2734, %v2735
    %v2737 = vshll.u32 2475754826, %v2731
    %v2738 = vshrl.u32 2131351028, %v2732
    %v2739 = vor.u32 %v2737, %v2738
    %v2740 = vshll.u32 2131351028, %v2731
    %v2741 = vshrl.u32 2102212464, %v2732
    %v2742 = vor.u32 %v2740, %v2741
    %v2743 = vshll.u32 2102212464, %v2731
    %v2744 = vshrl.u32 920167782, %v2732
    %v2745 = vor.u32 %v2743, %v2744
    %v2746 = vshll.u32 920167782, %v2731
    %v2747 = vshrl.u32 1326507024, %v2732
    %v2748 = vor.u32 %v2746, %v2747
    %vm2749 = vcmp.lt.s32.totalorder %v2730, 1
    %vm2750 = vcmp.lt.s32.totalorder %v2730, 2
    %vm2751 = vcmp.lt.s32.totalorder %v2730, 3
    %vm2752 = vcmp.lt.s32.totalorder %v2730, 4
    %v2753 = vsel %vm2749, %v2733, %v2736
    %v2754 = vsel %vm2752, %v2742, 2102212464
    %v2755 = vsel %vm2751, %v2739, %v2754
    %v2756 = vsel %vm2750, %v2753, %v2755
    %v2757 = vsel %vm2749, %v2736, %v2739
    %v2758 = vsel %vm2752, %v2745, 920167782
    %v2759 = vsel %vm2751, %v2742, %v2758
    %v2760 = vsel %vm2750, %v2757, %v2759
    %v2761 = vsel %vm2749, %v2739, %v2742
    %v2762 = vsel %vm2752, %v2748, 1326507024
    %v2763 = vsel %vm2751, %v2745, %v2762
    %v2764 = vsel %vm2750, %v2761, %v2763
    %v2765 = vshll.u32 %v2725, 8
    %v2766 = vmul.u32.u64.compose %v2765, %v2764
    %v2767 = vextract.low.u32 %v2766
    %v2768 = vextract.high.u32 %v2766
    %v2769 = vmul.u32.u64.compose %v2765, %v2760
    %v2770 = vextract.low.u32 %v2769
    %v2771 = vextract.high.u32 %v2769
    %v2772 = vmul.u32 %v2765, %v2756
    %v2773 = vadd.s32 %v2768, %v2770
    %vm2774 = vc.u32 %v2768, %v2770
    %v2775 = vadd.s32 %v2771, 1
    %v2776 = vsel %vm2774, %v2775, %v2771
    %v2777 = vadd.s32 %v2772, %v2776
    %v2778 = vadd.s32 %v2777, 536870912
    %v2779 = vshrl.u32 %v2778, 30
    %v2780 = vshll.u32 %v2779, 30
    %v2781 = vsub.s32 %v2777, %v2780
    %vm2782 = vcmp.lt.s32.totalorder %v2781, 0
    %v2783 = vsub.s32 0, %v2781
    %v2784 = vsel %vm2782, %v2783, %v2781
    %v2785 = vclz %v2784
    %v2786 = vsub.s32 %v2785, 2
    %vm2787 = vcmp.gt.s32.totalorder 0, %v2786
    %v2788 = vsel %vm2787, 0, %v2786
    %v2789 = vsub.s32 32, %v2788
    %v2790 = vshll.u32 %v2781, %v2788
    %v2791 = vshrl.u32 %v2773, %v2789
    %v2792 = vor.u32 %v2790, %v2791
    %v2793 = vsub.s32 4294967266, %v2788
    %v2794 = vadd.s32 %v2793, 127
    %v2795 = vshll.u32 %v2794, 23
    %v2796 = vor.u32 4788187, %v2795
    %v2797 = vand.u32 2147483647, %v2796
    %v2799 = vcvt.s32.f32 %v2792
    %v2800 = vmul.f32 %v2799, %v2797
    %v2801 = vxor.u32 %v2800, 2147483648
    %v2802 = vsel %vm2719, %v2801, %v2800
    %v2803 = vsub.s32 4, %v2779
    %v2804 = vsel %vm2719, %v2803, %v2779
    %v2805 = vsel %vm2718, %v2351, %v2802
    %v2806 = vsel %vm2718, 0, %v2804
    %v2807 = vcosq.f32.pop %v2805
    %v2808 = vsinq.f32.pop %v2805
    %vm2809 = vweird.f32 %v2351
    %v2810 = vadd.s32 %v2806, 3
    %v2811 = vand.u32 %v2810, 3
    %vm2812 = vcmp.lt.s32.totalorder %v2811, 2
    %vm2813 = vcmp.eq.s32.totalorder %v2811, 0
    %v2814 = vxor.u32 %v2808, 2147483648
    %v2815 = vsel %vm2813, %v2807, %v2814
    %vm2816 = vcmp.eq.s32.totalorder %v2811, 2
    %v2817 = vxor.u32 %v2807, 2147483648
    %v2818 = vsel %vm2816, %v2817, %v2808
    %v2819 = vsel %vm2812, %v2815, %v2818
    %v2820 = vsel %vm2809, nan, %v2819
    %s2822 = sor.u32 256, 16
    %2823 = vbcast.lane.b32.xlu0 %v2372, %s2822
    %v2824 = vpop.permute.xlu0 %2823
    %s2826 = sor.u32 256, 24
    %2827 = vbcast.lane.b32.xlu0 %v2372, %s2826
    %v2828 = vpop.permute.xlu0 %2827
    %v2831 = vmul.f32 %v2508, %v2824
    %v2832 = vmul.f32 %v2612, %v2828
    %v2833 = vmul.f32 %v2716, %v2824
    %v2834 = vmul.f32 %v2820, %v2828
    %v2835 = vadd.f32 %v2401, %v2831
    %v2836 = vadd.f32 %v2402, %v2832
    %v2837 = vadd.f32 %v2403, %v2833
    %v2838 = vadd.f32 %v2404, %v2834
    %v2839 = vld [vmem:[#allocation2 + $0x50] sm:$0xff]
    %v2840 = vld [vmem:[#allocation2 + $0x58] sm:$0xff]
    %v2841 = vld [vmem:[#allocation2 + $0x62] sm:$0x1]
    %v2842 = vlaneseq
    %v2843 = vshrl.u32 %v2842, 7
    %v2844 = vsub.s32 0, %v2843
    %v2845 = vrot.slane %v2841, %v2844
    %2850 = vset.pattern.permute.xlu0 0
    %2851 = vperm.xlu0 %2850, %v2835
    %v2852 = vpop.permute.xlu0 %2851
    %2853 = vset.pattern.permute.xlu0 0
    %2854 = vperm.xlu0 %2853, %v2836
    %v2855 = vpop.permute.xlu0 %2854
    %2856 = vset.pattern.permute.xlu0 0
    %2857 = vperm.xlu0 %2856, %v2837
    %v2858 = vpop.permute.xlu0 %2857
    %2859 = vset.pattern.permute.xlu0 0
    %2860 = vperm.xlu0 %2859, %v2838
    %v2861 = vpop.permute.xlu0 %2860
    %v2862 = vlaneseq
    %v2863 = vshrl.u32 %v2862, 7
    %v2864 = vsub.s32 %v238, %v2863
    %v2865 = vrot.slane %v2852, %v2864
    %v2866 = vlaneseq
    %v2867 = vshrl.u32 %v2866, 7
    %v2868 = vsub.s32 %v243, %v2867
    %v2869 = vrot.slane %v2855, %v2868
    %v2870 = vsel %vm248, %v2869, %v2865
    %v2871 = vlaneseq
    %v2872 = vshrl.u32 %v2871, 7
    %v2873 = vsub.s32 %v238, %v2872
    %v2874 = vrot.slane %v2858, %v2873
    %v2875 = vlaneseq
    %v2876 = vshrl.u32 %v2875, 7
    %v2877 = vsub.s32 %v243, %v2876
    %v2878 = vrot.slane %v2861, %v2877
    %v2879 = vsel %vm248, %v2878, %v2874
    %v2880 = vsel %vm259, %v2879, %v2870
    %v2881 = vsel %vm28, %v2880, 0
    %2883 = vmatprep.subr.mxu0 0.0
    %2884 = vmatpush1.msra.mxu0 %v2839
    %2885 = vmatprep.subr.mxu0 0.0
    %2886 = vmatpush1.msra.mxu0 %v2840
    %2887 = vmatprep.subr.mxu0 0.0
    %2888 = vmatpush1.msra.mxu0 0.0
    %2889 = vmatprep.subr.mxu0 0.0
    %2890 = vmatpush1.msra.mxu0 0.0
    %2891 = vmatprep.subr.mxu0 0.0
    %2892 = vmatpush1.msra.mxu0 0.0
    %2893 = vmatprep.subr.mxu0 0.0
    %2894 = vmatpush1.msra.mxu0 0.0
    %2895 = vmatprep.subr.mxu0 0.0
    %2896 = vmatpush1.msra.mxu0 0.0
    %2897 = vmatprep.subr.mxu0 0.0
    %2898 = vmatpush1.msra.mxu0 0.0
    %2899 = vmatprep.subr.mxu0 0.0
    %2900 = vmatpush1.msra.mxu0 0.0
    %2901 = vmatprep.subr.mxu0 0.0
    %2902 = vmatpush1.msra.mxu0 0.0
    %2903 = vmatprep.subr.mxu0 0.0
    %2904 = vmatpush1.msra.mxu0 0.0
    %2905 = vmatprep.subr.mxu0 0.0
    %2906 = vmatpush1.msra.mxu0 0.0
    %2907 = vmatprep.subr.mxu0 0.0
    %2908 = vmatpush1.msra.mxu0 0.0
    %2909 = vmatprep.subr.mxu0 0.0
    %2910 = vmatpush1.msra.mxu0 0.0
    %2911 = vmatprep.subr.mxu0 0.0
    %2912 = vmatpush1.msra.mxu0 0.0
    %2913 = vmatprep.subr.mxu0 0.0
    %2914 = vmatpush1.msra.mxu0 0.0
    %2915 = vmatprep.subr.mxu0 0.0
    %2916 = vmatpush1.msra.mxu0 0.0
    %2917 = vmatprep.subr.mxu0 0.0
    %2918 = vmatpush1.msra.mxu0 0.0
    %2919 = vmatprep.subr.mxu0 0.0
    %2920 = vmatpush1.msra.mxu0 0.0
    %2921 = vmatprep.subr.mxu0 0.0
    %2922 = vmatpush1.msra.mxu0 0.0
    %2923 = vmatprep.subr.mxu0 0.0
    %2924 = vmatpush1.msra.mxu0 0.0
    %2925 = vmatprep.subr.mxu0 0.0
    %2926 = vmatpush1.msra.mxu0 0.0
    %2927 = vmatprep.subr.mxu0 0.0
    %2928 = vmatpush1.msra.mxu0 0.0
    %2929 = vmatprep.subr.mxu0 0.0
    %2930 = vmatpush1.msra.mxu0 0.0
    %2931 = vmatprep.subr.mxu0 0.0
    %2932 = vmatpush1.msra.mxu0 0.0
    %2933 = vmatprep.subr.mxu0 0.0
    %2934 = vmatpush1.msra.mxu0 0.0
    %2935 = vmatprep.subr.mxu0 0.0
    %2936 = vmatpush1.msra.mxu0 0.0
    %2937 = vmatprep.subr.mxu0 0.0
    %2938 = vmatpush1.msra.mxu0 0.0
    %2939 = vmatprep.subr.mxu0 0.0
    %2940 = vmatpush1.msra.mxu0 0.0
    %2941 = vmatprep.subr.mxu0 0.0
    %2942 = vmatpush1.msra.mxu0 0.0
    %2943 = vmatprep.subr.mxu0 0.0
    %2944 = vmatpush1.msra.mxu0 0.0
    %2945 = vmatprep.subr.mxu0 0.0
    %2946 = vmatpush1.msra.mxu0 0.0
    %2947 = vmatprep.mubr.f32.mxu0 0.0
    %2948 = vmatmul.mubr.f32.gmra.mrb[0].mxu0 %v2881
    %v2949 = vpop.f32.mrb[0].mxu0
    %v2950 = vadd.f32 %v2845, %v2949
    %v2951 = vpop.f32.mrb[0].mxu0
    %2952 = vdwg.mxu0
    %v2953 = vsel %vm102, %v2950, 0.0
    %2954 = vadd.xlane.f32.xlu0 %v2953
    %v2955 = vpop.xlane.xlu0 %2954
    %v2956 = vmul.f32 %v2955, %v923
    %v2957 = vsub.f32 %v2950, %v2956
    %v2958 = vmul.f32 %v2957, %v2957
    %v2959 = vsel %vm102, %v2958, 0.0
    %2960 = vadd.xlane.f32.xlu0 %v2959
    %v2961 = vpop.xlane.xlu0 %2960
    %v2962 = vmul.f32 %v2961, %v923
    %v2963 = vadd.f32 %v2962, 1e-05
    %v2964 = vrsqrt.pop %v2963
    %v2965 = vmul.f32 %v2957, %v2964
    %2967 = vrot.lane.b32.xlu0 %v2845, 112
    %v2968 = vpop.permute.xlu0 %2967
    %v2970 = vmul.f32 %v2965, %v2968
    %2971 = vrot.lane.b32.xlu0 %v2845, 96
    %v2972 = vpop.permute.xlu0 %2971
    %v2974 = vadd.f32 %v2970, %v2972
    %2977 = vrot.lane.b32.xlu0 %v2839, 112
    %v2978 = vpop.permute.xlu0 %2977
    %2979 = vrot.lane.b32.xlu0 %v2840, 112
    %v2980 = vpop.permute.xlu0 %2979
    %v2984 = vsel %vm28, %v2974, 0
    %2986 = vmatprep.subr.mxu0 0.0
    %2987 = vmatpush1.msra.mxu0 %v2978
    %2988 = vmatprep.subr.mxu0 0.0
    %2989 = vmatpush1.msra.mxu0 %v2980
    %2990 = vmatprep.subr.mxu0 0.0
    %2991 = vmatpush1.msra.mxu0 0.0
    %2992 = vmatprep.subr.mxu0 0.0
    %2993 = vmatpush1.msra.mxu0 0.0
    %2994 = vmatprep.subr.mxu0 0.0
    %2995 = vmatpush1.msra.mxu0 0.0
    %2996 = vmatprep.subr.mxu0 0.0
    %2997 = vmatpush1.msra.mxu0 0.0
    %2998 = vmatprep.subr.mxu0 0.0
    %2999 = vmatpush1.msra.mxu0 0.0
    %3000 = vmatprep.subr.mxu0 0.0
    %3001 = vmatpush1.msra.mxu0 0.0
    %3002 = vmatprep.subr.mxu0 0.0
    %3003 = vmatpush1.msra.mxu0 0.0
    %3004 = vmatprep.subr.mxu0 0.0
    %3005 = vmatpush1.msra.mxu0 0.0
    %3006 = vmatprep.subr.mxu0 0.0
    %3007 = vmatpush1.msra.mxu0 0.0
    %3008 = vmatprep.subr.mxu0 0.0
    %3009 = vmatpush1.msra.mxu0 0.0
    %3010 = vmatprep.subr.mxu0 0.0
    %3011 = vmatpush1.msra.mxu0 0.0
    %3012 = vmatprep.subr.mxu0 0.0
    %3013 = vmatpush1.msra.mxu0 0.0
    %3014 = vmatprep.subr.mxu0 0.0
    %3015 = vmatpush1.msra.mxu0 0.0
    %3016 = vmatprep.subr.mxu0 0.0
    %3017 = vmatpush1.msra.mxu0 0.0
    %3018 = vmatprep.subr.mxu0 0.0
    %3019 = vmatpush1.msra.mxu0 0.0
    %3020 = vmatprep.subr.mxu0 0.0
    %3021 = vmatpush1.msra.mxu0 0.0
    %3022 = vmatprep.subr.mxu0 0.0
    %3023 = vmatpush1.msra.mxu0 0.0
    %3024 = vmatprep.subr.mxu0 0.0
    %3025 = vmatpush1.msra.mxu0 0.0
    %3026 = vmatprep.subr.mxu0 0.0
    %3027 = vmatpush1.msra.mxu0 0.0
    %3028 = vmatprep.subr.mxu0 0.0
    %3029 = vmatpush1.msra.mxu0 0.0
    %3030 = vmatprep.subr.mxu0 0.0
    %3031 = vmatpush1.msra.mxu0 0.0
    %3032 = vmatprep.subr.mxu0 0.0
    %3033 = vmatpush1.msra.mxu0 0.0
    %3034 = vmatprep.subr.mxu0 0.0
    %3035 = vmatpush1.msra.mxu0 0.0
    %3036 = vmatprep.subr.mxu0 0.0
    %3037 = vmatpush1.msra.mxu0 0.0
    %3038 = vmatprep.subr.mxu0 0.0
    %3039 = vmatpush1.msra.mxu0 0.0
    %3040 = vmatprep.subr.mxu0 0.0
    %3041 = vmatpush1.msra.mxu0 0.0
    %3042 = vmatprep.subr.mxu0 0.0
    %3043 = vmatpush1.msra.mxu0 0.0
    %3044 = vmatprep.subr.mxu0 0.0
    %3045 = vmatpush1.msra.mxu0 0.0
    %3046 = vmatprep.subr.mxu0 0.0
    %3047 = vmatpush1.msra.mxu0 0.0
    %3048 = vmatprep.subr.mxu0 0.0
    %3049 = vmatpush1.msra.mxu0 0.0
    %3050 = vmatprep.mubr.f32.mxu0 0.0
    %3051 = vmatmul.mubr.f32.gmra.mrb[0].mxu0 %v2984
    %v3052 = vpop.f32.mrb[0].mxu0
    %v3053 = vadd.f32 0.0, %v3052
    %v3054 = vpop.f32.mrb[0].mxu0
    %3055 = vdwg.mxu0
    %3056 = vrot.lane.b32.xlu0 %v2845, 80
    %v3057 = vpop.permute.xlu0 %3056
    %v3059 = vadd.f32 %v3053, %v3057
    %vm3060 = vcmask 58368
    %v3061 = vsel %vm3060, %v3059, 0.0
    %3062 = vadd.xlane.f32.xlu0 %v3061
    %v3063 = vpop.xlane.xlu0 %3062
    %v3064 = vrcp.pop 8.0
    %v3065 = vmul.f32 %v3063, %v3064
    %v3066 = vsub.f32 %v3059, %v3065
    %v3067 = vmul.f32 %v3066, %v3066
    %v3068 = vsel %vm3060, %v3067, 0.0
    %3069 = vadd.xlane.f32.xlu0 %v3068
    %v3070 = vpop.xlane.xlu0 %3069
    %v3071 = vmul.f32 %v3070, %v3064
    %v3072 = vadd.f32 %v3071, 1e-05
    %v3073 = vrsqrt.pop %v3072
    %v3074 = vmul.f32 %v3066, %v3073
    %3075 = vrot.lane.b32.xlu0 %v2845, 64
    %v3076 = vpop.permute.xlu0 %3075
    %v3078 = vmul.f32 %v3074, %v3076
    %3079 = vrot.lane.b32.xlu0 %v2845, 48
    %v3080 = vpop.permute.xlu0 %3079
    %v3082 = vadd.f32 %v3078, %v3080
    %v3083 = vmul.f32 %v3082, 0.5
    %v3084 = vtanh.pop %v3083
    %v3085 = vmul.f32 %v3084, 0.5
    %v3086 = vadd.f32 %v3085, 0.5
    %v3087 = vld [vmem:[#allocation2 + $0x67] sm:$0x1]
    %v3088 = vlaneseq
    %v3089 = vshrl.u32 %v3088, 7
    %v3090 = vsub.s32 0, %v3089
    %v3091 = vrot.slane %v3087, %v3090
    %3093 = vrot.lane.b32.xlu0 %v3091, 8
    %v3094 = vpop.permute.xlu0 %3093
    %3096 = vrot.lane.b32.xlu0 %v2066, 9
    %v3097 = vpop.permute.xlu0 %3096
    %vm3099 = vcmask 64512
    %v3100 = vsel %vm3099, %v3086, %v3094
    %vm3101 = vcmask 72704
    %v3102 = vsel %vm3101, %v3100, %v3097
    %vm3103 = vcmask 203776
    %v3104 = vsel %vm3103, %v3102, 0.0
    %3105 = vst [vmem:[%s2] sm:$0x3] %v3104
    // Predicated region
    $region14: #{optimnet_forward.1} parent=1 // pred_check
      _
    $region15: #{optimnet_forward.1} parent=1 // pred_check_branch
      %3107 = sbr.rel (0) target = $region17
    $region16: #{optimnet_forward.1} parent=1 // pred_region
      _
    $region17: #{optimnet_forward.1} parent=1 // pred_fallthru
      _
    // Predicated region
    $region18: #{optimnet_forward.1} parent=1 // pred_check
      _
    $region19: #{optimnet_forward.1} parent=1 // pred_check_branch
      %3109 = sbr.rel (0) target = $region21
    $region20: #{optimnet_forward.1} parent=1 // pred_region
      _
    $region21: #{optimnet_forward.1} parent=1 // pred_fallthru
      _
    %3110 = vsyncpa [#allocation3], 1

</llo_original>
